<compile_context>
chip_gen: v7x
topology: tpu7x:2x2x1
jax: 0.10.0
libtpu: 0.0.40
codegen_flags: <defaults>
</compile_context>

<pallas_src>
import numpy as np

import jax
import jax.numpy as jnp
from jax import lax
from jax.experimental import pallas as pl
from jax.experimental.pallas import tpu as pltpu

NUM_LGT_SGS = 24
MULTIRES_PTS = 10
ENC_DIM = 3 + 3 * 2 * MULTIRES_PTS          # 63
ENC_PAD = 64                                # (TM, 64) legal: 64 == full last dim
HIDDEN = 512
OUT_RAW = NUM_LGT_SGS * 6                   # 144
OUT_PAD = 256                               # lane-dense / MXU-friendly width
HALF = 128                                  # transcendental half of the slab
TM_MAX = 1024                               # max rows per grid step
TWO_PI = 2.0 * np.pi

# ---------------------------------------------------------------------------
# last-layer column placement (padded to 256 lanes).
# Left half (lanes 0:128) holds everything that needs sigmoid/sin/cos:
#   lanes   0:24   phi     -> cos gives lz; sin is the roll source for lx
#   lanes  24:48   phi     -> sin is the roll source for ly
#   lanes  48:72   theta   -> lx = cos(theta) * sin(phi)
#   lanes  72:96   theta   -> ly = sin(theta) * sin(phi)
#   lanes  96:120  lambda  -> 30 * sigmoid + 0.1
#   lanes 120:128  zero pad
# Right half (lanes 128:256) is ReLU-only:
#   lanes 128:200  mu1|mu2|mu3
#   lanes 200:256  zero pad
# A +48 lane roll (np.roll direction: elements move to higher lane indices)
# carries sin(phi) from lanes 0:48 onto the theta lanes 48:96.
# ---------------------------------------------------------------------------
_sg = np.arange(NUM_LGT_SGS)
_theta_c, _phi_c, _lam_c = _sg * 6 + 0, _sg * 6 + 1, _sg * 6 + 2
_mu1_c, _mu2_c, _mu3_c = _sg * 6 + 3, _sg * 6 + 4, _sg * 6 + 5
_COL_SRC = np.concatenate([
    _phi_c, _phi_c,                          # 0:48
    _theta_c, _theta_c,                      # 48:96
    _lam_c,                                  # 96:120
    np.zeros(8, np.int64),                   # 120:128 (masked to zero)
    _mu1_c, _mu2_c, _mu3_c,                  # 128:200
    np.zeros(56, np.int64),                  # 200:256 (masked to zero)
])
_COL_MASK = np.concatenate(
    [np.ones(120), np.zeros(8), np.ones(72), np.zeros(56)]).astype(np.float32)


# ---------------------------------------------------------------------------
# glue: NeRF positional encoding (matches get_embedder(10): identity + sin/cos)
# ---------------------------------------------------------------------------
def embed_pts(pts):
    freqs = 2.0 ** jnp.arange(MULTIRES_PTS, dtype=jnp.float32)   # 2^0 .. 2^9
    outs = [pts]
    for k in range(MULTIRES_PTS):
        outs.append(jnp.sin(pts * freqs[k]))
        outs.append(jnp.cos(pts * freqs[k]))
    return jnp.concatenate(outs, axis=-1)                        # (N, 63)


# ---------------------------------------------------------------------------
# Pallas kernel: 5-layer MLP (bf16 MXU, f32 accum) + 128-lane SG epilogue
# ---------------------------------------------------------------------------
def _indi_kernel(x_ref, w0_ref, b0_ref, w1_ref, b1_ref, w2_ref, b2_ref,
                 w3_ref, b3_ref, w4_ref, b4_ref, o_ref):
    def layer(h, w_ref, b_ref):
        y = jnp.dot(h, w_ref[...], preferred_element_type=jnp.float32) + b_ref[...]
        return jnp.maximum(y, 0.0).astype(jnp.bfloat16)          # ReLU on f32, one cast

    h = x_ref[...]                                               # (TM, 64) bf16
    h = layer(h, w0_ref, b0_ref)
    h = layer(h, w1_ref, b1_ref)
    h = layer(h, w2_ref, b2_ref)
    h = layer(h, w3_ref, b3_ref)
    # (TM, 256) lane-dense raw output (see column layout above)
    o = jnp.dot(h, w4_ref[...], preferred_element_type=jnp.float32) + b4_ref[...]

    # ----- epilogue: transcendentals only on the left 128 lanes -----
    o_left = o[:, :HALF]                     # phi|phi|theta|theta|lam|pad  (tile aligned)
    o_right = o[:, HALF:]                    # mu1|mu2|mu3|pad

    sig = jax.nn.sigmoid(o_left)             # (TM, 128)
    ang = sig * TWO_PI
    sin_a = jnp.sin(ang)
    cos_a = jnp.cos(ang)
    # sin(phi) from lanes 0:48 shifted onto the theta lanes 48:96
    # (pltpu.roll(sin_a, shift=48, axis=1) is the native alternative on HW)
    sin_roll = jnp.roll(sin_a, 48, axis=1)

    col = lax.broadcasted_iota(jnp.int32, o_left.shape, 1)
    # lanes  0:24  -> lz = cos(phi)
    # lanes 48:72  -> lx = cos(theta) * sin(phi)
    # lanes 72:96  -> ly = sin(theta) * sin(phi)
    trig1 = jnp.where((col >= 72) & (col < 96), sin_a, cos_a)
    trig2 = jnp.where((col >= 48) & (col < 96), sin_roll, 1.0)
    lobes = trig1 * trig2
    left = jnp.where(col < 96, lobes, sig * 30.0 + 0.1)          # lanes 96:120 = lambda

    # two unmasked, lane-aligned 128-wide stores
    o_ref[:, :HALF] = left
    o_ref[:, HALF:] = jnp.maximum(o_right, 0.0)                  # mu = relu


def _round_up(x, m):
    return ((x + m - 1) // m) * m


@jax.jit
def indirect_light_forward(pts, params):
    """pts: (N, 3) float32 -> (N, 24, 7) float32."""
    w0, b0, w1, b1, w2, b2, w3, b3, w4, b4 = params

    enc = embed_pts(pts)                                         # (N, 63) f32
    n = enc.shape[0]

    # Row tile:
    #  * tiny batch  (<=512 rows): one grid step, tm rounded to 16.
    #  * mid batch   (<=2*TM_MAX): exactly two steps so the 1-D "parallel"
    #    grid can split across both TensorCores on v7x.
    #  * large batch: TM_MAX-row steps (grid overhead ~0.35us/step amortized).
    n16 = _round_up(max(n, 16), 16)
    if n16 <= 512:
        tm = n16
    elif n16 <= 2 * TM_MAX:
        tm = max(256, _round_up((n16 + 1) // 2, 16))
    else:
        tm = TM_MAX
    n_pad = _round_up(n, tm)

    enc = jnp.pad(enc, ((0, n_pad - n), (0, ENC_PAD - ENC_DIM)))
    enc = enc.astype(jnp.bfloat16)                               # (n_pad, 64) bf16

    # layer-0 weight rows padded to the encoding width; all weights bf16
    w0p = jnp.pad(w0, ((0, ENC_PAD - ENC_DIM), (0, 0))).astype(jnp.bfloat16)
    w1b = w1.astype(jnp.bfloat16)
    w2b = w2.astype(jnp.bfloat16)
    w3b = w3.astype(jnp.bfloat16)
    # last layer: duplicate/permute columns into the 256-wide slab layout
    w4p = (w4[:, _COL_SRC] * _COL_MASK).astype(jnp.bfloat16)     # (512, 256)
    b4p = (b4[:, _COL_SRC] * _COL_MASK).astype(jnp.float32)      # (1, 256)

    rows = lambda i: (i, 0)
    full = lambda i: (0, 0)

    weight_elems = ENC_PAD * HIDDEN + 3 * HIDDEN * HIDDEN + HIDDEN * OUT_PAD
    cost = pl.CostEstimate(
        flops=2 * n_pad * weight_elems,
        transcendentals=3 * n_pad * HALF,
        bytes_accessed=(n_pad * (ENC_PAD * 2 + OUT_PAD * 4)
                        + 2 * weight_elems + 4 * (4 * HIDDEN + OUT_PAD)),
    )

    out_flat = pl.pallas_call(
        _indi_kernel,
        out_shape=jax.ShapeDtypeStruct((n_pad, OUT_PAD), jnp.float32),
        grid=(n_pad // tm,),
        in_specs=[
            pl.BlockSpec((tm, ENC_PAD), rows),
            pl.BlockSpec((ENC_PAD, HIDDEN), full), pl.BlockSpec((1, HIDDEN), full),
            pl.BlockSpec((HIDDEN, HIDDEN), full), pl.BlockSpec((1, HIDDEN), full),
            pl.BlockSpec((HIDDEN, HIDDEN), full), pl.BlockSpec((1, HIDDEN), full),
            pl.BlockSpec((HIDDEN, HIDDEN), full), pl.BlockSpec((1, HIDDEN), full),
            pl.BlockSpec((HIDDEN, OUT_PAD), full), pl.BlockSpec((1, OUT_PAD), full),
        ],
        out_specs=pl.BlockSpec((tm, OUT_PAD), rows),
        compiler_params=pltpu.CompilerParams(
            dimension_semantics=("parallel",),
            vmem_limit_bytes=32 * 1024 * 1024),
        cost_estimate=cost,
    )(enc, w0p, b0, w1b, b1, w2b, b2, w3b, b3, w4p, b4p)

    # slab -> (N, 7, 24) component-major -> (N, 24, 7)
    #   lx,ly = lanes 48:96 | lz = lanes 0:24 | lam = 96:120 | mu = 128:200
    out = jnp.concatenate(
        [out_flat[:n, 48:96], out_flat[:n, 0:24],
         out_flat[:n, 96:120], out_flat[:n, 128:200]], axis=1)
    return out.reshape(n, 7, NUM_LGT_SGS).transpose(0, 2, 1)


# ---------------------------------------------------------------------------
# pure-JAX reference (mirrors the PyTorch forward); quantize=True mirrors the
# kernel's bf16 weight/activation casts so the comparison stays tight.
# ---------------------------------------------------------------------------
def _q(x):
    return x.astype(jnp.bfloat16).astype(jnp.float32)


def indirect_light_ref(pts, params, quantize=True):
    w0, b0, w1, b1, w2, b2, w3, b3, w4, b4 = params
    q = _q if quantize else (lambda x: x)
    h = q(embed_pts(pts))
    h = q(jnp.maximum(h @ q(w0) + b0, 0.0))
    h = q(jnp.maximum(h @ q(w1) + b1, 0.0))
    h = q(jnp.maximum(h @ q(w2) + b2, 0.0))
    h = q(jnp.maximum(h @ q(w3) + b3, 0.0))
    o = (h @ q(w4) + b4).reshape(-1, NUM_LGT_SGS, 6)
    lobes = jax.nn.sigmoid(o[..., :2])
    theta, phi = lobes[..., :1] * TWO_PI, lobes[..., 1:2] * TWO_PI
    lobes3 = jnp.concatenate(
        [jnp.cos(theta) * jnp.sin(phi), jnp.sin(theta) * jnp.sin(phi), jnp.cos(phi)],
        axis=-1)
    lam = jax.nn.sigmoid(o[..., 2:3]) * 30.0 + 0.1
    mu = jnp.maximum(o[..., 3:], 0.0)
    return jnp.concatenate([lobes3, lam, mu], axis=-1)


def init_params(key):
    dims = [(ENC_DIM, HIDDEN), (HIDDEN, HIDDEN), (HIDDEN, HIDDEN),
            (HIDDEN, HIDDEN), (HIDDEN, OUT_RAW)]
    params = []
    for (fan_in, fan_out) in dims:
        key, kw, kb = jax.random.split(key, 3)
        scale = jnp.sqrt(2.0 / fan_in)
        w = jax.random.normal(kw, (fan_in, fan_out), jnp.float32) * scale
        b = jax.random.normal(kb, (1, fan_out), jnp.float32) * 0.01
        params += [w, b]
    return tuple(params)


if __name__ == "__main__":
    key = jax.random.PRNGKey(0)
    kp, kx = jax.random.split(key)
    params = init_params(kp)
    pts = jax.random.normal(kx, (16, 3), jnp.float32)            # (N, 3)

    out = indirect_light_forward(pts, params)
    jax.block_until_ready(out)

    ref = indirect_light_ref(pts, params, quantize=True)
    assert out.shape == (16, NUM_LGT_SGS, 7), out.shape
    err = float(jnp.max(jnp.abs(out - ref)))
    assert err < 1e-2, err
    print("KERNEL_OK")
</pallas_src>

<mosaic_0001>
module attributes {stable_mosaic.version = 11 : i64} {
  func.func @_indi_kernel(%arg0: i32, %arg1: memref<16x64xbf16, #tpu.memory_space<vmem>>, %arg2: memref<64x512xbf16, #tpu.memory_space<vmem>>, %arg3: memref<1x512xf32, #tpu.memory_space<vmem>>, %arg4: memref<512x512xbf16, #tpu.memory_space<vmem>>, %arg5: memref<1x512xf32, #tpu.memory_space<vmem>>, %arg6: memref<512x512xbf16, #tpu.memory_space<vmem>>, %arg7: memref<1x512xf32, #tpu.memory_space<vmem>>, %arg8: memref<512x512xbf16, #tpu.memory_space<vmem>>, %arg9: memref<1x512xf32, #tpu.memory_space<vmem>>, %arg10: memref<512x256xbf16, #tpu.memory_space<vmem>>, %arg11: memref<1x256xf32, #tpu.memory_space<vmem>>, %arg12: memref<16x256xf32, #tpu.memory_space<vmem>>) attributes {dimension_semantics = [#tpu.dimension_semantics<parallel>], iteration_bounds = array<i64: 1>, scalar_prefetch = 0 : i64, scratch_operands = 0 : i64, tpu.core_type = #tpu.core_type<tc>, window_params = [{transform_indices = @transform_0, window_bounds = array<i64: 16, 64>}, {pipeline_mode = #tpu.pipeline_mode<synchronous>, transform_indices = @transform_1, window_bounds = array<i64: 64, 512>}, {pipeline_mode = #tpu.pipeline_mode<synchronous>, transform_indices = @transform_2, window_bounds = array<i64: 1, 512>}, {pipeline_mode = #tpu.pipeline_mode<synchronous>, transform_indices = @transform_3, window_bounds = array<i64: 512, 512>}, {pipeline_mode = #tpu.pipeline_mode<synchronous>, transform_indices = @transform_4, window_bounds = array<i64: 1, 512>}, {pipeline_mode = #tpu.pipeline_mode<synchronous>, transform_indices = @transform_5, window_bounds = array<i64: 512, 512>}, {pipeline_mode = #tpu.pipeline_mode<synchronous>, transform_indices = @transform_6, window_bounds = array<i64: 1, 512>}, {pipeline_mode = #tpu.pipeline_mode<synchronous>, transform_indices = @transform_7, window_bounds = array<i64: 512, 512>}, {pipeline_mode = #tpu.pipeline_mode<synchronous>, transform_indices = @transform_8, window_bounds = array<i64: 1, 512>}, {pipeline_mode = #tpu.pipeline_mode<synchronous>, transform_indices = @transform_9, window_bounds = array<i64: 512, 256>}, {pipeline_mode = #tpu.pipeline_mode<synchronous>, transform_indices = @transform_10, window_bounds = array<i64: 1, 256>}, {transform_indices = @transform_11, window_bounds = array<i64: 16, 256>}]} {
    %c0 = arith.constant 0 : index
    %c0_0 = arith.constant 0 : index
    %0 = vector.load %arg1[%c0, %c0_0] : memref<16x64xbf16, #tpu.memory_space<vmem>>, vector<16x64xbf16>
    %c0_1 = arith.constant 0 : index
    %c0_2 = arith.constant 0 : index
    %1 = vector.load %arg2[%c0_1, %c0_2] : memref<64x512xbf16, #tpu.memory_space<vmem>>, vector<64x512xbf16>
    %cst = arith.constant dense<0.000000e+00> : vector<16x512xf32>
    %2 = tpu.matmul %0, %1, %cst {dimension_numbers = #tpu.dot_dimension_numbers<[1], [0], [0], [1], [0, 0, 1, 1], [], []>} : vector<16x64xbf16>, vector<64x512xbf16>, vector<16x512xf32> -> vector<16x512xf32>
    %c0_3 = arith.constant 0 : index
    %c0_4 = arith.constant 0 : index
    %3 = vector.load %arg3[%c0_3, %c0_4] : memref<1x512xf32, #tpu.memory_space<vmem>>, vector<1x512xf32>
    %4 = vector.broadcast %3 : vector<1x512xf32> to vector<16x512xf32>
    %5 = arith.addf %2, %4 : vector<16x512xf32>
    %cst_5 = arith.constant 0.000000e+00 : f32
    %6 = vector.broadcast %cst_5 : f32 to vector<16x512xf32>
    %7 = arith.maximumf %5, %6 : vector<16x512xf32>
    %8 = arith.truncf %7 : vector<16x512xf32> to vector<16x512xbf16>
    %c0_6 = arith.constant 0 : index
    %c0_7 = arith.constant 0 : index
    %9 = vector.load %arg4[%c0_6, %c0_7] : memref<512x512xbf16, #tpu.memory_space<vmem>>, vector<512x512xbf16>
    %cst_8 = arith.constant dense<0.000000e+00> : vector<16x512xf32>
    %10 = tpu.matmul %8, %9, %cst_8 {dimension_numbers = #tpu.dot_dimension_numbers<[1], [0], [0], [1], [0, 0, 1, 1], [], []>} : vector<16x512xbf16>, vector<512x512xbf16>, vector<16x512xf32> -> vector<16x512xf32>
    %c0_9 = arith.constant 0 : index
    %c0_10 = arith.constant 0 : index
    %11 = vector.load %arg5[%c0_9, %c0_10] : memref<1x512xf32, #tpu.memory_space<vmem>>, vector<1x512xf32>
    %12 = vector.broadcast %11 : vector<1x512xf32> to vector<16x512xf32>
    %13 = arith.addf %10, %12 : vector<16x512xf32>
    %cst_11 = arith.constant 0.000000e+00 : f32
    %14 = vector.broadcast %cst_11 : f32 to vector<16x512xf32>
    %15 = arith.maximumf %13, %14 : vector<16x512xf32>
    %16 = arith.truncf %15 : vector<16x512xf32> to vector<16x512xbf16>
    %c0_12 = arith.constant 0 : index
    %c0_13 = arith.constant 0 : index
    %17 = vector.load %arg6[%c0_12, %c0_13] : memref<512x512xbf16, #tpu.memory_space<vmem>>, vector<512x512xbf16>
    %cst_14 = arith.constant dense<0.000000e+00> : vector<16x512xf32>
    %18 = tpu.matmul %16, %17, %cst_14 {dimension_numbers = #tpu.dot_dimension_numbers<[1], [0], [0], [1], [0, 0, 1, 1], [], []>} : vector<16x512xbf16>, vector<512x512xbf16>, vector<16x512xf32> -> vector<16x512xf32>
    %c0_15 = arith.constant 0 : index
    %c0_16 = arith.constant 0 : index
    %19 = vector.load %arg7[%c0_15, %c0_16] : memref<1x512xf32, #tpu.memory_space<vmem>>, vector<1x512xf32>
    %20 = vector.broadcast %19 : vector<1x512xf32> to vector<16x512xf32>
    %21 = arith.addf %18, %20 : vector<16x512xf32>
    %cst_17 = arith.constant 0.000000e+00 : f32
    %22 = vector.broadcast %cst_17 : f32 to vector<16x512xf32>
    %23 = arith.maximumf %21, %22 : vector<16x512xf32>
    %24 = arith.truncf %23 : vector<16x512xf32> to vector<16x512xbf16>
    %c0_18 = arith.constant 0 : index
    %c0_19 = arith.constant 0 : index
    %25 = vector.load %arg8[%c0_18, %c0_19] : memref<512x512xbf16, #tpu.memory_space<vmem>>, vector<512x512xbf16>
    %cst_20 = arith.constant dense<0.000000e+00> : vector<16x512xf32>
    %26 = tpu.matmul %24, %25, %cst_20 {dimension_numbers = #tpu.dot_dimension_numbers<[1], [0], [0], [1], [0, 0, 1, 1], [], []>} : vector<16x512xbf16>, vector<512x512xbf16>, vector<16x512xf32> -> vector<16x512xf32>
    %c0_21 = arith.constant 0 : index
    %c0_22 = arith.constant 0 : index
    %27 = vector.load %arg9[%c0_21, %c0_22] : memref<1x512xf32, #tpu.memory_space<vmem>>, vector<1x512xf32>
    %28 = vector.broadcast %27 : vector<1x512xf32> to vector<16x512xf32>
    %29 = arith.addf %26, %28 : vector<16x512xf32>
    %cst_23 = arith.constant 0.000000e+00 : f32
    %30 = vector.broadcast %cst_23 : f32 to vector<16x512xf32>
    %31 = arith.maximumf %29, %30 : vector<16x512xf32>
    %32 = arith.truncf %31 : vector<16x512xf32> to vector<16x512xbf16>
    %c0_24 = arith.constant 0 : index
    %c0_25 = arith.constant 0 : index
    %33 = vector.load %arg10[%c0_24, %c0_25] : memref<512x256xbf16, #tpu.memory_space<vmem>>, vector<512x256xbf16>
    %cst_26 = arith.constant dense<0.000000e+00> : vector<16x256xf32>
    %34 = tpu.matmul %32, %33, %cst_26 {dimension_numbers = #tpu.dot_dimension_numbers<[1], [0], [0], [1], [0, 0, 1, 1], [], []>} : vector<16x512xbf16>, vector<512x256xbf16>, vector<16x256xf32> -> vector<16x256xf32>
    %c0_27 = arith.constant 0 : index
    %c0_28 = arith.constant 0 : index
    %35 = vector.load %arg11[%c0_27, %c0_28] : memref<1x256xf32, #tpu.memory_space<vmem>>, vector<1x256xf32>
    %36 = vector.broadcast %35 : vector<1x256xf32> to vector<16x256xf32>
    %37 = arith.addf %34, %36 : vector<16x256xf32>
    %38 = vector.extract_strided_slice %37 {offsets = [0, 0], sizes = [16, 128], strides = [1, 1]} : vector<16x256xf32> to vector<16x128xf32>
    %39 = vector.extract_strided_slice %37 {offsets = [0, 128], sizes = [16, 128], strides = [1, 1]} : vector<16x256xf32> to vector<16x128xf32>
    %40 = arith.negf %38 : vector<16x128xf32>
    %41 = math.exp %40 : vector<16x128xf32>
    %cst_29 = arith.constant 1.000000e+00 : f32
    %42 = vector.broadcast %cst_29 : f32 to vector<16x128xf32>
    %43 = arith.addf %42, %41 : vector<16x128xf32>
    %44 = arith.divf %42, %43 : vector<16x128xf32>
    %cst_30 = arith.constant 6.28318548 : f32
    %45 = vector.broadcast %cst_30 : f32 to vector<16x128xf32>
    %46 = arith.mulf %44, %45 : vector<16x128xf32>
    %47 = math.sin %46 : vector<16x128xf32>
    %48 = math.cos %46 : vector<16x128xf32>
    %49 = vector.extract_strided_slice %47 {offsets = [0, 80], sizes = [16, 48], strides = [1, 1]} : vector<16x128xf32> to vector<16x48xf32>
    %50 = vector.extract_strided_slice %47 {offsets = [0, 0], sizes = [16, 80], strides = [1, 1]} : vector<16x128xf32> to vector<16x80xf32>
    %51 = tpu.concatenate %49, %50 in 1 : vector<16x48xf32>, vector<16x80xf32> -> vector<16x128xf32>
    %52 = tpu.iota {dimensions = array<i32: 1>} : vector<16x128xi32>
    %c72_i32 = arith.constant 72 : i32
    %53 = vector.broadcast %c72_i32 : i32 to vector<16x128xi32>
    %54 = arith.cmpi sge, %52, %53 : vector<16x128xi32>
    %c96_i32 = arith.constant 96 : i32
    %55 = vector.broadcast %c96_i32 : i32 to vector<16x128xi32>
    %56 = arith.cmpi slt, %52, %55 : vector<16x128xi32>
    %57 = arith.andi %54, %56 : vector<16x128xi1>
    %58 = arith.select %57, %47, %48 : vector<16x128xi1>, vector<16x128xf32>
    %c48_i32 = arith.constant 48 : i32
    %59 = vector.broadcast %c48_i32 : i32 to vector<16x128xi32>
    %60 = arith.cmpi sge, %52, %59 : vector<16x128xi32>
    %c96_i32_31 = arith.constant 96 : i32
    %61 = vector.broadcast %c96_i32_31 : i32 to vector<16x128xi32>
    %62 = arith.cmpi slt, %52, %61 : vector<16x128xi32>
    %63 = arith.andi %60, %62 : vector<16x128xi1>
    %cst_32 = arith.constant 1.000000e+00 : f32
    %64 = vector.broadcast %cst_32 : f32 to vector<16x128xf32>
    %65 = arith.select %63, %51, %64 : vector<16x128xi1>, vector<16x128xf32>
    %66 = arith.mulf %58, %65 : vector<16x128xf32>
    %c96_i32_33 = arith.constant 96 : i32
    %67 = vector.broadcast %c96_i32_33 : i32 to vector<16x128xi32>
    %68 = arith.cmpi slt, %52, %67 : vector<16x128xi32>
    %cst_34 = arith.constant 3.000000e+01 : f32
    %69 = vector.broadcast %cst_34 : f32 to vector<16x128xf32>
    %70 = arith.mulf %44, %69 : vector<16x128xf32>
    %cst_35 = arith.constant 1.000000e-01 : f32
    %71 = vector.broadcast %cst_35 : f32 to vector<16x128xf32>
    %72 = arith.addf %70, %71 : vector<16x128xf32>
    %73 = arith.select %68, %66, %72 : vector<16x128xi1>, vector<16x128xf32>
    %c0_36 = arith.constant 0 : index
    %c0_37 = arith.constant 0 : index
    %74 = vector.load %arg12[%c0_36, %c0_37] : memref<16x256xf32, #tpu.memory_space<vmem>>, vector<16x128xf32>
    tpu.vector_store %arg12[%c0_36, %c0_37], %73 {strides = array<i32>} : memref<16x256xf32, #tpu.memory_space<vmem>>, vector<16x128xf32>,
    %cst_38 = arith.constant 0.000000e+00 : f32
    %75 = vector.broadcast %cst_38 : f32 to vector<16x128xf32>
    %76 = arith.maximumf %39, %75 : vector<16x128xf32>
    %c0_39 = arith.constant 0 : index
    %c128 = arith.constant 128 : index
    %77 = vector.load %arg12[%c0_39, %c128] : memref<16x256xf32, #tpu.memory_space<vmem>>, vector<16x128xf32>
    tpu.vector_store %arg12[%c0_39, %c128], %76 {strides = array<i32>} : memref<16x256xf32, #tpu.memory_space<vmem>>, vector<16x128xf32>,
    return
  }
  func.func @transform_0(%arg0: i32) -> (i32, i32) {
    %c0_i32 = arith.constant 0 : i32
    %c0_i32_0 = arith.constant 0 : i32
    return %arg0, %c0_i32 : i32, i32
  }
  func.func @transform_1(%arg0: i32) -> (i32, i32) {
    %c0_i32 = arith.constant 0 : i32
    %c0_i32_0 = arith.constant 0 : i32
    %c0_i32_1 = arith.constant 0 : i32
    return %c0_i32, %c0_i32_0 : i32, i32
  }
  func.func @transform_2(%arg0: i32) -> (i32, i32) {
    %c0_i32 = arith.constant 0 : i32
    %c0_i32_0 = arith.constant 0 : i32
    %c0_i32_1 = arith.constant 0 : i32
    return %c0_i32, %c0_i32_0 : i32, i32
  }
  func.func @transform_3(%arg0: i32) -> (i32, i32) {
    %c0_i32 = arith.constant 0 : i32
    %c0_i32_0 = arith.constant 0 : i32
    %c0_i32_1 = arith.constant 0 : i32
    return %c0_i32, %c0_i32_0 : i32, i32
  }
  func.func @transform_4(%arg0: i32) -> (i32, i32) {
    %c0_i32 = arith.constant 0 : i32
    %c0_i32_0 = arith.constant 0 : i32
    %c0_i32_1 = arith.constant 0 : i32
    return %c0_i32, %c0_i32_0 : i32, i32
  }
  func.func @transform_5(%arg0: i32) -> (i32, i32) {
    %c0_i32 = arith.constant 0 : i32
    %c0_i32_0 = arith.constant 0 : i32
    %c0_i32_1 = arith.constant 0 : i32
    return %c0_i32, %c0_i32_0 : i32, i32
  }
  func.func @transform_6(%arg0: i32) -> (i32, i32) {
    %c0_i32 = arith.constant 0 : i32
    %c0_i32_0 = arith.constant 0 : i32
    %c0_i32_1 = arith.constant 0 : i32
    return %c0_i32, %c0_i32_0 : i32, i32
  }
  func.func @transform_7(%arg0: i32) -> (i32, i32) {
    %c0_i32 = arith.constant 0 : i32
    %c0_i32_0 = arith.constant 0 : i32
    %c0_i32_1 = arith.constant 0 : i32
    return %c0_i32, %c0_i32_0 : i32, i32
  }
  func.func @transform_8(%arg0: i32) -> (i32, i32) {
    %c0_i32 = arith.constant 0 : i32
    %c0_i32_0 = arith.constant 0 : i32
    %c0_i32_1 = arith.constant 0 : i32
    return %c0_i32, %c0_i32_0 : i32, i32
  }
  func.func @transform_9(%arg0: i32) -> (i32, i32) {
    %c0_i32 = arith.constant 0 : i32
    %c0_i32_0 = arith.constant 0 : i32
    %c0_i32_1 = arith.constant 0 : i32
    return %c0_i32, %c0_i32_0 : i32, i32
  }
  func.func @transform_10(%arg0: i32) -> (i32, i32) {
    %c0_i32 = arith.constant 0 : i32
    %c0_i32_0 = arith.constant 0 : i32
    %c0_i32_1 = arith.constant 0 : i32
    return %c0_i32, %c0_i32_0 : i32, i32
  }
  func.func @transform_11(%arg0: i32) -> (i32, i32) {
    %c0_i32 = arith.constant 0 : i32
    %c0_i32_0 = arith.constant 0 : i32
    return %arg0, %c0_i32 : i32, i32
  }
}

</mosaic_0001>

<llo_original>
// kernel: mul.8
$region0: #{mul.8}
  #allocation0 [shape = 's32[1]{0}', space=sflag, size = 0x4, scoped, tag = 'scoped memory for mul.8']
  %s0 = inlined_call_operand.vmem [shape: f32[256], index: 0, kind: input, shape index: {}]
  %s1 = inlined_call_operand.vmem [shape: f32[256], index: 1, kind: input, shape index: {}]
  %s2 = inlined_call_operand.vmem [shape: f32[256], index: 2, kind: output, shape index: {}]
  %v3 = vld [vmem:[%s0] sm:$0x3]
  %v4 = vld [vmem:[%s1] sm:$0x3]
  %5 = xla_tuple %v3, %v4
  %6 = xla_tuple %5
  %v7 = vmul.f32 %v3, %v4
  %8 = xla_tuple %v7
  %9 = vst [vmem:[%s2] sm:$0x3] %v7

// kernel: indirect_light_forward.1
$region0: #{indirect_light_forward.1}
  #allocation0 [shape = 'u32[]', space=smem, size = 0x4, offset = 0x4, fixed_abs, tag = 'smem constant byte address 0x4 - core index']
  #allocation1 [shape = 'u32[144,128]{1,0:T(1,128)}', space=vmem, size = 0x12000, scoped, tag = 'internal scratch']
  %s0 = inlined_call_operand.vmem [shape: bf16[16,64], index: 0, kind: input, shape index: {}]
  %s1 = inlined_call_operand.vmem [shape: bf16[64,512], index: 1, kind: input, shape index: {}]
  %s2 = inlined_call_operand.vmem [shape: f32[1,512], index: 2, kind: input, shape index: {}]
  %s3 = inlined_call_operand.vmem [shape: bf16[512,512], index: 3, kind: input, shape index: {}]
  %s4 = inlined_call_operand.vmem [shape: f32[1,512], index: 4, kind: input, shape index: {}]
  %s5 = inlined_call_operand.vmem [shape: bf16[512,512], index: 5, kind: input, shape index: {}]
  %s6 = inlined_call_operand.vmem [shape: f32[1,512], index: 6, kind: input, shape index: {}]
  %s7 = inlined_call_operand.vmem [shape: bf16[512,512], index: 7, kind: input, shape index: {}]
  %s8 = inlined_call_operand.vmem [shape: f32[1,512], index: 8, kind: input, shape index: {}]
  %s9 = inlined_call_operand.vmem [shape: bf16[512,256], index: 9, kind: input, shape index: {}]
  %s10 = inlined_call_operand.vmem [shape: f32[1,256], index: 10, kind: input, shape index: {}]
  %s11 = inlined_call_operand.vmem [shape: f32[16,256], index: 11, kind: output, shape index: {}]
  %s12 = sld [smem:[#allocation0]]
  $region54: #{indirect_light_forward.1} parent=0
    _
  %s14 = ssub.s32 1, %s12
  %s15 = scalar_select 0, %s14, %s12
  // Predicated region
  $region2: #{indirect_light_forward.1} parent=0 // pred_check
    _
  $region3: #{indirect_light_forward.1} parent=0 // pred_check_branch
    %17 = sbr.rel (0) target = $region5
  $region4: #{indirect_light_forward.1} parent=0 // pred_region
    _
  $region5: #{indirect_light_forward.1} parent=0 // pred_fallthru
    _
  // Predicated region
  $region6: #{indirect_light_forward.1} parent=0 // pred_check
    _
  $region7: #{indirect_light_forward.1} parent=0 // pred_check_branch
    %19 = sbr.rel (0) target = $region9
  $region8: #{indirect_light_forward.1} parent=0 // pred_region
    _
  $region9: #{indirect_light_forward.1} parent=0 // pred_fallthru
    _
  // Predicated region
  $region10: #{indirect_light_forward.1} parent=0 // pred_check
    _
  $region11: #{indirect_light_forward.1} parent=0 // pred_check_branch
    %21 = sbr.rel (0) target = $region13
  $region12: #{indirect_light_forward.1} parent=0 // pred_region
    _
  $region13: #{indirect_light_forward.1} parent=0 // pred_fallthru
    _
  // Predicated region
  $region14: #{indirect_light_forward.1} parent=0 // pred_check
    _
  $region15: #{indirect_light_forward.1} parent=0 // pred_check_branch
    %23 = sbr.rel (0) target = $region17
  $region16: #{indirect_light_forward.1} parent=0 // pred_region
    _
  $region17: #{indirect_light_forward.1} parent=0 // pred_fallthru
    _
  // Predicated region
  $region18: #{indirect_light_forward.1} parent=0 // pred_check
    _
  $region19: #{indirect_light_forward.1} parent=0 // pred_check_branch
    %25 = sbr.rel (0) target = $region21
  $region20: #{indirect_light_forward.1} parent=0 // pred_region
    _
  $region21: #{indirect_light_forward.1} parent=0 // pred_fallthru
    _
  // Predicated region
  $region22: #{indirect_light_forward.1} parent=0 // pred_check
    _
  $region23: #{indirect_light_forward.1} parent=0 // pred_check_branch
    %27 = sbr.rel (0) target = $region25
  $region24: #{indirect_light_forward.1} parent=0 // pred_region
    _
  $region25: #{indirect_light_forward.1} parent=0 // pred_fallthru
    _
  // Predicated region
  $region26: #{indirect_light_forward.1} parent=0 // pred_check
    _
  $region27: #{indirect_light_forward.1} parent=0 // pred_check_branch
    %29 = sbr.rel (0) target = $region29
  $region28: #{indirect_light_forward.1} parent=0 // pred_region
    _
  $region29: #{indirect_light_forward.1} parent=0 // pred_fallthru
    _
  // Predicated region
  $region30: #{indirect_light_forward.1} parent=0 // pred_check
    _
  $region31: #{indirect_light_forward.1} parent=0 // pred_check_branch
    %31 = sbr.rel (0) target = $region33
  $region32: #{indirect_light_forward.1} parent=0 // pred_region
    _
  $region33: #{indirect_light_forward.1} parent=0 // pred_fallthru
    _
  // Predicated region
  $region34: #{indirect_light_forward.1} parent=0 // pred_check
    _
  $region35: #{indirect_light_forward.1} parent=0 // pred_check_branch
    %33 = sbr.rel (0) target = $region37
  $region36: #{indirect_light_forward.1} parent=0 // pred_region
    _
  $region37: #{indirect_light_forward.1} parent=0 // pred_fallthru
    _
  // Predicated region
  $region38: #{indirect_light_forward.1} parent=0 // pred_check
    _
  $region39: #{indirect_light_forward.1} parent=0 // pred_check_branch
    %35 = sbr.rel (0) target = $region41
  $region40: #{indirect_light_forward.1} parent=0 // pred_region
    _
  $region41: #{indirect_light_forward.1} parent=0 // pred_fallthru
    _
  // Predicated region
  $region42: #{indirect_light_forward.1} parent=0 // pred_check
    _
  $region43: #{indirect_light_forward.1} parent=0 // pred_check_branch
    %37 = sbr.rel (0) target = $region45
  $region44: #{indirect_light_forward.1} parent=0 // pred_region
    _
  $region45: #{indirect_light_forward.1} parent=0 // pred_fallthru
    _
  %v39 = vld [vmem:[%s0] sm:$0xf]
  %v40 = vld [vmem:[%s0 + $0x4] sm:$0xf]
  %v41 = vld [vmem:[%s1] sm:$0xff]
  %v42 = vld [vmem:[%s1 + $0x8] sm:$0xff]
  %v43 = vld [vmem:[%s1 + $0x10] sm:$0xff]
  %v44 = vld [vmem:[%s1 + $0x18] sm:$0xff]
  %v45 = vld [vmem:[%s1 + $0x20] sm:$0xff]
  %v46 = vld [vmem:[%s1 + $0x28] sm:$0xff]
  %v47 = vld [vmem:[%s1 + $0x30] sm:$0xff]
  %v48 = vld [vmem:[%s1 + $0x38] sm:$0xff]
  %v49 = vld [vmem:[%s1 + $0x40] sm:$0xff]
  %v50 = vld [vmem:[%s1 + $0x48] sm:$0xff]
  %v51 = vld [vmem:[%s1 + $0x50] sm:$0xff]
  %v52 = vld [vmem:[%s1 + $0x58] sm:$0xff]
  %v53 = vld [vmem:[%s1 + $0x60] sm:$0xff]
  %v54 = vld [vmem:[%s1 + $0x68] sm:$0xff]
  %v55 = vld [vmem:[%s1 + $0x70] sm:$0xff]
  %v56 = vld [vmem:[%s1 + $0x78] sm:$0xff]
  %v57 = vld [vmem:[%s2] sm:$0xf]
  %v59 = vlaneseq
  %v60 = vshrl.u32 %v59, 7
  %v61 = vsub.s32 0, %v60
  %v62 = vrot.slane %v57, %v61
  %v63 = vlaneseq
  %v64 = vshrl.u32 %v63, 7
  %v65 = vsub.s32 1, %v64
  %v66 = vrot.slane %v57, %v65
  %v67 = vlaneseq
  %v68 = vshrl.u32 %v67, 7
  %v69 = vsub.s32 2, %v68
  %v70 = vrot.slane %v57, %v69
  %v71 = vlaneseq
  %v72 = vshrl.u32 %v71, 7
  %v73 = vsub.s32 3, %v72
  %v74 = vrot.slane %v57, %v73
  %v81 = vunpack.c.l.b16 %v39
  %v82 = vunpack.c.l.b16 %v40
  %v83 = vpack.c.b16 %v82, %v81
  %v100 = vunpack.c.l.b16 %v41
  %v101 = vunpack.c.h.b16 %v41
  %v102 = vunpack.c.l.b16 %v42
  %v103 = vunpack.c.h.b16 %v42
  %v104 = vunpack.c.l.b16 %v43
  %v105 = vunpack.c.h.b16 %v43
  %v106 = vunpack.c.l.b16 %v44
  %v107 = vunpack.c.h.b16 %v44
  %v108 = vunpack.c.l.b16 %v45
  %v109 = vunpack.c.h.b16 %v45
  %v110 = vunpack.c.l.b16 %v46
  %v111 = vunpack.c.h.b16 %v46
  %v112 = vunpack.c.l.b16 %v47
  %v113 = vunpack.c.h.b16 %v47
  %v114 = vunpack.c.l.b16 %v48
  %v115 = vunpack.c.h.b16 %v48
  %v116 = vunpack.c.l.b16 %v49
  %v117 = vunpack.c.h.b16 %v49
  %v118 = vunpack.c.l.b16 %v50
  %v119 = vunpack.c.h.b16 %v50
  %v120 = vunpack.c.l.b16 %v51
  %v121 = vunpack.c.h.b16 %v51
  %v122 = vunpack.c.l.b16 %v52
  %v123 = vunpack.c.h.b16 %v52
  %v124 = vunpack.c.l.b16 %v53
  %v125 = vunpack.c.h.b16 %v53
  %v126 = vunpack.c.l.b16 %v54
  %v127 = vunpack.c.h.b16 %v54
  %v128 = vunpack.c.l.b16 %v55
  %v129 = vunpack.c.h.b16 %v55
  %v130 = vunpack.c.l.b16 %v56
  %v131 = vunpack.c.h.b16 %v56
  %v132 = vpack.c.b16 %v104, %v100
  %v133 = vpack.c.b16 %v105, %v101
  %v134 = vpack.c.b16 %v106, %v102
  %v135 = vpack.c.b16 %v107, %v103
  %v136 = vpack.c.b16 %v112, %v108
  %v137 = vpack.c.b16 %v113, %v109
  %v138 = vpack.c.b16 %v114, %v110
  %v139 = vpack.c.b16 %v115, %v111
  %v140 = vpack.c.b16 %v120, %v116
  %v141 = vpack.c.b16 %v121, %v117
  %v142 = vpack.c.b16 %v122, %v118
  %v143 = vpack.c.b16 %v123, %v119
  %v144 = vpack.c.b16 %v128, %v124
  %v145 = vpack.c.b16 %v129, %v125
  %v146 = vpack.c.b16 %v130, %v126
  %v147 = vpack.c.b16 %v131, %v127
  %vm164 = vcmask 523264
  %v166 = vsel %vm164, %v83, 0
  %168 = vmatprep.subr.bf16.mxu0 %v133
  %169 = vmatpush1.bf16.msra.mxu0 %v132
  %170 = vmatprep.subr.bf16.mxu0 %v137
  %171 = vmatpush1.bf16.msra.mxu0 %v136
  %172 = vmatprep.subr.bf16.mxu0 %v141
  %173 = vmatpush1.bf16.msra.mxu0 %v140
  %174 = vmatprep.subr.bf16.mxu0 %v145
  %175 = vmatpush1.bf16.msra.mxu0 %v144
  %176 = vmatprep.subr.bf16.mxu0 0
  %177 = vmatpush1.bf16.msra.mxu0 0
  %178 = vmatprep.subr.bf16.mxu0 0
  %179 = vmatpush1.bf16.msra.mxu0 0
  %180 = vmatprep.subr.bf16.mxu0 0
  %181 = vmatpush1.bf16.msra.mxu0 0
  %182 = vmatprep.subr.bf16.mxu0 0
  %183 = vmatpush1.bf16.msra.mxu0 0
  %184 = vmatprep.subr.bf16.mxu0 0
  %185 = vmatpush1.bf16.msra.mxu0 0
  %186 = vmatprep.subr.bf16.mxu0 0
  %187 = vmatpush1.bf16.msra.mxu0 0
  %188 = vmatprep.subr.bf16.mxu0 0
  %189 = vmatpush1.bf16.msra.mxu0 0
  %190 = vmatprep.subr.bf16.mxu0 0
  %191 = vmatpush1.bf16.msra.mxu0 0
  %192 = vmatprep.subr.bf16.mxu0 0
  %193 = vmatpush1.bf16.msra.mxu0 0
  %194 = vmatprep.subr.bf16.mxu0 0
  %195 = vmatpush1.bf16.msra.mxu0 0
  %196 = vmatprep.subr.bf16.mxu0 0
  %197 = vmatpush1.bf16.msra.mxu0 0
  %198 = vmatprep.subr.bf16.mxu0 0
  %199 = vmatpush1.bf16.msra.mxu0 0
  %200 = vmatprep.mubr.bf16.mxu0 0
  %201 = vmatmul.mubr.bf16.gmra.mrb[0].mxu0 %v166
  %v202 = vpop.f32.mrb[0].mxu0
  %v203 = vadd.f32 %v62, %v202
  %v204 = vpop.f32.mrb[0].mxu0
  %v205 = vadd.f32 %v66, %v204
  %v206 = vpop.f32.mrb[0].mxu0
  %v207 = vadd.f32 %v62, %v206
  %v208 = vpop.f32.mrb[0].mxu0
  %v209 = vadd.f32 %v66, %v208
  %210 = vdwg.mxu0
  %211 = vmatprep.subr.bf16.mxu0 %v135
  %212 = vmatpush1.bf16.msra.mxu0 %v134
  %213 = vmatprep.subr.bf16.mxu0 %v139
  %214 = vmatpush1.bf16.msra.mxu0 %v138
  %215 = vmatprep.subr.bf16.mxu0 %v143
  %216 = vmatpush1.bf16.msra.mxu0 %v142
  %217 = vmatprep.subr.bf16.mxu0 %v147
  %218 = vmatpush1.bf16.msra.mxu0 %v146
  %219 = vmatprep.subr.bf16.mxu0 0
  %220 = vmatpush1.bf16.msra.mxu0 0
  %221 = vmatprep.subr.bf16.mxu0 0
  %222 = vmatpush1.bf16.msra.mxu0 0
  %223 = vmatprep.subr.bf16.mxu0 0
  %224 = vmatpush1.bf16.msra.mxu0 0
  %225 = vmatprep.subr.bf16.mxu0 0
  %226 = vmatpush1.bf16.msra.mxu0 0
  %227 = vmatprep.subr.bf16.mxu0 0
  %228 = vmatpush1.bf16.msra.mxu0 0
  %229 = vmatprep.subr.bf16.mxu0 0
  %230 = vmatpush1.bf16.msra.mxu0 0
  %231 = vmatprep.subr.bf16.mxu0 0
  %232 = vmatpush1.bf16.msra.mxu0 0
  %233 = vmatprep.subr.bf16.mxu0 0
  %234 = vmatpush1.bf16.msra.mxu0 0
  %235 = vmatprep.subr.bf16.mxu0 0
  %236 = vmatpush1.bf16.msra.mxu0 0
  %237 = vmatprep.subr.bf16.mxu0 0
  %238 = vmatpush1.bf16.msra.mxu0 0
  %239 = vmatprep.subr.bf16.mxu0 0
  %240 = vmatpush1.bf16.msra.mxu0 0
  %241 = vmatprep.subr.bf16.mxu0 0
  %242 = vmatpush1.bf16.msra.mxu0 0
  %243 = vmatprep.mubr.bf16.mxu0 0
  %244 = vmatmul.mubr.bf16.gmra.mrb[0].mxu0 %v166
  %v245 = vpop.f32.mrb[0].mxu0
  %v246 = vadd.f32 %v70, %v245
  %v247 = vpop.f32.mrb[0].mxu0
  %v248 = vadd.f32 %v74, %v247
  %v249 = vpop.f32.mrb[0].mxu0
  %v250 = vadd.f32 %v70, %v249
  %v251 = vpop.f32.mrb[0].mxu0
  %v252 = vadd.f32 %v74, %v251
  %253 = vdwg.mxu0
  %v254 = vmax.f32 %v203, 0.0
  %v255 = vmax.f32 %v205, 0.0
  %v256 = vmax.f32 %v246, 0.0
  %v257 = vmax.f32 %v248, 0.0
  %v258 = vmax.f32 %v207, 0.0
  %v259 = vmax.f32 %v209, 0.0
  %v260 = vmax.f32 %v250, 0.0
  %v261 = vmax.f32 %v252, 0.0
  %v262 = vpack.c.bf16 %v258, %v254
  %v263 = vpack.c.bf16 %v259, %v255
  %v264 = vpack.c.bf16 %v260, %v256
  %v265 = vpack.c.bf16 %v261, %v257
  %v266 = vld [vmem:[%s3] sm:$0xff]
  %v267 = vld [vmem:[%s3 + $0x8] sm:$0xff]
  %v268 = vld [vmem:[%s3 + $0x10] sm:$0xff]
  %v269 = vld [vmem:[%s3 + $0x18] sm:$0xff]
  %v270 = vld [vmem:[%s3 + $0x20] sm:$0xff]
  %v271 = vld [vmem:[%s3 + $0x28] sm:$0xff]
  %v272 = vld [vmem:[%s3 + $0x30] sm:$0xff]
  %v273 = vld [vmem:[%s3 + $0x38] sm:$0xff]
  %v274 = vld [vmem:[%s3 + $0x40] sm:$0xff]
  %v275 = vld [vmem:[%s3 + $0x48] sm:$0xff]
  %v276 = vld [vmem:[%s3 + $0x50] sm:$0xff]
  %v277 = vld [vmem:[%s3 + $0x58] sm:$0xff]
  %v278 = vld [vmem:[%s3 + $0x60] sm:$0xff]
  %v279 = vld [vmem:[%s3 + $0x68] sm:$0xff]
  %v280 = vld [vmem:[%s3 + $0x70] sm:$0xff]
  %v281 = vld [vmem:[%s3 + $0x78] sm:$0xff]
  %v282 = vld [vmem:[%s3 + $0x80] sm:$0xff]
  %v283 = vld [vmem:[%s3 + $0x88] sm:$0xff]
  %v284 = vld [vmem:[%s3 + $0x90] sm:$0xff]
  %v285 = vld [vmem:[%s3 + $0x98] sm:$0xff]
  %v286 = vld [vmem:[%s3 + $0xa0] sm:$0xff]
  %v287 = vld [vmem:[%s3 + $0xa8] sm:$0xff]
  %v288 = vld [vmem:[%s3 + $0xb0] sm:$0xff]
  %v289 = vld [vmem:[%s3 + $0xb8] sm:$0xff]
  %v290 = vld [vmem:[%s3 + $0xc0] sm:$0xff]
  %v291 = vld [vmem:[%s3 + $0xc8] sm:$0xff]
  %v292 = vld [vmem:[%s3 + $0xd0] sm:$0xff]
  %v293 = vld [vmem:[%s3 + $0xd8] sm:$0xff]
  %v294 = vld [vmem:[%s3 + $0xe0] sm:$0xff]
  %v295 = vld [vmem:[%s3 + $0xe8] sm:$0xff]
  %v296 = vld [vmem:[%s3 + $0xf0] sm:$0xff]
  %v297 = vld [vmem:[%s3 + $0xf8] sm:$0xff]
  %v298 = vld [vmem:[%s3 + $0x100] sm:$0xff]
  %v299 = vld [vmem:[%s3 + $0x108] sm:$0xff]
  %v300 = vld [vmem:[%s3 + $0x110] sm:$0xff]
  %v301 = vld [vmem:[%s3 + $0x118] sm:$0xff]
  %v302 = vld [vmem:[%s3 + $0x120] sm:$0xff]
  %v303 = vld [vmem:[%s3 + $0x128] sm:$0xff]
  %v304 = vld [vmem:[%s3 + $0x130] sm:$0xff]
  %v305 = vld [vmem:[%s3 + $0x138] sm:$0xff]
  %v306 = vld [vmem:[%s3 + $0x140] sm:$0xff]
  %v307 = vld [vmem:[%s3 + $0x148] sm:$0xff]
  %v308 = vld [vmem:[%s3 + $0x150] sm:$0xff]
  %v309 = vld [vmem:[%s3 + $0x158] sm:$0xff]
  %v310 = vld [vmem:[%s3 + $0x160] sm:$0xff]
  %v311 = vld [vmem:[%s3 + $0x168] sm:$0xff]
  %v312 = vld [vmem:[%s3 + $0x170] sm:$0xff]
  %v313 = vld [vmem:[%s3 + $0x178] sm:$0xff]
  %v314 = vld [vmem:[%s3 + $0x180] sm:$0xff]
  %v315 = vld [vmem:[%s3 + $0x188] sm:$0xff]
  %v316 = vld [vmem:[%s3 + $0x190] sm:$0xff]
  %v317 = vld [vmem:[%s3 + $0x198] sm:$0xff]
  %v318 = vld [vmem:[%s3 + $0x1a0] sm:$0xff]
  %v319 = vld [vmem:[%s3 + $0x1a8] sm:$0xff]
  %v320 = vld [vmem:[%s3 + $0x1b0] sm:$0xff]
  %v321 = vld [vmem:[%s3 + $0x1b8] sm:$0xff]
  %v322 = vld [vmem:[%s3 + $0x1c0] sm:$0xff]
  %v323 = vld [vmem:[%s3 + $0x1c8] sm:$0xff]
  %v324 = vld [vmem:[%s3 + $0x1d0] sm:$0xff]
  %v325 = vld [vmem:[%s3 + $0x1d8] sm:$0xff]
  %v326 = vld [vmem:[%s3 + $0x1e0] sm:$0xff]
  %v327 = vld [vmem:[%s3 + $0x1e8] sm:$0xff]
  %v328 = vld [vmem:[%s3 + $0x1f0] sm:$0xff]
  %v329 = vld [vmem:[%s3 + $0x1f8] sm:$0xff]
  %v330 = vld [vmem:[%s3 + $0x200] sm:$0xff]
  %v331 = vld [vmem:[%s3 + $0x208] sm:$0xff]
  %v332 = vld [vmem:[%s3 + $0x210] sm:$0xff]
  %v333 = vld [vmem:[%s3 + $0x218] sm:$0xff]
  %v334 = vld [vmem:[%s3 + $0x220] sm:$0xff]
  %v335 = vld [vmem:[%s3 + $0x228] sm:$0xff]
  %v336 = vld [vmem:[%s3 + $0x230] sm:$0xff]
  %v337 = vld [vmem:[%s3 + $0x238] sm:$0xff]
  %v338 = vld [vmem:[%s3 + $0x240] sm:$0xff]
  %v339 = vld [vmem:[%s3 + $0x248] sm:$0xff]
  %v340 = vld [vmem:[%s3 + $0x250] sm:$0xff]
  %v341 = vld [vmem:[%s3 + $0x258] sm:$0xff]
  %v342 = vld [vmem:[%s3 + $0x260] sm:$0xff]
  %v343 = vld [vmem:[%s3 + $0x268] sm:$0xff]
  %v344 = vld [vmem:[%s3 + $0x270] sm:$0xff]
  %v345 = vld [vmem:[%s3 + $0x278] sm:$0xff]
  %v346 = vld [vmem:[%s3 + $0x280] sm:$0xff]
  %v347 = vld [vmem:[%s3 + $0x288] sm:$0xff]
  %v348 = vld [vmem:[%s3 + $0x290] sm:$0xff]
  %v349 = vld [vmem:[%s3 + $0x298] sm:$0xff]
  %v350 = vld [vmem:[%s3 + $0x2a0] sm:$0xff]
  %v351 = vld [vmem:[%s3 + $0x2a8] sm:$0xff]
  %v352 = vld [vmem:[%s3 + $0x2b0] sm:$0xff]
  %v353 = vld [vmem:[%s3 + $0x2b8] sm:$0xff]
  %v354 = vld [vmem:[%s3 + $0x2c0] sm:$0xff]
  %v355 = vld [vmem:[%s3 + $0x2c8] sm:$0xff]
  %v356 = vld [vmem:[%s3 + $0x2d0] sm:$0xff]
  %v357 = vld [vmem:[%s3 + $0x2d8] sm:$0xff]
  %v358 = vld [vmem:[%s3 + $0x2e0] sm:$0xff]
  %v359 = vld [vmem:[%s3 + $0x2e8] sm:$0xff]
  %v360 = vld [vmem:[%s3 + $0x2f0] sm:$0xff]
  %v361 = vld [vmem:[%s3 + $0x2f8] sm:$0xff]
  %v362 = vld [vmem:[%s3 + $0x300] sm:$0xff]
  %v363 = vld [vmem:[%s3 + $0x308] sm:$0xff]
  %v364 = vld [vmem:[%s3 + $0x310] sm:$0xff]
  %v365 = vld [vmem:[%s3 + $0x318] sm:$0xff]
  %v366 = vld [vmem:[%s3 + $0x320] sm:$0xff]
  %v367 = vld [vmem:[%s3 + $0x328] sm:$0xff]
  %v368 = vld [vmem:[%s3 + $0x330] sm:$0xff]
  %v369 = vld [vmem:[%s3 + $0x338] sm:$0xff]
  %v370 = vld [vmem:[%s3 + $0x340] sm:$0xff]
  %v371 = vld [vmem:[%s3 + $0x348] sm:$0xff]
  %v372 = vld [vmem:[%s3 + $0x350] sm:$0xff]
  %v373 = vld [vmem:[%s3 + $0x358] sm:$0xff]
  %v374 = vld [vmem:[%s3 + $0x360] sm:$0xff]
  %v375 = vld [vmem:[%s3 + $0x368] sm:$0xff]
  %v376 = vld [vmem:[%s3 + $0x370] sm:$0xff]
  %v377 = vld [vmem:[%s3 + $0x378] sm:$0xff]
  %v378 = vld [vmem:[%s3 + $0x380] sm:$0xff]
  %v379 = vld [vmem:[%s3 + $0x388] sm:$0xff]
  %v380 = vld [vmem:[%s3 + $0x390] sm:$0xff]
  %v381 = vld [vmem:[%s3 + $0x398] sm:$0xff]
  %v382 = vld [vmem:[%s3 + $0x3a0] sm:$0xff]
  %v383 = vld [vmem:[%s3 + $0x3a8] sm:$0xff]
  %v384 = vld [vmem:[%s3 + $0x3b0] sm:$0xff]
  %v385 = vld [vmem:[%s3 + $0x3b8] sm:$0xff]
  %v386 = vld [vmem:[%s3 + $0x3c0] sm:$0xff]
  %v387 = vld [vmem:[%s3 + $0x3c8] sm:$0xff]
  %v388 = vld [vmem:[%s3 + $0x3d0] sm:$0xff]
  %v389 = vld [vmem:[%s3 + $0x3d8] sm:$0xff]
  %v390 = vld [vmem:[%s3 + $0x3e0] sm:$0xff]
  %v391 = vld [vmem:[%s3 + $0x3e8] sm:$0xff]
  %v392 = vld [vmem:[%s3 + $0x3f0] sm:$0xff]
  %v393 = vld [vmem:[%s3 + $0x3f8] sm:$0xff]
  %v394 = vld [vmem:[%s4] sm:$0xf]
  %v396 = vlaneseq
  %v397 = vshrl.u32 %v396, 7
  %v398 = vsub.s32 0, %v397
  %v399 = vrot.slane %v394, %v398
  %v400 = vlaneseq
  %v401 = vshrl.u32 %v400, 7
  %v402 = vsub.s32 1, %v401
  %v403 = vrot.slane %v394, %v402
  %v404 = vlaneseq
  %v405 = vshrl.u32 %v404, 7
  %v406 = vsub.s32 2, %v405
  %v407 = vrot.slane %v394, %v406
  %v408 = vlaneseq
  %v409 = vshrl.u32 %v408, 7
  %v410 = vsub.s32 3, %v409
  %v411 = vrot.slane %v394, %v410
  %v544 = vunpack.c.l.b16 %v266
  %v545 = vunpack.c.h.b16 %v266
  %v546 = vunpack.c.l.b16 %v267
  %v547 = vunpack.c.h.b16 %v267
  %v548 = vunpack.c.l.b16 %v268
  %v549 = vunpack.c.h.b16 %v268
  %v550 = vunpack.c.l.b16 %v269
  %v551 = vunpack.c.h.b16 %v269
  %v552 = vunpack.c.l.b16 %v270
  %v553 = vunpack.c.h.b16 %v270
  %v554 = vunpack.c.l.b16 %v271
  %v555 = vunpack.c.h.b16 %v271
  %v556 = vunpack.c.l.b16 %v272
  %v557 = vunpack.c.h.b16 %v272
  %v558 = vunpack.c.l.b16 %v273
  %v559 = vunpack.c.h.b16 %v273
  %v560 = vunpack.c.l.b16 %v274
  %v561 = vunpack.c.h.b16 %v274
  %v562 = vunpack.c.l.b16 %v275
  %v563 = vunpack.c.h.b16 %v275
  %v564 = vunpack.c.l.b16 %v276
  %v565 = vunpack.c.h.b16 %v276
  %v566 = vunpack.c.l.b16 %v277
  %v567 = vunpack.c.h.b16 %v277
  %v568 = vunpack.c.l.b16 %v278
  %v569 = vunpack.c.h.b16 %v278
  %v570 = vunpack.c.l.b16 %v279
  %v571 = vunpack.c.h.b16 %v279
  %v572 = vunpack.c.l.b16 %v280
  %v573 = vunpack.c.h.b16 %v280
  %v574 = vunpack.c.l.b16 %v281
  %v575 = vunpack.c.h.b16 %v281
  %v576 = vunpack.c.l.b16 %v282
  %v577 = vunpack.c.h.b16 %v282
  %v578 = vunpack.c.l.b16 %v283
  %v579 = vunpack.c.h.b16 %v283
  %v580 = vunpack.c.l.b16 %v284
  %v581 = vunpack.c.h.b16 %v284
  %v582 = vunpack.c.l.b16 %v285
  %v583 = vunpack.c.h.b16 %v285
  %v584 = vunpack.c.l.b16 %v286
  %v585 = vunpack.c.h.b16 %v286
  %v586 = vunpack.c.l.b16 %v287
  %v587 = vunpack.c.h.b16 %v287
  %v588 = vunpack.c.l.b16 %v288
  %v589 = vunpack.c.h.b16 %v288
  %v590 = vunpack.c.l.b16 %v289
  %v591 = vunpack.c.h.b16 %v289
  %v592 = vunpack.c.l.b16 %v290
  %v593 = vunpack.c.h.b16 %v290
  %v594 = vunpack.c.l.b16 %v291
  %v595 = vunpack.c.h.b16 %v291
  %v596 = vunpack.c.l.b16 %v292
  %v597 = vunpack.c.h.b16 %v292
  %v598 = vunpack.c.l.b16 %v293
  %v599 = vunpack.c.h.b16 %v293
  %v600 = vunpack.c.l.b16 %v294
  %v601 = vunpack.c.h.b16 %v294
  %v602 = vunpack.c.l.b16 %v295
  %v603 = vunpack.c.h.b16 %v295
  %v604 = vunpack.c.l.b16 %v296
  %v605 = vunpack.c.h.b16 %v296
  %v606 = vunpack.c.l.b16 %v297
  %v607 = vunpack.c.h.b16 %v297
  %v608 = vunpack.c.l.b16 %v298
  %v609 = vunpack.c.h.b16 %v298
  %v610 = vunpack.c.l.b16 %v299
  %v611 = vunpack.c.h.b16 %v299
  %v612 = vunpack.c.l.b16 %v300
  %v613 = vunpack.c.h.b16 %v300
  %v614 = vunpack.c.l.b16 %v301
  %v615 = vunpack.c.h.b16 %v301
  %v616 = vunpack.c.l.b16 %v302
  %v617 = vunpack.c.h.b16 %v302
  %v618 = vunpack.c.l.b16 %v303
  %v619 = vunpack.c.h.b16 %v303
  %v620 = vunpack.c.l.b16 %v304
  %v621 = vunpack.c.h.b16 %v304
  %v622 = vunpack.c.l.b16 %v305
  %v623 = vunpack.c.h.b16 %v305
  %v624 = vunpack.c.l.b16 %v306
  %v625 = vunpack.c.h.b16 %v306
  %v626 = vunpack.c.l.b16 %v307
  %v627 = vunpack.c.h.b16 %v307
  %v628 = vunpack.c.l.b16 %v308
  %v629 = vunpack.c.h.b16 %v308
  %v630 = vunpack.c.l.b16 %v309
  %v631 = vunpack.c.h.b16 %v309
  %v632 = vunpack.c.l.b16 %v310
  %v633 = vunpack.c.h.b16 %v310
  %v634 = vunpack.c.l.b16 %v311
  %v635 = vunpack.c.h.b16 %v311
  %v636 = vunpack.c.l.b16 %v312
  %v637 = vunpack.c.h.b16 %v312
  %v638 = vunpack.c.l.b16 %v313
  %v639 = vunpack.c.h.b16 %v313
  %v640 = vunpack.c.l.b16 %v314
  %v641 = vunpack.c.h.b16 %v314
  %v642 = vunpack.c.l.b16 %v315
  %v643 = vunpack.c.h.b16 %v315
  %v644 = vunpack.c.l.b16 %v316
  %v645 = vunpack.c.h.b16 %v316
  %v646 = vunpack.c.l.b16 %v317
  %v647 = vunpack.c.h.b16 %v317
  %v648 = vunpack.c.l.b16 %v318
  %v649 = vunpack.c.h.b16 %v318
  %v650 = vunpack.c.l.b16 %v319
  %v651 = vunpack.c.h.b16 %v319
  %v652 = vunpack.c.l.b16 %v320
  %v653 = vunpack.c.h.b16 %v320
  %v654 = vunpack.c.l.b16 %v321
  %v655 = vunpack.c.h.b16 %v321
  %v656 = vunpack.c.l.b16 %v322
  %v657 = vunpack.c.h.b16 %v322
  %v658 = vunpack.c.l.b16 %v323
  %v659 = vunpack.c.h.b16 %v323
  %v660 = vunpack.c.l.b16 %v324
  %v661 = vunpack.c.h.b16 %v324
  %v662 = vunpack.c.l.b16 %v325
  %v663 = vunpack.c.h.b16 %v325
  %v664 = vunpack.c.l.b16 %v326
  %v665 = vunpack.c.h.b16 %v326
  %v666 = vunpack.c.l.b16 %v327
  %v667 = vunpack.c.h.b16 %v327
  %v668 = vunpack.c.l.b16 %v328
  %v669 = vunpack.c.h.b16 %v328
  %v670 = vunpack.c.l.b16 %v329
  %v671 = vunpack.c.h.b16 %v329
  %v672 = vunpack.c.l.b16 %v330
  %v673 = vunpack.c.h.b16 %v330
  %v674 = vunpack.c.l.b16 %v331
  %v675 = vunpack.c.h.b16 %v331
  %v676 = vunpack.c.l.b16 %v332
  %v677 = vunpack.c.h.b16 %v332
  %v678 = vunpack.c.l.b16 %v333
  %v679 = vunpack.c.h.b16 %v333
  %v680 = vunpack.c.l.b16 %v334
  %v681 = vunpack.c.h.b16 %v334
  %v682 = vunpack.c.l.b16 %v335
  %v683 = vunpack.c.h.b16 %v335
  %v684 = vunpack.c.l.b16 %v336
  %v685 = vunpack.c.h.b16 %v336
  %v686 = vunpack.c.l.b16 %v337
  %v687 = vunpack.c.h.b16 %v337
  %v688 = vunpack.c.l.b16 %v338
  %v689 = vunpack.c.h.b16 %v338
  %v690 = vunpack.c.l.b16 %v339
  %v691 = vunpack.c.h.b16 %v339
  %v692 = vunpack.c.l.b16 %v340
  %v693 = vunpack.c.h.b16 %v340
  %v694 = vunpack.c.l.b16 %v341
  %v695 = vunpack.c.h.b16 %v341
  %v696 = vunpack.c.l.b16 %v342
  %v697 = vunpack.c.h.b16 %v342
  %v698 = vunpack.c.l.b16 %v343
  %v699 = vunpack.c.h.b16 %v343
  %v700 = vunpack.c.l.b16 %v344
  %v701 = vunpack.c.h.b16 %v344
  %v702 = vunpack.c.l.b16 %v345
  %v703 = vunpack.c.h.b16 %v345
  %v704 = vunpack.c.l.b16 %v346
  %v705 = vunpack.c.h.b16 %v346
  %v706 = vunpack.c.l.b16 %v347
  %v707 = vunpack.c.h.b16 %v347
  %v708 = vunpack.c.l.b16 %v348
  %v709 = vunpack.c.h.b16 %v348
  %v710 = vunpack.c.l.b16 %v349
  %v711 = vunpack.c.h.b16 %v349
  %v712 = vunpack.c.l.b16 %v350
  %v713 = vunpack.c.h.b16 %v350
  %v714 = vunpack.c.l.b16 %v351
  %v715 = vunpack.c.h.b16 %v351
  %v716 = vunpack.c.l.b16 %v352
  %v717 = vunpack.c.h.b16 %v352
  %v718 = vunpack.c.l.b16 %v353
  %v719 = vunpack.c.h.b16 %v353
  %v720 = vunpack.c.l.b16 %v354
  %v721 = vunpack.c.h.b16 %v354
  %v722 = vunpack.c.l.b16 %v355
  %v723 = vunpack.c.h.b16 %v355
  %v724 = vunpack.c.l.b16 %v356
  %v725 = vunpack.c.h.b16 %v356
  %v726 = vunpack.c.l.b16 %v357
  %v727 = vunpack.c.h.b16 %v357
  %v728 = vunpack.c.l.b16 %v358
  %v729 = vunpack.c.h.b16 %v358
  %v730 = vunpack.c.l.b16 %v359
  %v731 = vunpack.c.h.b16 %v359
  %v732 = vunpack.c.l.b16 %v360
  %v733 = vunpack.c.h.b16 %v360
  %v734 = vunpack.c.l.b16 %v361
  %v735 = vunpack.c.h.b16 %v361
  %v736 = vunpack.c.l.b16 %v362
  %v737 = vunpack.c.h.b16 %v362
  %v738 = vunpack.c.l.b16 %v363
  %v739 = vunpack.c.h.b16 %v363
  %v740 = vunpack.c.l.b16 %v364
  %v741 = vunpack.c.h.b16 %v364
  %v742 = vunpack.c.l.b16 %v365
  %v743 = vunpack.c.h.b16 %v365
  %v744 = vunpack.c.l.b16 %v366
  %v745 = vunpack.c.h.b16 %v366
  %v746 = vunpack.c.l.b16 %v367
  %v747 = vunpack.c.h.b16 %v367
  %v748 = vunpack.c.l.b16 %v368
  %v749 = vunpack.c.h.b16 %v368
  %v750 = vunpack.c.l.b16 %v369
  %v751 = vunpack.c.h.b16 %v369
  %v752 = vunpack.c.l.b16 %v370
  %v753 = vunpack.c.h.b16 %v370
  %v754 = vunpack.c.l.b16 %v371
  %v755 = vunpack.c.h.b16 %v371
  %v756 = vunpack.c.l.b16 %v372
  %v757 = vunpack.c.h.b16 %v372
  %v758 = vunpack.c.l.b16 %v373
  %v759 = vunpack.c.h.b16 %v373
  %v760 = vunpack.c.l.b16 %v374
  %v761 = vunpack.c.h.b16 %v374
  %v762 = vunpack.c.l.b16 %v375
  %v763 = vunpack.c.h.b16 %v375
  %v764 = vunpack.c.l.b16 %v376
  %v765 = vunpack.c.h.b16 %v376
  %v766 = vunpack.c.l.b16 %v377
  %v767 = vunpack.c.h.b16 %v377
  %v768 = vunpack.c.l.b16 %v378
  %v769 = vunpack.c.h.b16 %v378
  %v770 = vunpack.c.l.b16 %v379
  %v771 = vunpack.c.h.b16 %v379
  %v772 = vunpack.c.l.b16 %v380
  %v773 = vunpack.c.h.b16 %v380
  %v774 = vunpack.c.l.b16 %v381
  %v775 = vunpack.c.h.b16 %v381
  %v776 = vunpack.c.l.b16 %v382
  %v777 = vunpack.c.h.b16 %v382
  %v778 = vunpack.c.l.b16 %v383
  %v779 = vunpack.c.h.b16 %v383
  %v780 = vunpack.c.l.b16 %v384
  %v781 = vunpack.c.h.b16 %v384
  %v782 = vunpack.c.l.b16 %v385
  %v783 = vunpack.c.h.b16 %v385
  %v784 = vunpack.c.l.b16 %v386
  %v785 = vunpack.c.h.b16 %v386
  %v786 = vunpack.c.l.b16 %v387
  %v787 = vunpack.c.h.b16 %v387
  %v788 = vunpack.c.l.b16 %v388
  %v789 = vunpack.c.h.b16 %v388
  %v790 = vunpack.c.l.b16 %v389
  %v791 = vunpack.c.h.b16 %v389
  %v792 = vunpack.c.l.b16 %v390
  %v793 = vunpack.c.h.b16 %v390
  %v794 = vunpack.c.l.b16 %v391
  %v795 = vunpack.c.h.b16 %v391
  %v796 = vunpack.c.l.b16 %v392
  %v797 = vunpack.c.h.b16 %v392
  %v798 = vunpack.c.l.b16 %v393
  %v799 = vunpack.c.h.b16 %v393
  %v800 = vpack.c.b16 %v548, %v544
  %v801 = vpack.c.b16 %v549, %v545
  %v802 = vpack.c.b16 %v550, %v546
  %v803 = vpack.c.b16 %v551, %v547
  %v804 = vpack.c.b16 %v556, %v552
  %v805 = vpack.c.b16 %v557, %v553
  %v806 = vpack.c.b16 %v558, %v554
  %v807 = vpack.c.b16 %v559, %v555
  %v808 = vpack.c.b16 %v564, %v560
  %v809 = vpack.c.b16 %v565, %v561
  %v810 = vpack.c.b16 %v566, %v562
  %v811 = vpack.c.b16 %v567, %v563
  %v812 = vpack.c.b16 %v572, %v568
  %v813 = vpack.c.b16 %v573, %v569
  %v814 = vpack.c.b16 %v574, %v570
  %v815 = vpack.c.b16 %v575, %v571
  %v816 = vpack.c.b16 %v580, %v576
  %v817 = vpack.c.b16 %v581, %v577
  %v818 = vpack.c.b16 %v582, %v578
  %v819 = vpack.c.b16 %v583, %v579
  %v820 = vpack.c.b16 %v588, %v584
  %v821 = vpack.c.b16 %v589, %v585
  %v822 = vpack.c.b16 %v590, %v586
  %v823 = vpack.c.b16 %v591, %v587
  %v824 = vpack.c.b16 %v596, %v592
  %v825 = vpack.c.b16 %v597, %v593
  %v826 = vpack.c.b16 %v598, %v594
  %v827 = vpack.c.b16 %v599, %v595
  %v828 = vpack.c.b16 %v604, %v600
  %v829 = vpack.c.b16 %v605, %v601
  %v830 = vpack.c.b16 %v606, %v602
  %v831 = vpack.c.b16 %v607, %v603
  %v832 = vpack.c.b16 %v612, %v608
  %v833 = vpack.c.b16 %v613, %v609
  %v834 = vpack.c.b16 %v614, %v610
  %v835 = vpack.c.b16 %v615, %v611
  %v836 = vpack.c.b16 %v620, %v616
  %v837 = vpack.c.b16 %v621, %v617
  %v838 = vpack.c.b16 %v622, %v618
  %v839 = vpack.c.b16 %v623, %v619
  %v840 = vpack.c.b16 %v628, %v624
  %v841 = vpack.c.b16 %v629, %v625
  %v842 = vpack.c.b16 %v630, %v626
  %v843 = vpack.c.b16 %v631, %v627
  %v844 = vpack.c.b16 %v636, %v632
  %v845 = vpack.c.b16 %v637, %v633
  %v846 = vpack.c.b16 %v638, %v634
  %v847 = vpack.c.b16 %v639, %v635
  %v848 = vpack.c.b16 %v644, %v640
  %v849 = vpack.c.b16 %v645, %v641
  %v850 = vpack.c.b16 %v646, %v642
  %v851 = vpack.c.b16 %v647, %v643
  %v852 = vpack.c.b16 %v652, %v648
  %v853 = vpack.c.b16 %v653, %v649
  %v854 = vpack.c.b16 %v654, %v650
  %v855 = vpack.c.b16 %v655, %v651
  %v856 = vpack.c.b16 %v660, %v656
  %v857 = vpack.c.b16 %v661, %v657
  %v858 = vpack.c.b16 %v662, %v658
  %v859 = vpack.c.b16 %v663, %v659
  %v860 = vpack.c.b16 %v668, %v664
  %v861 = vpack.c.b16 %v669, %v665
  %v862 = vpack.c.b16 %v670, %v666
  %v863 = vpack.c.b16 %v671, %v667
  %v864 = vpack.c.b16 %v676, %v672
  %v865 = vpack.c.b16 %v677, %v673
  %v866 = vpack.c.b16 %v678, %v674
  %v867 = vpack.c.b16 %v679, %v675
  %v868 = vpack.c.b16 %v684, %v680
  %v869 = vpack.c.b16 %v685, %v681
  %v870 = vpack.c.b16 %v686, %v682
  %v871 = vpack.c.b16 %v687, %v683
  %v872 = vpack.c.b16 %v692, %v688
  %v873 = vpack.c.b16 %v693, %v689
  %v874 = vpack.c.b16 %v694, %v690
  %v875 = vpack.c.b16 %v695, %v691
  %v876 = vpack.c.b16 %v700, %v696
  %v877 = vpack.c.b16 %v701, %v697
  %v878 = vpack.c.b16 %v702, %v698
  %v879 = vpack.c.b16 %v703, %v699
  %v880 = vpack.c.b16 %v708, %v704
  %v881 = vpack.c.b16 %v709, %v705
  %v882 = vpack.c.b16 %v710, %v706
  %v883 = vpack.c.b16 %v711, %v707
  %v884 = vpack.c.b16 %v716, %v712
  %v885 = vpack.c.b16 %v717, %v713
  %v886 = vpack.c.b16 %v718, %v714
  %v887 = vpack.c.b16 %v719, %v715
  %v888 = vpack.c.b16 %v724, %v720
  %v889 = vpack.c.b16 %v725, %v721
  %v890 = vpack.c.b16 %v726, %v722
  %v891 = vpack.c.b16 %v727, %v723
  %v892 = vpack.c.b16 %v732, %v728
  %v893 = vpack.c.b16 %v733, %v729
  %v894 = vpack.c.b16 %v734, %v730
  %v895 = vpack.c.b16 %v735, %v731
  %v896 = vpack.c.b16 %v740, %v736
  %v897 = vpack.c.b16 %v741, %v737
  %v898 = vpack.c.b16 %v742, %v738
  %v899 = vpack.c.b16 %v743, %v739
  %v900 = vpack.c.b16 %v748, %v744
  %v901 = vpack.c.b16 %v749, %v745
  %v902 = vpack.c.b16 %v750, %v746
  %v903 = vpack.c.b16 %v751, %v747
  %v904 = vpack.c.b16 %v756, %v752
  %v905 = vpack.c.b16 %v757, %v753
  %v906 = vpack.c.b16 %v758, %v754
  %v907 = vpack.c.b16 %v759, %v755
  %v908 = vpack.c.b16 %v764, %v760
  %v909 = vpack.c.b16 %v765, %v761
  %v910 = vpack.c.b16 %v766, %v762
  %v911 = vpack.c.b16 %v767, %v763
  %v912 = vpack.c.b16 %v772, %v768
  %v913 = vpack.c.b16 %v773, %v769
  %v914 = vpack.c.b16 %v774, %v770
  %v915 = vpack.c.b16 %v775, %v771
  %v916 = vpack.c.b16 %v780, %v776
  %v917 = vpack.c.b16 %v781, %v777
  %v918 = vpack.c.b16 %v782, %v778
  %v919 = vpack.c.b16 %v783, %v779
  %v920 = vpack.c.b16 %v788, %v784
  %v921 = vpack.c.b16 %v789, %v785
  %v922 = vpack.c.b16 %v790, %v786
  %v923 = vpack.c.b16 %v791, %v787
  %v924 = vpack.c.b16 %v796, %v792
  %v925 = vpack.c.b16 %v797, %v793
  %v926 = vpack.c.b16 %v798, %v794
  %v927 = vpack.c.b16 %v799, %v795
  %1056 = vmatprep.subr.bf16.mxu0 %v801
  %1057 = vmatpush1.bf16.msra.mxu0 %v800
  %1058 = vmatprep.subr.bf16.mxu0 %v805
  %1059 = vmatpush1.bf16.msra.mxu0 %v804
  %1060 = vmatprep.subr.bf16.mxu0 %v809
  %1061 = vmatpush1.bf16.msra.mxu0 %v808
  %1062 = vmatprep.subr.bf16.mxu0 %v813
  %1063 = vmatpush1.bf16.msra.mxu0 %v812
  %1064 = vmatprep.subr.bf16.mxu0 %v817
  %1065 = vmatpush1.bf16.msra.mxu0 %v816
  %1066 = vmatprep.subr.bf16.mxu0 %v821
  %1067 = vmatpush1.bf16.msra.mxu0 %v820
  %1068 = vmatprep.subr.bf16.mxu0 %v825
  %1069 = vmatpush1.bf16.msra.mxu0 %v824
  %1070 = vmatprep.subr.bf16.mxu0 %v829
  %1071 = vmatpush1.bf16.msra.mxu0 %v828
  %1072 = vmatprep.subr.bf16.mxu0 %v833
  %1073 = vmatpush1.bf16.msra.mxu0 %v832
  %1074 = vmatprep.subr.bf16.mxu0 %v837
  %1075 = vmatpush1.bf16.msra.mxu0 %v836
  %1076 = vmatprep.subr.bf16.mxu0 %v841
  %1077 = vmatpush1.bf16.msra.mxu0 %v840
  %1078 = vmatprep.subr.bf16.mxu0 %v845
  %1079 = vmatpush1.bf16.msra.mxu0 %v844
  %1080 = vmatprep.subr.bf16.mxu0 %v849
  %1081 = vmatpush1.bf16.msra.mxu0 %v848
  %1082 = vmatprep.subr.bf16.mxu0 %v853
  %1083 = vmatpush1.bf16.msra.mxu0 %v852
  %1084 = vmatprep.subr.bf16.mxu0 %v857
  %1085 = vmatpush1.bf16.msra.mxu0 %v856
  %1086 = vmatprep.subr.bf16.mxu0 %v861
  %1087 = vmatpush1.bf16.msra.mxu0 %v860
  %1088 = vmatprep.mubr.bf16.mxu0 %v263
  %1089 = vmatmul.mubr.bf16.gmra.mrb[0].mxu0 %v262
  %v1090 = vpop.f32.mrb[0].mxu0
  %v1091 = vadd.f32 %v399, %v1090
  %v1092 = vpop.f32.mrb[0].mxu0
  %v1093 = vadd.f32 %v403, %v1092
  %v1094 = vpop.f32.mrb[0].mxu0
  %v1095 = vadd.f32 %v399, %v1094
  %v1096 = vpop.f32.mrb[0].mxu0
  %v1097 = vadd.f32 %v403, %v1096
  %1098 = vdwg.mxu0
  %1099 = vmatprep.subr.bf16.mxu0 %v865
  %1100 = vmatpush1.bf16.msra.mxu0 %v864
  %1101 = vmatprep.subr.bf16.mxu0 %v869
  %1102 = vmatpush1.bf16.msra.mxu0 %v868
  %1103 = vmatprep.subr.bf16.mxu0 %v873
  %1104 = vmatpush1.bf16.msra.mxu0 %v872
  %1105 = vmatprep.subr.bf16.mxu0 %v877
  %1106 = vmatpush1.bf16.msra.mxu0 %v876
  %1107 = vmatprep.subr.bf16.mxu0 %v881
  %1108 = vmatpush1.bf16.msra.mxu0 %v880
  %1109 = vmatprep.subr.bf16.mxu0 %v885
  %1110 = vmatpush1.bf16.msra.mxu0 %v884
  %1111 = vmatprep.subr.bf16.mxu0 %v889
  %1112 = vmatpush1.bf16.msra.mxu0 %v888
  %1113 = vmatprep.subr.bf16.mxu0 %v893
  %1114 = vmatpush1.bf16.msra.mxu0 %v892
  %1115 = vmatprep.subr.bf16.mxu0 %v897
  %1116 = vmatpush1.bf16.msra.mxu0 %v896
  %1117 = vmatprep.subr.bf16.mxu0 %v901
  %1118 = vmatpush1.bf16.msra.mxu0 %v900
  %1119 = vmatprep.subr.bf16.mxu0 %v905
  %1120 = vmatpush1.bf16.msra.mxu0 %v904
  %1121 = vmatprep.subr.bf16.mxu0 %v909
  %1122 = vmatpush1.bf16.msra.mxu0 %v908
  %1123 = vmatprep.subr.bf16.mxu0 %v913
  %1124 = vmatpush1.bf16.msra.mxu0 %v912
  %1125 = vmatprep.subr.bf16.mxu0 %v917
  %1126 = vmatpush1.bf16.msra.mxu0 %v916
  %1127 = vmatprep.subr.bf16.mxu0 %v921
  %1128 = vmatpush1.bf16.msra.mxu0 %v920
  %1129 = vmatprep.subr.bf16.mxu0 %v925
  %1130 = vmatpush1.bf16.msra.mxu0 %v924
  %1131 = vmatprep.mubr.bf16.mxu0 %v265
  %1132 = vmatmul.mubr.bf16.gmra.mrb[0].mxu0 %v264
  %v1133 = vpop.f32.mrb[0].mxu0
  %v1134 = vadd.f32 %v1091, %v1133
  %v1135 = vpop.f32.mrb[0].mxu0
  %v1136 = vadd.f32 %v1093, %v1135
  %v1137 = vpop.f32.mrb[0].mxu0
  %v1138 = vadd.f32 %v1095, %v1137
  %v1139 = vpop.f32.mrb[0].mxu0
  %v1140 = vadd.f32 %v1097, %v1139
  %1141 = vdwg.mxu0
  %1142 = vmatprep.subr.bf16.mxu0 %v803
  %1143 = vmatpush1.bf16.msra.mxu0 %v802
  %1144 = vmatprep.subr.bf16.mxu0 %v807
  %1145 = vmatpush1.bf16.msra.mxu0 %v806
  %1146 = vmatprep.subr.bf16.mxu0 %v811
  %1147 = vmatpush1.bf16.msra.mxu0 %v810
  %1148 = vmatprep.subr.bf16.mxu0 %v815
  %1149 = vmatpush1.bf16.msra.mxu0 %v814
  %1150 = vmatprep.subr.bf16.mxu0 %v819
  %1151 = vmatpush1.bf16.msra.mxu0 %v818
  %1152 = vmatprep.subr.bf16.mxu0 %v823
  %1153 = vmatpush1.bf16.msra.mxu0 %v822
  %1154 = vmatprep.subr.bf16.mxu0 %v827
  %1155 = vmatpush1.bf16.msra.mxu0 %v826
  %1156 = vmatprep.subr.bf16.mxu0 %v831
  %1157 = vmatpush1.bf16.msra.mxu0 %v830
  %1158 = vmatprep.subr.bf16.mxu0 %v835
  %1159 = vmatpush1.bf16.msra.mxu0 %v834
  %1160 = vmatprep.subr.bf16.mxu0 %v839
  %1161 = vmatpush1.bf16.msra.mxu0 %v838
  %1162 = vmatprep.subr.bf16.mxu0 %v843
  %1163 = vmatpush1.bf16.msra.mxu0 %v842
  %1164 = vmatprep.subr.bf16.mxu0 %v847
  %1165 = vmatpush1.bf16.msra.mxu0 %v846
  %1166 = vmatprep.subr.bf16.mxu0 %v851
  %1167 = vmatpush1.bf16.msra.mxu0 %v850
  %1168 = vmatprep.subr.bf16.mxu0 %v855
  %1169 = vmatpush1.bf16.msra.mxu0 %v854
  %1170 = vmatprep.subr.bf16.mxu0 %v859
  %1171 = vmatpush1.bf16.msra.mxu0 %v858
  %1172 = vmatprep.subr.bf16.mxu0 %v863
  %1173 = vmatpush1.bf16.msra.mxu0 %v862
  %1174 = vmatprep.mubr.bf16.mxu0 %v263
  %1175 = vmatmul.mubr.bf16.gmra.mrb[0].mxu0 %v262
  %v1176 = vpop.f32.mrb[0].mxu0
  %v1177 = vadd.f32 %v407, %v1176
  %v1178 = vpop.f32.mrb[0].mxu0
  %v1179 = vadd.f32 %v411, %v1178
  %v1180 = vpop.f32.mrb[0].mxu0
  %v1181 = vadd.f32 %v407, %v1180
  %v1182 = vpop.f32.mrb[0].mxu0
  %v1183 = vadd.f32 %v411, %v1182
  %1184 = vdwg.mxu0
  %1185 = vmatprep.subr.bf16.mxu0 %v867
  %1186 = vmatpush1.bf16.msra.mxu0 %v866
  %1187 = vmatprep.subr.bf16.mxu0 %v871
  %1188 = vmatpush1.bf16.msra.mxu0 %v870
  %1189 = vmatprep.subr.bf16.mxu0 %v875
  %1190 = vmatpush1.bf16.msra.mxu0 %v874
  %1191 = vmatprep.subr.bf16.mxu0 %v879
  %1192 = vmatpush1.bf16.msra.mxu0 %v878
  %1193 = vmatprep.subr.bf16.mxu0 %v883
  %1194 = vmatpush1.bf16.msra.mxu0 %v882
  %1195 = vmatprep.subr.bf16.mxu0 %v887
  %1196 = vmatpush1.bf16.msra.mxu0 %v886
  %1197 = vmatprep.subr.bf16.mxu0 %v891
  %1198 = vmatpush1.bf16.msra.mxu0 %v890
  %1199 = vmatprep.subr.bf16.mxu0 %v895
  %1200 = vmatpush1.bf16.msra.mxu0 %v894
  %1201 = vmatprep.subr.bf16.mxu0 %v899
  %1202 = vmatpush1.bf16.msra.mxu0 %v898
  %1203 = vmatprep.subr.bf16.mxu0 %v903
  %1204 = vmatpush1.bf16.msra.mxu0 %v902
  %1205 = vmatprep.subr.bf16.mxu0 %v907
  %1206 = vmatpush1.bf16.msra.mxu0 %v906
  %1207 = vmatprep.subr.bf16.mxu0 %v911
  %1208 = vmatpush1.bf16.msra.mxu0 %v910
  %1209 = vmatprep.subr.bf16.mxu0 %v915
  %1210 = vmatpush1.bf16.msra.mxu0 %v914
  %1211 = vmatprep.subr.bf16.mxu0 %v919
  %1212 = vmatpush1.bf16.msra.mxu0 %v918
  %1213 = vmatprep.subr.bf16.mxu0 %v923
  %1214 = vmatpush1.bf16.msra.mxu0 %v922
  %1215 = vmatprep.subr.bf16.mxu0 %v927
  %1216 = vmatpush1.bf16.msra.mxu0 %v926
  %1217 = vmatprep.mubr.bf16.mxu0 %v265
  %1218 = vmatmul.mubr.bf16.gmra.mrb[0].mxu0 %v264
  %v1219 = vpop.f32.mrb[0].mxu0
  %v1220 = vadd.f32 %v1177, %v1219
  %v1221 = vpop.f32.mrb[0].mxu0
  %v1222 = vadd.f32 %v1179, %v1221
  %v1223 = vpop.f32.mrb[0].mxu0
  %v1224 = vadd.f32 %v1181, %v1223
  %v1225 = vpop.f32.mrb[0].mxu0
  %v1226 = vadd.f32 %v1183, %v1225
  %1227 = vdwg.mxu0
  %v1228 = vmax.f32 %v1134, 0.0
  %v1229 = vmax.f32 %v1136, 0.0
  %v1230 = vmax.f32 %v1220, 0.0
  %v1231 = vmax.f32 %v1222, 0.0
  %v1232 = vmax.f32 %v1138, 0.0
  %v1233 = vmax.f32 %v1140, 0.0
  %v1234 = vmax.f32 %v1224, 0.0
  %v1235 = vmax.f32 %v1226, 0.0
  %v1236 = vpack.c.bf16 %v1232, %v1228
  %v1237 = vpack.c.bf16 %v1233, %v1229
  %v1238 = vpack.c.bf16 %v1234, %v1230
  %v1239 = vpack.c.bf16 %v1235, %v1231
  %v1240 = vld [vmem:[%s5] sm:$0xff]
  %v1241 = vld [vmem:[%s5 + $0x8] sm:$0xff]
  %v1242 = vld [vmem:[%s5 + $0x10] sm:$0xff]
  %v1243 = vld [vmem:[%s5 + $0x18] sm:$0xff]
  %v1244 = vld [vmem:[%s5 + $0x20] sm:$0xff]
  %v1245 = vld [vmem:[%s5 + $0x28] sm:$0xff]
  %v1246 = vld [vmem:[%s5 + $0x30] sm:$0xff]
  %v1247 = vld [vmem:[%s5 + $0x38] sm:$0xff]
  %v1248 = vld [vmem:[%s5 + $0x40] sm:$0xff]
  %v1249 = vld [vmem:[%s5 + $0x48] sm:$0xff]
  %v1250 = vld [vmem:[%s5 + $0x50] sm:$0xff]
  %v1251 = vld [vmem:[%s5 + $0x58] sm:$0xff]
  %v1252 = vld [vmem:[%s5 + $0x60] sm:$0xff]
  %v1253 = vld [vmem:[%s5 + $0x68] sm:$0xff]
  %v1254 = vld [vmem:[%s5 + $0x70] sm:$0xff]
  %v1255 = vld [vmem:[%s5 + $0x78] sm:$0xff]
  %v1256 = vld [vmem:[%s5 + $0x80] sm:$0xff]
  %v1257 = vld [vmem:[%s5 + $0x88] sm:$0xff]
  %v1258 = vld [vmem:[%s5 + $0x90] sm:$0xff]
  %v1259 = vld [vmem:[%s5 + $0x98] sm:$0xff]
  %v1260 = vld [vmem:[%s5 + $0xa0] sm:$0xff]
  %v1261 = vld [vmem:[%s5 + $0xa8] sm:$0xff]
  %v1262 = vld [vmem:[%s5 + $0xb0] sm:$0xff]
  %v1263 = vld [vmem:[%s5 + $0xb8] sm:$0xff]
  %v1264 = vld [vmem:[%s5 + $0xc0] sm:$0xff]
  %v1265 = vld [vmem:[%s5 + $0xc8] sm:$0xff]
  %v1266 = vld [vmem:[%s5 + $0xd0] sm:$0xff]
  %v1267 = vld [vmem:[%s5 + $0xd8] sm:$0xff]
  %v1268 = vld [vmem:[%s5 + $0xe0] sm:$0xff]
  %v1269 = vld [vmem:[%s5 + $0xe8] sm:$0xff]
  %v1270 = vld [vmem:[%s5 + $0xf0] sm:$0xff]
  %v1271 = vld [vmem:[%s5 + $0xf8] sm:$0xff]
  %v1272 = vld [vmem:[%s5 + $0x100] sm:$0xff]
  %v1273 = vld [vmem:[%s5 + $0x108] sm:$0xff]
  %v1274 = vld [vmem:[%s5 + $0x110] sm:$0xff]
  %v1275 = vld [vmem:[%s5 + $0x118] sm:$0xff]
  %v1276 = vld [vmem:[%s5 + $0x120] sm:$0xff]
  %v1277 = vld [vmem:[%s5 + $0x128] sm:$0xff]
  %v1278 = vld [vmem:[%s5 + $0x130] sm:$0xff]
  %v1279 = vld [vmem:[%s5 + $0x138] sm:$0xff]
  %v1280 = vld [vmem:[%s5 + $0x140] sm:$0xff]
  %v1281 = vld [vmem:[%s5 + $0x148] sm:$0xff]
  %v1282 = vld [vmem:[%s5 + $0x150] sm:$0xff]
  %v1283 = vld [vmem:[%s5 + $0x158] sm:$0xff]
  %v1284 = vld [vmem:[%s5 + $0x160] sm:$0xff]
  %v1285 = vld [vmem:[%s5 + $0x168] sm:$0xff]
  %v1286 = vld [vmem:[%s5 + $0x170] sm:$0xff]
  %v1287 = vld [vmem:[%s5 + $0x178] sm:$0xff]
  %v1288 = vld [vmem:[%s5 + $0x180] sm:$0xff]
  %v1289 = vld [vmem:[%s5 + $0x188] sm:$0xff]
  %v1290 = vld [vmem:[%s5 + $0x190] sm:$0xff]
  %v1291 = vld [vmem:[%s5 + $0x198] sm:$0xff]
  %v1292 = vld [vmem:[%s5 + $0x1a0] sm:$0xff]
  %v1293 = vld [vmem:[%s5 + $0x1a8] sm:$0xff]
  %v1294 = vld [vmem:[%s5 + $0x1b0] sm:$0xff]
  %v1295 = vld [vmem:[%s5 + $0x1b8] sm:$0xff]
  %v1296 = vld [vmem:[%s5 + $0x1c0] sm:$0xff]
  %v1297 = vld [vmem:[%s5 + $0x1c8] sm:$0xff]
  %v1298 = vld [vmem:[%s5 + $0x1d0] sm:$0xff]
  %v1299 = vld [vmem:[%s5 + $0x1d8] sm:$0xff]
  %v1300 = vld [vmem:[%s5 + $0x1e0] sm:$0xff]
  %v1301 = vld [vmem:[%s5 + $0x1e8] sm:$0xff]
  %v1302 = vld [vmem:[%s5 + $0x1f0] sm:$0xff]
  %v1303 = vld [vmem:[%s5 + $0x1f8] sm:$0xff]
  %v1304 = vld [vmem:[%s5 + $0x200] sm:$0xff]
  %v1305 = vld [vmem:[%s5 + $0x208] sm:$0xff]
  %v1306 = vld [vmem:[%s5 + $0x210] sm:$0xff]
  %v1307 = vld [vmem:[%s5 + $0x218] sm:$0xff]
  %v1308 = vld [vmem:[%s5 + $0x220] sm:$0xff]
  %v1309 = vld [vmem:[%s5 + $0x228] sm:$0xff]
  %v1310 = vld [vmem:[%s5 + $0x230] sm:$0xff]
  %v1311 = vld [vmem:[%s5 + $0x238] sm:$0xff]
  %v1312 = vld [vmem:[%s5 + $0x240] sm:$0xff]
  %v1313 = vld [vmem:[%s5 + $0x248] sm:$0xff]
  %v1314 = vld [vmem:[%s5 + $0x250] sm:$0xff]
  %v1315 = vld [vmem:[%s5 + $0x258] sm:$0xff]
  %v1316 = vld [vmem:[%s5 + $0x260] sm:$0xff]
  %v1317 = vld [vmem:[%s5 + $0x268] sm:$0xff]
  %v1318 = vld [vmem:[%s5 + $0x270] sm:$0xff]
  %v1319 = vld [vmem:[%s5 + $0x278] sm:$0xff]
  %v1320 = vld [vmem:[%s5 + $0x280] sm:$0xff]
  %v1321 = vld [vmem:[%s5 + $0x288] sm:$0xff]
  %v1322 = vld [vmem:[%s5 + $0x290] sm:$0xff]
  %v1323 = vld [vmem:[%s5 + $0x298] sm:$0xff]
  %v1324 = vld [vmem:[%s5 + $0x2a0] sm:$0xff]
  %v1325 = vld [vmem:[%s5 + $0x2a8] sm:$0xff]
  %v1326 = vld [vmem:[%s5 + $0x2b0] sm:$0xff]
  %v1327 = vld [vmem:[%s5 + $0x2b8] sm:$0xff]
  %v1328 = vld [vmem:[%s5 + $0x2c0] sm:$0xff]
  %v1329 = vld [vmem:[%s5 + $0x2c8] sm:$0xff]
  %v1330 = vld [vmem:[%s5 + $0x2d0] sm:$0xff]
  %v1331 = vld [vmem:[%s5 + $0x2d8] sm:$0xff]
  %v1332 = vld [vmem:[%s5 + $0x2e0] sm:$0xff]
  %v1333 = vld [vmem:[%s5 + $0x2e8] sm:$0xff]
  %v1334 = vld [vmem:[%s5 + $0x2f0] sm:$0xff]
  %v1335 = vld [vmem:[%s5 + $0x2f8] sm:$0xff]
  %v1336 = vld [vmem:[%s5 + $0x300] sm:$0xff]
  %v1337 = vld [vmem:[%s5 + $0x308] sm:$0xff]
  %v1338 = vld [vmem:[%s5 + $0x310] sm:$0xff]
  %v1339 = vld [vmem:[%s5 + $0x318] sm:$0xff]
  %v1340 = vld [vmem:[%s5 + $0x320] sm:$0xff]
  %v1341 = vld [vmem:[%s5 + $0x328] sm:$0xff]
  %v1342 = vld [vmem:[%s5 + $0x330] sm:$0xff]
  %v1343 = vld [vmem:[%s5 + $0x338] sm:$0xff]
  %v1344 = vld [vmem:[%s5 + $0x340] sm:$0xff]
  %v1345 = vld [vmem:[%s5 + $0x348] sm:$0xff]
  %v1346 = vld [vmem:[%s5 + $0x350] sm:$0xff]
  %v1347 = vld [vmem:[%s5 + $0x358] sm:$0xff]
  %v1348 = vld [vmem:[%s5 + $0x360] sm:$0xff]
  %v1349 = vld [vmem:[%s5 + $0x368] sm:$0xff]
  %v1350 = vld [vmem:[%s5 + $0x370] sm:$0xff]
  %v1351 = vld [vmem:[%s5 + $0x378] sm:$0xff]
  %v1352 = vld [vmem:[%s5 + $0x380] sm:$0xff]
  %v1353 = vld [vmem:[%s5 + $0x388] sm:$0xff]
  %v1354 = vld [vmem:[%s5 + $0x390] sm:$0xff]
  %v1355 = vld [vmem:[%s5 + $0x398] sm:$0xff]
  %v1356 = vld [vmem:[%s5 + $0x3a0] sm:$0xff]
  %v1357 = vld [vmem:[%s5 + $0x3a8] sm:$0xff]
  %v1358 = vld [vmem:[%s5 + $0x3b0] sm:$0xff]
  %v1359 = vld [vmem:[%s5 + $0x3b8] sm:$0xff]
  %v1360 = vld [vmem:[%s5 + $0x3c0] sm:$0xff]
  %v1361 = vld [vmem:[%s5 + $0x3c8] sm:$0xff]
  %v1362 = vld [vmem:[%s5 + $0x3d0] sm:$0xff]
  %v1363 = vld [vmem:[%s5 + $0x3d8] sm:$0xff]
  %v1364 = vld [vmem:[%s5 + $0x3e0] sm:$0xff]
  %v1365 = vld [vmem:[%s5 + $0x3e8] sm:$0xff]
  %v1366 = vld [vmem:[%s5 + $0x3f0] sm:$0xff]
  %v1367 = vld [vmem:[%s5 + $0x3f8] sm:$0xff]
  %v1368 = vld [vmem:[%s6] sm:$0xf]
  %v1370 = vlaneseq
  %v1371 = vshrl.u32 %v1370, 7
  %v1372 = vsub.s32 0, %v1371
  %v1373 = vrot.slane %v1368, %v1372
  %v1374 = vlaneseq
  %v1375 = vshrl.u32 %v1374, 7
  %v1376 = vsub.s32 1, %v1375
  %v1377 = vrot.slane %v1368, %v1376
  %v1378 = vlaneseq
  %v1379 = vshrl.u32 %v1378, 7
  %v1380 = vsub.s32 2, %v1379
  %v1381 = vrot.slane %v1368, %v1380
  %v1382 = vlaneseq
  %v1383 = vshrl.u32 %v1382, 7
  %v1384 = vsub.s32 3, %v1383
  %v1385 = vrot.slane %v1368, %v1384
  %v1518 = vunpack.c.l.b16 %v1240
  %v1519 = vunpack.c.h.b16 %v1240
  %v1520 = vunpack.c.l.b16 %v1241
  %v1521 = vunpack.c.h.b16 %v1241
  %v1522 = vunpack.c.l.b16 %v1242
  %v1523 = vunpack.c.h.b16 %v1242
  %v1524 = vunpack.c.l.b16 %v1243
  %v1525 = vunpack.c.h.b16 %v1243
  %v1526 = vunpack.c.l.b16 %v1244
  %v1527 = vunpack.c.h.b16 %v1244
  %v1528 = vunpack.c.l.b16 %v1245
  %v1529 = vunpack.c.h.b16 %v1245
  %v1530 = vunpack.c.l.b16 %v1246
  %v1531 = vunpack.c.h.b16 %v1246
  %v1532 = vunpack.c.l.b16 %v1247
  %v1533 = vunpack.c.h.b16 %v1247
  %v1534 = vunpack.c.l.b16 %v1248
  %v1535 = vunpack.c.h.b16 %v1248
  %v1536 = vunpack.c.l.b16 %v1249
  %v1537 = vunpack.c.h.b16 %v1249
  %v1538 = vunpack.c.l.b16 %v1250
  %v1539 = vunpack.c.h.b16 %v1250
  %v1540 = vunpack.c.l.b16 %v1251
  %v1541 = vunpack.c.h.b16 %v1251
  %v1542 = vunpack.c.l.b16 %v1252
  %v1543 = vunpack.c.h.b16 %v1252
  %v1544 = vunpack.c.l.b16 %v1253
  %v1545 = vunpack.c.h.b16 %v1253
  %v1546 = vunpack.c.l.b16 %v1254
  %v1547 = vunpack.c.h.b16 %v1254
  %v1548 = vunpack.c.l.b16 %v1255
  %v1549 = vunpack.c.h.b16 %v1255
  %v1550 = vunpack.c.l.b16 %v1256
  %v1551 = vunpack.c.h.b16 %v1256
  %v1552 = vunpack.c.l.b16 %v1257
  %v1553 = vunpack.c.h.b16 %v1257
  %v1554 = vunpack.c.l.b16 %v1258
  %v1555 = vunpack.c.h.b16 %v1258
  %v1556 = vunpack.c.l.b16 %v1259
  %v1557 = vunpack.c.h.b16 %v1259
  %v1558 = vunpack.c.l.b16 %v1260
  %v1559 = vunpack.c.h.b16 %v1260
  %v1560 = vunpack.c.l.b16 %v1261
  %v1561 = vunpack.c.h.b16 %v1261
  %v1562 = vunpack.c.l.b16 %v1262
  %v1563 = vunpack.c.h.b16 %v1262
  %v1564 = vunpack.c.l.b16 %v1263
  %v1565 = vunpack.c.h.b16 %v1263
  %v1566 = vunpack.c.l.b16 %v1264
  %v1567 = vunpack.c.h.b16 %v1264
  %v1568 = vunpack.c.l.b16 %v1265
  %v1569 = vunpack.c.h.b16 %v1265
  %v1570 = vunpack.c.l.b16 %v1266
  %v1571 = vunpack.c.h.b16 %v1266
  %v1572 = vunpack.c.l.b16 %v1267
  %v1573 = vunpack.c.h.b16 %v1267
  %v1574 = vunpack.c.l.b16 %v1268
  %v1575 = vunpack.c.h.b16 %v1268
  %v1576 = vunpack.c.l.b16 %v1269
  %v1577 = vunpack.c.h.b16 %v1269
  %v1578 = vunpack.c.l.b16 %v1270
  %v1579 = vunpack.c.h.b16 %v1270
  %v1580 = vunpack.c.l.b16 %v1271
  %v1581 = vunpack.c.h.b16 %v1271
  %v1582 = vunpack.c.l.b16 %v1272
  %v1583 = vunpack.c.h.b16 %v1272
  %v1584 = vunpack.c.l.b16 %v1273
  %v1585 = vunpack.c.h.b16 %v1273
  %v1586 = vunpack.c.l.b16 %v1274
  %v1587 = vunpack.c.h.b16 %v1274
  %v1588 = vunpack.c.l.b16 %v1275
  %v1589 = vunpack.c.h.b16 %v1275
  %v1590 = vunpack.c.l.b16 %v1276
  %v1591 = vunpack.c.h.b16 %v1276
  %v1592 = vunpack.c.l.b16 %v1277
  %v1593 = vunpack.c.h.b16 %v1277
  %v1594 = vunpack.c.l.b16 %v1278
  %v1595 = vunpack.c.h.b16 %v1278
  %v1596 = vunpack.c.l.b16 %v1279
  %v1597 = vunpack.c.h.b16 %v1279
  %v1598 = vunpack.c.l.b16 %v1280
  %v1599 = vunpack.c.h.b16 %v1280
  %v1600 = vunpack.c.l.b16 %v1281
  %v1601 = vunpack.c.h.b16 %v1281
  %v1602 = vunpack.c.l.b16 %v1282
  %v1603 = vunpack.c.h.b16 %v1282
  %v1604 = vunpack.c.l.b16 %v1283
  %v1605 = vunpack.c.h.b16 %v1283
  %v1606 = vunpack.c.l.b16 %v1284
  %v1607 = vunpack.c.h.b16 %v1284
  %v1608 = vunpack.c.l.b16 %v1285
  %v1609 = vunpack.c.h.b16 %v1285
  %v1610 = vunpack.c.l.b16 %v1286
  %v1611 = vunpack.c.h.b16 %v1286
  %v1612 = vunpack.c.l.b16 %v1287
  %v1613 = vunpack.c.h.b16 %v1287
  %v1614 = vunpack.c.l.b16 %v1288
  %v1615 = vunpack.c.h.b16 %v1288
  %v1616 = vunpack.c.l.b16 %v1289
  %v1617 = vunpack.c.h.b16 %v1289
  %v1618 = vunpack.c.l.b16 %v1290
  %v1619 = vunpack.c.h.b16 %v1290
  %v1620 = vunpack.c.l.b16 %v1291
  %v1621 = vunpack.c.h.b16 %v1291
  %v1622 = vunpack.c.l.b16 %v1292
  %v1623 = vunpack.c.h.b16 %v1292
  %v1624 = vunpack.c.l.b16 %v1293
  %v1625 = vunpack.c.h.b16 %v1293
  %v1626 = vunpack.c.l.b16 %v1294
  %v1627 = vunpack.c.h.b16 %v1294
  %v1628 = vunpack.c.l.b16 %v1295
  %v1629 = vunpack.c.h.b16 %v1295
  %v1630 = vunpack.c.l.b16 %v1296
  %v1631 = vunpack.c.h.b16 %v1296
  %v1632 = vunpack.c.l.b16 %v1297
  %v1633 = vunpack.c.h.b16 %v1297
  %v1634 = vunpack.c.l.b16 %v1298
  %v1635 = vunpack.c.h.b16 %v1298
  %v1636 = vunpack.c.l.b16 %v1299
  %v1637 = vunpack.c.h.b16 %v1299
  %v1638 = vunpack.c.l.b16 %v1300
  %v1639 = vunpack.c.h.b16 %v1300
  %v1640 = vunpack.c.l.b16 %v1301
  %v1641 = vunpack.c.h.b16 %v1301
  %v1642 = vunpack.c.l.b16 %v1302
  %v1643 = vunpack.c.h.b16 %v1302
  %v1644 = vunpack.c.l.b16 %v1303
  %v1645 = vunpack.c.h.b16 %v1303
  %v1646 = vunpack.c.l.b16 %v1304
  %v1647 = vunpack.c.h.b16 %v1304
  %v1648 = vunpack.c.l.b16 %v1305
  %v1649 = vunpack.c.h.b16 %v1305
  %v1650 = vunpack.c.l.b16 %v1306
  %v1651 = vunpack.c.h.b16 %v1306
  %v1652 = vunpack.c.l.b16 %v1307
  %v1653 = vunpack.c.h.b16 %v1307
  %v1654 = vunpack.c.l.b16 %v1308
  %v1655 = vunpack.c.h.b16 %v1308
  %v1656 = vunpack.c.l.b16 %v1309
  %v1657 = vunpack.c.h.b16 %v1309
  %v1658 = vunpack.c.l.b16 %v1310
  %v1659 = vunpack.c.h.b16 %v1310
  %v1660 = vunpack.c.l.b16 %v1311
  %v1661 = vunpack.c.h.b16 %v1311
  %v1662 = vunpack.c.l.b16 %v1312
  %v1663 = vunpack.c.h.b16 %v1312
  %v1664 = vunpack.c.l.b16 %v1313
  %v1665 = vunpack.c.h.b16 %v1313
  %v1666 = vunpack.c.l.b16 %v1314
  %v1667 = vunpack.c.h.b16 %v1314
  %v1668 = vunpack.c.l.b16 %v1315
  %v1669 = vunpack.c.h.b16 %v1315
  %v1670 = vunpack.c.l.b16 %v1316
  %v1671 = vunpack.c.h.b16 %v1316
  %v1672 = vunpack.c.l.b16 %v1317
  %v1673 = vunpack.c.h.b16 %v1317
  %v1674 = vunpack.c.l.b16 %v1318
  %v1675 = vunpack.c.h.b16 %v1318
  %v1676 = vunpack.c.l.b16 %v1319
  %v1677 = vunpack.c.h.b16 %v1319
  %v1678 = vunpack.c.l.b16 %v1320
  %v1679 = vunpack.c.h.b16 %v1320
  %v1680 = vunpack.c.l.b16 %v1321
  %v1681 = vunpack.c.h.b16 %v1321
  %v1682 = vunpack.c.l.b16 %v1322
  %v1683 = vunpack.c.h.b16 %v1322
  %v1684 = vunpack.c.l.b16 %v1323
  %v1685 = vunpack.c.h.b16 %v1323
  %v1686 = vunpack.c.l.b16 %v1324
  %v1687 = vunpack.c.h.b16 %v1324
  %v1688 = vunpack.c.l.b16 %v1325
  %v1689 = vunpack.c.h.b16 %v1325
  %v1690 = vunpack.c.l.b16 %v1326
  %v1691 = vunpack.c.h.b16 %v1326
  %v1692 = vunpack.c.l.b16 %v1327
  %v1693 = vunpack.c.h.b16 %v1327
  %v1694 = vunpack.c.l.b16 %v1328
  %v1695 = vunpack.c.h.b16 %v1328
  %v1696 = vunpack.c.l.b16 %v1329
  %v1697 = vunpack.c.h.b16 %v1329
  %v1698 = vunpack.c.l.b16 %v1330
  %v1699 = vunpack.c.h.b16 %v1330
  %v1700 = vunpack.c.l.b16 %v1331
  %v1701 = vunpack.c.h.b16 %v1331
  %v1702 = vunpack.c.l.b16 %v1332
  %v1703 = vunpack.c.h.b16 %v1332
  %v1704 = vunpack.c.l.b16 %v1333
  %v1705 = vunpack.c.h.b16 %v1333
  %v1706 = vunpack.c.l.b16 %v1334
  %v1707 = vunpack.c.h.b16 %v1334
  %v1708 = vunpack.c.l.b16 %v1335
  %v1709 = vunpack.c.h.b16 %v1335
  %v1710 = vunpack.c.l.b16 %v1336
  %v1711 = vunpack.c.h.b16 %v1336
  %v1712 = vunpack.c.l.b16 %v1337
  %v1713 = vunpack.c.h.b16 %v1337
  %v1714 = vunpack.c.l.b16 %v1338
  %v1715 = vunpack.c.h.b16 %v1338
  %v1716 = vunpack.c.l.b16 %v1339
  %v1717 = vunpack.c.h.b16 %v1339
  %v1718 = vunpack.c.l.b16 %v1340
  %v1719 = vunpack.c.h.b16 %v1340
  %v1720 = vunpack.c.l.b16 %v1341
  %v1721 = vunpack.c.h.b16 %v1341
  %v1722 = vunpack.c.l.b16 %v1342
  %v1723 = vunpack.c.h.b16 %v1342
  %v1724 = vunpack.c.l.b16 %v1343
  %v1725 = vunpack.c.h.b16 %v1343
  %v1726 = vunpack.c.l.b16 %v1344
  %v1727 = vunpack.c.h.b16 %v1344
  %v1728 = vunpack.c.l.b16 %v1345
  %v1729 = vunpack.c.h.b16 %v1345
  %v1730 = vunpack.c.l.b16 %v1346
  %v1731 = vunpack.c.h.b16 %v1346
  %v1732 = vunpack.c.l.b16 %v1347
  %v1733 = vunpack.c.h.b16 %v1347
  %v1734 = vunpack.c.l.b16 %v1348
  %v1735 = vunpack.c.h.b16 %v1348
  %v1736 = vunpack.c.l.b16 %v1349
  %v1737 = vunpack.c.h.b16 %v1349
  %v1738 = vunpack.c.l.b16 %v1350
  %v1739 = vunpack.c.h.b16 %v1350
  %v1740 = vunpack.c.l.b16 %v1351
  %v1741 = vunpack.c.h.b16 %v1351
  %v1742 = vunpack.c.l.b16 %v1352
  %v1743 = vunpack.c.h.b16 %v1352
  %v1744 = vunpack.c.l.b16 %v1353
  %v1745 = vunpack.c.h.b16 %v1353
  %v1746 = vunpack.c.l.b16 %v1354
  %v1747 = vunpack.c.h.b16 %v1354
  %v1748 = vunpack.c.l.b16 %v1355
  %v1749 = vunpack.c.h.b16 %v1355
  %v1750 = vunpack.c.l.b16 %v1356
  %v1751 = vunpack.c.h.b16 %v1356
  %v1752 = vunpack.c.l.b16 %v1357
  %v1753 = vunpack.c.h.b16 %v1357
  %v1754 = vunpack.c.l.b16 %v1358
  %v1755 = vunpack.c.h.b16 %v1358
  %v1756 = vunpack.c.l.b16 %v1359
  %v1757 = vunpack.c.h.b16 %v1359
  %v1758 = vunpack.c.l.b16 %v1360
  %v1759 = vunpack.c.h.b16 %v1360
  %v1760 = vunpack.c.l.b16 %v1361
  %v1761 = vunpack.c.h.b16 %v1361
  %v1762 = vunpack.c.l.b16 %v1362
  %v1763 = vunpack.c.h.b16 %v1362
  %v1764 = vunpack.c.l.b16 %v1363
  %v1765 = vunpack.c.h.b16 %v1363
  %v1766 = vunpack.c.l.b16 %v1364
  %v1767 = vunpack.c.h.b16 %v1364
  %v1768 = vunpack.c.l.b16 %v1365
  %v1769 = vunpack.c.h.b16 %v1365
  %v1770 = vunpack.c.l.b16 %v1366
  %v1771 = vunpack.c.h.b16 %v1366
  %v1772 = vunpack.c.l.b16 %v1367
  %v1773 = vunpack.c.h.b16 %v1367
  %v1774 = vpack.c.b16 %v1522, %v1518
  %v1775 = vpack.c.b16 %v1523, %v1519
  %v1776 = vpack.c.b16 %v1524, %v1520
  %v1777 = vpack.c.b16 %v1525, %v1521
  %v1778 = vpack.c.b16 %v1530, %v1526
  %v1779 = vpack.c.b16 %v1531, %v1527
  %v1780 = vpack.c.b16 %v1532, %v1528
  %v1781 = vpack.c.b16 %v1533, %v1529
  %v1782 = vpack.c.b16 %v1538, %v1534
  %v1783 = vpack.c.b16 %v1539, %v1535
  %v1784 = vpack.c.b16 %v1540, %v1536
  %v1785 = vpack.c.b16 %v1541, %v1537
  %v1786 = vpack.c.b16 %v1546, %v1542
  %v1787 = vpack.c.b16 %v1547, %v1543
  %v1788 = vpack.c.b16 %v1548, %v1544
  %v1789 = vpack.c.b16 %v1549, %v1545
  %v1790 = vpack.c.b16 %v1554, %v1550
  %v1791 = vpack.c.b16 %v1555, %v1551
  %v1792 = vpack.c.b16 %v1556, %v1552
  %v1793 = vpack.c.b16 %v1557, %v1553
  %v1794 = vpack.c.b16 %v1562, %v1558
  %v1795 = vpack.c.b16 %v1563, %v1559
  %v1796 = vpack.c.b16 %v1564, %v1560
  %v1797 = vpack.c.b16 %v1565, %v1561
  %v1798 = vpack.c.b16 %v1570, %v1566
  %v1799 = vpack.c.b16 %v1571, %v1567
  %v1800 = vpack.c.b16 %v1572, %v1568
  %v1801 = vpack.c.b16 %v1573, %v1569
  %v1802 = vpack.c.b16 %v1578, %v1574
  %v1803 = vpack.c.b16 %v1579, %v1575
  %v1804 = vpack.c.b16 %v1580, %v1576
  %v1805 = vpack.c.b16 %v1581, %v1577
  %v1806 = vpack.c.b16 %v1586, %v1582
  %v1807 = vpack.c.b16 %v1587, %v1583
  %v1808 = vpack.c.b16 %v1588, %v1584
  %v1809 = vpack.c.b16 %v1589, %v1585
  %v1810 = vpack.c.b16 %v1594, %v1590
  %v1811 = vpack.c.b16 %v1595, %v1591
  %v1812 = vpack.c.b16 %v1596, %v1592
  %v1813 = vpack.c.b16 %v1597, %v1593
  %v1814 = vpack.c.b16 %v1602, %v1598
  %v1815 = vpack.c.b16 %v1603, %v1599
  %v1816 = vpack.c.b16 %v1604, %v1600
  %v1817 = vpack.c.b16 %v1605, %v1601
  %v1818 = vpack.c.b16 %v1610, %v1606
  %v1819 = vpack.c.b16 %v1611, %v1607
  %v1820 = vpack.c.b16 %v1612, %v1608
  %v1821 = vpack.c.b16 %v1613, %v1609
  %v1822 = vpack.c.b16 %v1618, %v1614
  %v1823 = vpack.c.b16 %v1619, %v1615
  %v1824 = vpack.c.b16 %v1620, %v1616
  %v1825 = vpack.c.b16 %v1621, %v1617
  %v1826 = vpack.c.b16 %v1626, %v1622
  %v1827 = vpack.c.b16 %v1627, %v1623
  %v1828 = vpack.c.b16 %v1628, %v1624
  %v1829 = vpack.c.b16 %v1629, %v1625
  %v1830 = vpack.c.b16 %v1634, %v1630
  %v1831 = vpack.c.b16 %v1635, %v1631
  %v1832 = vpack.c.b16 %v1636, %v1632
  %v1833 = vpack.c.b16 %v1637, %v1633
  %v1834 = vpack.c.b16 %v1642, %v1638
  %v1835 = vpack.c.b16 %v1643, %v1639
  %v1836 = vpack.c.b16 %v1644, %v1640
  %v1837 = vpack.c.b16 %v1645, %v1641
  %v1838 = vpack.c.b16 %v1650, %v1646
  %v1839 = vpack.c.b16 %v1651, %v1647
  %v1840 = vpack.c.b16 %v1652, %v1648
  %v1841 = vpack.c.b16 %v1653, %v1649
  %v1842 = vpack.c.b16 %v1658, %v1654
  %v1843 = vpack.c.b16 %v1659, %v1655
  %v1844 = vpack.c.b16 %v1660, %v1656
  %v1845 = vpack.c.b16 %v1661, %v1657
  %v1846 = vpack.c.b16 %v1666, %v1662
  %v1847 = vpack.c.b16 %v1667, %v1663
  %v1848 = vpack.c.b16 %v1668, %v1664
  %v1849 = vpack.c.b16 %v1669, %v1665
  %v1850 = vpack.c.b16 %v1674, %v1670
  %v1851 = vpack.c.b16 %v1675, %v1671
  %v1852 = vpack.c.b16 %v1676, %v1672
  %v1853 = vpack.c.b16 %v1677, %v1673
  %v1854 = vpack.c.b16 %v1682, %v1678
  %v1855 = vpack.c.b16 %v1683, %v1679
  %v1856 = vpack.c.b16 %v1684, %v1680
  %v1857 = vpack.c.b16 %v1685, %v1681
  %v1858 = vpack.c.b16 %v1690, %v1686
  %v1859 = vpack.c.b16 %v1691, %v1687
  %v1860 = vpack.c.b16 %v1692, %v1688
  %v1861 = vpack.c.b16 %v1693, %v1689
  %v1862 = vpack.c.b16 %v1698, %v1694
  %v1863 = vpack.c.b16 %v1699, %v1695
  %v1864 = vpack.c.b16 %v1700, %v1696
  %v1865 = vpack.c.b16 %v1701, %v1697
  %v1866 = vpack.c.b16 %v1706, %v1702
  %v1867 = vpack.c.b16 %v1707, %v1703
  %v1868 = vpack.c.b16 %v1708, %v1704
  %v1869 = vpack.c.b16 %v1709, %v1705
  %v1870 = vpack.c.b16 %v1714, %v1710
  %v1871 = vpack.c.b16 %v1715, %v1711
  %v1872 = vpack.c.b16 %v1716, %v1712
  %v1873 = vpack.c.b16 %v1717, %v1713
  %v1874 = vpack.c.b16 %v1722, %v1718
  %v1875 = vpack.c.b16 %v1723, %v1719
  %v1876 = vpack.c.b16 %v1724, %v1720
  %v1877 = vpack.c.b16 %v1725, %v1721
  %v1878 = vpack.c.b16 %v1730, %v1726
  %v1879 = vpack.c.b16 %v1731, %v1727
  %v1880 = vpack.c.b16 %v1732, %v1728
  %v1881 = vpack.c.b16 %v1733, %v1729
  %v1882 = vpack.c.b16 %v1738, %v1734
  %v1883 = vpack.c.b16 %v1739, %v1735
  %v1884 = vpack.c.b16 %v1740, %v1736
  %v1885 = vpack.c.b16 %v1741, %v1737
  %v1886 = vpack.c.b16 %v1746, %v1742
  %v1887 = vpack.c.b16 %v1747, %v1743
  %v1888 = vpack.c.b16 %v1748, %v1744
  %v1889 = vpack.c.b16 %v1749, %v1745
  %v1890 = vpack.c.b16 %v1754, %v1750
  %v1891 = vpack.c.b16 %v1755, %v1751
  %v1892 = vpack.c.b16 %v1756, %v1752
  %v1893 = vpack.c.b16 %v1757, %v1753
  %v1894 = vpack.c.b16 %v1762, %v1758
  %v1895 = vpack.c.b16 %v1763, %v1759
  %v1896 = vpack.c.b16 %v1764, %v1760
  %v1897 = vpack.c.b16 %v1765, %v1761
  %v1898 = vpack.c.b16 %v1770, %v1766
  %v1899 = vpack.c.b16 %v1771, %v1767
  %v1900 = vpack.c.b16 %v1772, %v1768
  %v1901 = vpack.c.b16 %v1773, %v1769
  %2030 = vmatprep.subr.bf16.mxu0 %v1775
  %2031 = vmatpush1.bf16.msra.mxu0 %v1774
  %2032 = vmatprep.subr.bf16.mxu0 %v1779
  %2033 = vmatpush1.bf16.msra.mxu0 %v1778
  %2034 = vmatprep.subr.bf16.mxu0 %v1783
  %2035 = vmatpush1.bf16.msra.mxu0 %v1782
  %2036 = vmatprep.subr.bf16.mxu0 %v1787
  %2037 = vmatpush1.bf16.msra.mxu0 %v1786
  %2038 = vmatprep.subr.bf16.mxu0 %v1791
  %2039 = vmatpush1.bf16.msra.mxu0 %v1790
  %2040 = vmatprep.subr.bf16.mxu0 %v1795
  %2041 = vmatpush1.bf16.msra.mxu0 %v1794
  %2042 = vmatprep.subr.bf16.mxu0 %v1799
  %2043 = vmatpush1.bf16.msra.mxu0 %v1798
  %2044 = vmatprep.subr.bf16.mxu0 %v1803
  %2045 = vmatpush1.bf16.msra.mxu0 %v1802
  %2046 = vmatprep.subr.bf16.mxu0 %v1807
  %2047 = vmatpush1.bf16.msra.mxu0 %v1806
  %2048 = vmatprep.subr.bf16.mxu0 %v1811
  %2049 = vmatpush1.bf16.msra.mxu0 %v1810
  %2050 = vmatprep.subr.bf16.mxu0 %v1815
  %2051 = vmatpush1.bf16.msra.mxu0 %v1814
  %2052 = vmatprep.subr.bf16.mxu0 %v1819
  %2053 = vmatpush1.bf16.msra.mxu0 %v1818
  %2054 = vmatprep.subr.bf16.mxu0 %v1823
  %2055 = vmatpush1.bf16.msra.mxu0 %v1822
  %2056 = vmatprep.subr.bf16.mxu0 %v1827
  %2057 = vmatpush1.bf16.msra.mxu0 %v1826
  %2058 = vmatprep.subr.bf16.mxu0 %v1831
  %2059 = vmatpush1.bf16.msra.mxu0 %v1830
  %2060 = vmatprep.subr.bf16.mxu0 %v1835
  %2061 = vmatpush1.bf16.msra.mxu0 %v1834
  %2062 = vmatprep.mubr.bf16.mxu0 %v1237
  %2063 = vmatmul.mubr.bf16.gmra.mrb[0].mxu0 %v1236
  %v2064 = vpop.f32.mrb[0].mxu0
  %v2065 = vadd.f32 %v1373, %v2064
  %v2066 = vpop.f32.mrb[0].mxu0
  %v2067 = vadd.f32 %v1377, %v2066
  %v2068 = vpop.f32.mrb[0].mxu0
  %v2069 = vadd.f32 %v1373, %v2068
  %v2070 = vpop.f32.mrb[0].mxu0
  %v2071 = vadd.f32 %v1377, %v2070
  %2072 = vdwg.mxu0
  %2073 = vmatprep.subr.bf16.mxu0 %v1839
  %2074 = vmatpush1.bf16.msra.mxu0 %v1838
  %2075 = vmatprep.subr.bf16.mxu0 %v1843
  %2076 = vmatpush1.bf16.msra.mxu0 %v1842
  %2077 = vmatprep.subr.bf16.mxu0 %v1847
  %2078 = vmatpush1.bf16.msra.mxu0 %v1846
  %2079 = vmatprep.subr.bf16.mxu0 %v1851
  %2080 = vmatpush1.bf16.msra.mxu0 %v1850
  %2081 = vmatprep.subr.bf16.mxu0 %v1855
  %2082 = vmatpush1.bf16.msra.mxu0 %v1854
  %2083 = vmatprep.subr.bf16.mxu0 %v1859
  %2084 = vmatpush1.bf16.msra.mxu0 %v1858
  %2085 = vmatprep.subr.bf16.mxu0 %v1863
  %2086 = vmatpush1.bf16.msra.mxu0 %v1862
  %2087 = vmatprep.subr.bf16.mxu0 %v1867
  %2088 = vmatpush1.bf16.msra.mxu0 %v1866
  %2089 = vmatprep.subr.bf16.mxu0 %v1871
  %2090 = vmatpush1.bf16.msra.mxu0 %v1870
  %2091 = vmatprep.subr.bf16.mxu0 %v1875
  %2092 = vmatpush1.bf16.msra.mxu0 %v1874
  %2093 = vmatprep.subr.bf16.mxu0 %v1879
  %2094 = vmatpush1.bf16.msra.mxu0 %v1878
  %2095 = vmatprep.subr.bf16.mxu0 %v1883
  %2096 = vmatpush1.bf16.msra.mxu0 %v1882
  %2097 = vmatprep.subr.bf16.mxu0 %v1887
  %2098 = vmatpush1.bf16.msra.mxu0 %v1886
  %2099 = vmatprep.subr.bf16.mxu0 %v1891
  %2100 = vmatpush1.bf16.msra.mxu0 %v1890
  %2101 = vmatprep.subr.bf16.mxu0 %v1895
  %2102 = vmatpush1.bf16.msra.mxu0 %v1894
  %2103 = vmatprep.subr.bf16.mxu0 %v1899
  %2104 = vmatpush1.bf16.msra.mxu0 %v1898
  %2105 = vmatprep.mubr.bf16.mxu0 %v1239
  %2106 = vmatmul.mubr.bf16.gmra.mrb[0].mxu0 %v1238
  %v2107 = vpop.f32.mrb[0].mxu0
  %v2108 = vadd.f32 %v2065, %v2107
  %v2109 = vpop.f32.mrb[0].mxu0
  %v2110 = vadd.f32 %v2067, %v2109
  %v2111 = vpop.f32.mrb[0].mxu0
  %v2112 = vadd.f32 %v2069, %v2111
  %v2113 = vpop.f32.mrb[0].mxu0
  %v2114 = vadd.f32 %v2071, %v2113
  %2115 = vdwg.mxu0
  %2116 = vmatprep.subr.bf16.mxu0 %v1777
  %2117 = vmatpush1.bf16.msra.mxu0 %v1776
  %2118 = vmatprep.subr.bf16.mxu0 %v1781
  %2119 = vmatpush1.bf16.msra.mxu0 %v1780
  %2120 = vmatprep.subr.bf16.mxu0 %v1785
  %2121 = vmatpush1.bf16.msra.mxu0 %v1784
  %2122 = vmatprep.subr.bf16.mxu0 %v1789
  %2123 = vmatpush1.bf16.msra.mxu0 %v1788
  %2124 = vmatprep.subr.bf16.mxu0 %v1793
  %2125 = vmatpush1.bf16.msra.mxu0 %v1792
  %2126 = vmatprep.subr.bf16.mxu0 %v1797
  %2127 = vmatpush1.bf16.msra.mxu0 %v1796
  %2128 = vmatprep.subr.bf16.mxu0 %v1801
  %2129 = vmatpush1.bf16.msra.mxu0 %v1800
  %2130 = vmatprep.subr.bf16.mxu0 %v1805
  %2131 = vmatpush1.bf16.msra.mxu0 %v1804
  %2132 = vmatprep.subr.bf16.mxu0 %v1809
  %2133 = vmatpush1.bf16.msra.mxu0 %v1808
  %2134 = vmatprep.subr.bf16.mxu0 %v1813
  %2135 = vmatpush1.bf16.msra.mxu0 %v1812
  %2136 = vmatprep.subr.bf16.mxu0 %v1817
  %2137 = vmatpush1.bf16.msra.mxu0 %v1816
  %2138 = vmatprep.subr.bf16.mxu0 %v1821
  %2139 = vmatpush1.bf16.msra.mxu0 %v1820
  %2140 = vmatprep.subr.bf16.mxu0 %v1825
  %2141 = vmatpush1.bf16.msra.mxu0 %v1824
  %2142 = vmatprep.subr.bf16.mxu0 %v1829
  %2143 = vmatpush1.bf16.msra.mxu0 %v1828
  %2144 = vmatprep.subr.bf16.mxu0 %v1833
  %2145 = vmatpush1.bf16.msra.mxu0 %v1832
  %2146 = vmatprep.subr.bf16.mxu0 %v1837
  %2147 = vmatpush1.bf16.msra.mxu0 %v1836
  %2148 = vmatprep.mubr.bf16.mxu0 %v1237
  %2149 = vmatmul.mubr.bf16.gmra.mrb[0].mxu0 %v1236
  %v2150 = vpop.f32.mrb[0].mxu0
  %v2151 = vadd.f32 %v1381, %v2150
  %v2152 = vpop.f32.mrb[0].mxu0
  %v2153 = vadd.f32 %v1385, %v2152
  %v2154 = vpop.f32.mrb[0].mxu0
  %v2155 = vadd.f32 %v1381, %v2154
  %v2156 = vpop.f32.mrb[0].mxu0
  %v2157 = vadd.f32 %v1385, %v2156
  %2158 = vdwg.mxu0
  %2159 = vmatprep.subr.bf16.mxu0 %v1841
  %2160 = vmatpush1.bf16.msra.mxu0 %v1840
  %2161 = vmatprep.subr.bf16.mxu0 %v1845
  %2162 = vmatpush1.bf16.msra.mxu0 %v1844
  %2163 = vmatprep.subr.bf16.mxu0 %v1849
  %2164 = vmatpush1.bf16.msra.mxu0 %v1848
  %2165 = vmatprep.subr.bf16.mxu0 %v1853
  %2166 = vmatpush1.bf16.msra.mxu0 %v1852
  %2167 = vmatprep.subr.bf16.mxu0 %v1857
  %2168 = vmatpush1.bf16.msra.mxu0 %v1856
  %2169 = vmatprep.subr.bf16.mxu0 %v1861
  %2170 = vmatpush1.bf16.msra.mxu0 %v1860
  %2171 = vmatprep.subr.bf16.mxu0 %v1865
  %2172 = vmatpush1.bf16.msra.mxu0 %v1864
  %2173 = vmatprep.subr.bf16.mxu0 %v1869
  %2174 = vmatpush1.bf16.msra.mxu0 %v1868
  %2175 = vmatprep.subr.bf16.mxu0 %v1873
  %2176 = vmatpush1.bf16.msra.mxu0 %v1872
  %2177 = vmatprep.subr.bf16.mxu0 %v1877
  %2178 = vmatpush1.bf16.msra.mxu0 %v1876
  %2179 = vmatprep.subr.bf16.mxu0 %v1881
  %2180 = vmatpush1.bf16.msra.mxu0 %v1880
  %2181 = vmatprep.subr.bf16.mxu0 %v1885
  %2182 = vmatpush1.bf16.msra.mxu0 %v1884
  %2183 = vmatprep.subr.bf16.mxu0 %v1889
  %2184 = vmatpush1.bf16.msra.mxu0 %v1888
  %2185 = vmatprep.subr.bf16.mxu0 %v1893
  %2186 = vmatpush1.bf16.msra.mxu0 %v1892
  %2187 = vmatprep.subr.bf16.mxu0 %v1897
  %2188 = vmatpush1.bf16.msra.mxu0 %v1896
  %2189 = vmatprep.subr.bf16.mxu0 %v1901
  %2190 = vmatpush1.bf16.msra.mxu0 %v1900
  %2191 = vmatprep.mubr.bf16.mxu0 %v1239
  %2192 = vmatmul.mubr.bf16.gmra.mrb[0].mxu0 %v1238
  %v2193 = vpop.f32.mrb[0].mxu0
  %v2194 = vadd.f32 %v2151, %v2193
  %v2195 = vpop.f32.mrb[0].mxu0
  %v2196 = vadd.f32 %v2153, %v2195
  %v2197 = vpop.f32.mrb[0].mxu0
  %v2198 = vadd.f32 %v2155, %v2197
  %v2199 = vpop.f32.mrb[0].mxu0
  %v2200 = vadd.f32 %v2157, %v2199
  %2201 = vdwg.mxu0
  %v2202 = vmax.f32 %v2108, 0.0
  %v2203 = vmax.f32 %v2110, 0.0
  %v2204 = vmax.f32 %v2194, 0.0
  %v2205 = vmax.f32 %v2196, 0.0
  %v2206 = vmax.f32 %v2112, 0.0
  %v2207 = vmax.f32 %v2114, 0.0
  %v2208 = vmax.f32 %v2198, 0.0
  %v2209 = vmax.f32 %v2200, 0.0
  %v2210 = vpack.c.bf16 %v2206, %v2202
  %v2211 = vpack.c.bf16 %v2207, %v2203
  %v2212 = vpack.c.bf16 %v2208, %v2204
  %v2213 = vpack.c.bf16 %v2209, %v2205
  %v2214 = vld [vmem:[%s7] sm:$0xff]
  %v2215 = vld [vmem:[%s7 + $0x8] sm:$0xff]
  %v2216 = vld [vmem:[%s7 + $0x10] sm:$0xff]
  %v2217 = vld [vmem:[%s7 + $0x18] sm:$0xff]
  %v2218 = vld [vmem:[%s7 + $0x20] sm:$0xff]
  %v2219 = vld [vmem:[%s7 + $0x28] sm:$0xff]
  %v2220 = vld [vmem:[%s7 + $0x30] sm:$0xff]
  %v2221 = vld [vmem:[%s7 + $0x38] sm:$0xff]
  %v2222 = vld [vmem:[%s7 + $0x40] sm:$0xff]
  %v2223 = vld [vmem:[%s7 + $0x48] sm:$0xff]
  %v2224 = vld [vmem:[%s7 + $0x50] sm:$0xff]
  %v2225 = vld [vmem:[%s7 + $0x58] sm:$0xff]
  %v2226 = vld [vmem:[%s7 + $0x60] sm:$0xff]
  %v2227 = vld [vmem:[%s7 + $0x68] sm:$0xff]
  %v2228 = vld [vmem:[%s7 + $0x70] sm:$0xff]
  %v2229 = vld [vmem:[%s7 + $0x78] sm:$0xff]
  %v2230 = vld [vmem:[%s7 + $0x80] sm:$0xff]
  %v2231 = vld [vmem:[%s7 + $0x88] sm:$0xff]
  %v2232 = vld [vmem:[%s7 + $0x90] sm:$0xff]
  %v2233 = vld [vmem:[%s7 + $0x98] sm:$0xff]
  %v2234 = vld [vmem:[%s7 + $0xa0] sm:$0xff]
  %v2235 = vld [vmem:[%s7 + $0xa8] sm:$0xff]
  %v2236 = vld [vmem:[%s7 + $0xb0] sm:$0xff]
  %v2237 = vld [vmem:[%s7 + $0xb8] sm:$0xff]
  %v2238 = vld [vmem:[%s7 + $0xc0] sm:$0xff]
  %v2239 = vld [vmem:[%s7 + $0xc8] sm:$0xff]
  %v2240 = vld [vmem:[%s7 + $0xd0] sm:$0xff]
  %v2241 = vld [vmem:[%s7 + $0xd8] sm:$0xff]
  %v2242 = vld [vmem:[%s7 + $0xe0] sm:$0xff]
  %v2243 = vld [vmem:[%s7 + $0xe8] sm:$0xff]
  %v2244 = vld [vmem:[%s7 + $0xf0] sm:$0xff]
  %v2245 = vld [vmem:[%s7 + $0xf8] sm:$0xff]
  %v2246 = vld [vmem:[%s7 + $0x100] sm:$0xff]
  %v2247 = vld [vmem:[%s7 + $0x108] sm:$0xff]
  %v2248 = vld [vmem:[%s7 + $0x110] sm:$0xff]
  %v2249 = vld [vmem:[%s7 + $0x118] sm:$0xff]
  %v2250 = vld [vmem:[%s7 + $0x120] sm:$0xff]
  %v2251 = vld [vmem:[%s7 + $0x128] sm:$0xff]
  %v2252 = vld [vmem:[%s7 + $0x130] sm:$0xff]
  %v2253 = vld [vmem:[%s7 + $0x138] sm:$0xff]
  %v2254 = vld [vmem:[%s7 + $0x140] sm:$0xff]
  %v2255 = vld [vmem:[%s7 + $0x148] sm:$0xff]
  %v2256 = vld [vmem:[%s7 + $0x150] sm:$0xff]
  %v2257 = vld [vmem:[%s7 + $0x158] sm:$0xff]
  %v2258 = vld [vmem:[%s7 + $0x160] sm:$0xff]
  %v2259 = vld [vmem:[%s7 + $0x168] sm:$0xff]
  %v2260 = vld [vmem:[%s7 + $0x170] sm:$0xff]
  %v2261 = vld [vmem:[%s7 + $0x178] sm:$0xff]
  %v2262 = vld [vmem:[%s7 + $0x180] sm:$0xff]
  %v2263 = vld [vmem:[%s7 + $0x188] sm:$0xff]
  %v2264 = vld [vmem:[%s7 + $0x190] sm:$0xff]
  %v2265 = vld [vmem:[%s7 + $0x198] sm:$0xff]
  %v2266 = vld [vmem:[%s7 + $0x1a0] sm:$0xff]
  %v2267 = vld [vmem:[%s7 + $0x1a8] sm:$0xff]
  %v2268 = vld [vmem:[%s7 + $0x1b0] sm:$0xff]
  %v2269 = vld [vmem:[%s7 + $0x1b8] sm:$0xff]
  %v2270 = vld [vmem:[%s7 + $0x1c0] sm:$0xff]
  %v2271 = vld [vmem:[%s7 + $0x1c8] sm:$0xff]
  %v2272 = vld [vmem:[%s7 + $0x1d0] sm:$0xff]
  %v2273 = vld [vmem:[%s7 + $0x1d8] sm:$0xff]
  %v2274 = vld [vmem:[%s7 + $0x1e0] sm:$0xff]
  %v2275 = vld [vmem:[%s7 + $0x1e8] sm:$0xff]
  %v2276 = vld [vmem:[%s7 + $0x1f0] sm:$0xff]
  %v2277 = vld [vmem:[%s7 + $0x1f8] sm:$0xff]
  %v2278 = vld [vmem:[%s7 + $0x200] sm:$0xff]
  %v2279 = vld [vmem:[%s7 + $0x208] sm:$0xff]
  %v2280 = vld [vmem:[%s7 + $0x210] sm:$0xff]
  %v2281 = vld [vmem:[%s7 + $0x218] sm:$0xff]
  %v2282 = vld [vmem:[%s7 + $0x220] sm:$0xff]
  %v2283 = vld [vmem:[%s7 + $0x228] sm:$0xff]
  %v2284 = vld [vmem:[%s7 + $0x230] sm:$0xff]
  %v2285 = vld [vmem:[%s7 + $0x238] sm:$0xff]
  %v2286 = vld [vmem:[%s7 + $0x240] sm:$0xff]
  %v2287 = vld [vmem:[%s7 + $0x248] sm:$0xff]
  %v2288 = vld [vmem:[%s7 + $0x250] sm:$0xff]
  %v2289 = vld [vmem:[%s7 + $0x258] sm:$0xff]
  %v2290 = vld [vmem:[%s7 + $0x260] sm:$0xff]
  %v2291 = vld [vmem:[%s7 + $0x268] sm:$0xff]
  %v2292 = vld [vmem:[%s7 + $0x270] sm:$0xff]
  %v2293 = vld [vmem:[%s7 + $0x278] sm:$0xff]
  %v2294 = vld [vmem:[%s7 + $0x280] sm:$0xff]
  %v2295 = vld [vmem:[%s7 + $0x288] sm:$0xff]
  %v2296 = vld [vmem:[%s7 + $0x290] sm:$0xff]
  %v2297 = vld [vmem:[%s7 + $0x298] sm:$0xff]
  %v2298 = vld [vmem:[%s7 + $0x2a0] sm:$0xff]
  %v2299 = vld [vmem:[%s7 + $0x2a8] sm:$0xff]
  %v2300 = vld [vmem:[%s7 + $0x2b0] sm:$0xff]
  %v2301 = vld [vmem:[%s7 + $0x2b8] sm:$0xff]
  %v2302 = vld [vmem:[%s7 + $0x2c0] sm:$0xff]
  %v2303 = vld [vmem:[%s7 + $0x2c8] sm:$0xff]
  %v2304 = vld [vmem:[%s7 + $0x2d0] sm:$0xff]
  %v2305 = vld [vmem:[%s7 + $0x2d8] sm:$0xff]
  %v2306 = vld [vmem:[%s7 + $0x2e0] sm:$0xff]
  %v2307 = vld [vmem:[%s7 + $0x2e8] sm:$0xff]
  %v2308 = vld [vmem:[%s7 + $0x2f0] sm:$0xff]
  %v2309 = vld [vmem:[%s7 + $0x2f8] sm:$0xff]
  %v2310 = vld [vmem:[%s7 + $0x300] sm:$0xff]
  %v2311 = vld [vmem:[%s7 + $0x308] sm:$0xff]
  %v2312 = vld [vmem:[%s7 + $0x310] sm:$0xff]
  %v2313 = vld [vmem:[%s7 + $0x318] sm:$0xff]
  %v2314 = vld [vmem:[%s7 + $0x320] sm:$0xff]
  %v2315 = vld [vmem:[%s7 + $0x328] sm:$0xff]
  %v2316 = vld [vmem:[%s7 + $0x330] sm:$0xff]
  %v2317 = vld [vmem:[%s7 + $0x338] sm:$0xff]
  %v2318 = vld [vmem:[%s7 + $0x340] sm:$0xff]
  %v2319 = vld [vmem:[%s7 + $0x348] sm:$0xff]
  %v2320 = vld [vmem:[%s7 + $0x350] sm:$0xff]
  %v2321 = vld [vmem:[%s7 + $0x358] sm:$0xff]
  %v2322 = vld [vmem:[%s7 + $0x360] sm:$0xff]
  %v2323 = vld [vmem:[%s7 + $0x368] sm:$0xff]
  %v2324 = vld [vmem:[%s7 + $0x370] sm:$0xff]
  %v2325 = vld [vmem:[%s7 + $0x378] sm:$0xff]
  %v2326 = vld [vmem:[%s7 + $0x380] sm:$0xff]
  %v2327 = vld [vmem:[%s7 + $0x388] sm:$0xff]
  %v2328 = vld [vmem:[%s7 + $0x390] sm:$0xff]
  %v2329 = vld [vmem:[%s7 + $0x398] sm:$0xff]
  %v2330 = vld [vmem:[%s7 + $0x3a0] sm:$0xff]
  %v2331 = vld [vmem:[%s7 + $0x3a8] sm:$0xff]
  %v2332 = vld [vmem:[%s7 + $0x3b0] sm:$0xff]
  %v2333 = vld [vmem:[%s7 + $0x3b8] sm:$0xff]
  %v2334 = vld [vmem:[%s7 + $0x3c0] sm:$0xff]
  %v2335 = vld [vmem:[%s7 + $0x3c8] sm:$0xff]
  %v2336 = vld [vmem:[%s7 + $0x3d0] sm:$0xff]
  %v2337 = vld [vmem:[%s7 + $0x3d8] sm:$0xff]
  %v2338 = vld [vmem:[%s7 + $0x3e0] sm:$0xff]
  %v2339 = vld [vmem:[%s7 + $0x3e8] sm:$0xff]
  %v2340 = vld [vmem:[%s7 + $0x3f0] sm:$0xff]
  %v2341 = vld [vmem:[%s7 + $0x3f8] sm:$0xff]
  %v2342 = vld [vmem:[%s8] sm:$0xf]
  %v2344 = vlaneseq
  %v2345 = vshrl.u32 %v2344, 7
  %v2346 = vsub.s32 0, %v2345
  %v2347 = vrot.slane %v2342, %v2346
  %v2348 = vlaneseq
  %v2349 = vshrl.u32 %v2348, 7
  %v2350 = vsub.s32 1, %v2349
  %v2351 = vrot.slane %v2342, %v2350
  %v2352 = vlaneseq
  %v2353 = vshrl.u32 %v2352, 7
  %v2354 = vsub.s32 2, %v2353
  %v2355 = vrot.slane %v2342, %v2354
  %v2356 = vlaneseq
  %v2357 = vshrl.u32 %v2356, 7
  %v2358 = vsub.s32 3, %v2357
  %v2359 = vrot.slane %v2342, %v2358
  %v2492 = vunpack.c.l.b16 %v2214
  %v2493 = vunpack.c.h.b16 %v2214
  %v2494 = vunpack.c.l.b16 %v2215
  %v2495 = vunpack.c.h.b16 %v2215
  %v2496 = vunpack.c.l.b16 %v2216
  %v2497 = vunpack.c.h.b16 %v2216
  %v2498 = vunpack.c.l.b16 %v2217
  %v2499 = vunpack.c.h.b16 %v2217
  %v2500 = vunpack.c.l.b16 %v2218
  %v2501 = vunpack.c.h.b16 %v2218
  %v2502 = vunpack.c.l.b16 %v2219
  %v2503 = vunpack.c.h.b16 %v2219
  %v2504 = vunpack.c.l.b16 %v2220
  %v2505 = vunpack.c.h.b16 %v2220
  %v2506 = vunpack.c.l.b16 %v2221
  %v2507 = vunpack.c.h.b16 %v2221
  %v2508 = vunpack.c.l.b16 %v2222
  %v2509 = vunpack.c.h.b16 %v2222
  %v2510 = vunpack.c.l.b16 %v2223
  %v2511 = vunpack.c.h.b16 %v2223
  %v2512 = vunpack.c.l.b16 %v2224
  %v2513 = vunpack.c.h.b16 %v2224
  %v2514 = vunpack.c.l.b16 %v2225
  %v2515 = vunpack.c.h.b16 %v2225
  %v2516 = vunpack.c.l.b16 %v2226
  %v2517 = vunpack.c.h.b16 %v2226
  %v2518 = vunpack.c.l.b16 %v2227
  %v2519 = vunpack.c.h.b16 %v2227
  %v2520 = vunpack.c.l.b16 %v2228
  %v2521 = vunpack.c.h.b16 %v2228
  %v2522 = vunpack.c.l.b16 %v2229
  %v2523 = vunpack.c.h.b16 %v2229
  %v2524 = vunpack.c.l.b16 %v2230
  %v2525 = vunpack.c.h.b16 %v2230
  %v2526 = vunpack.c.l.b16 %v2231
  %v2527 = vunpack.c.h.b16 %v2231
  %v2528 = vunpack.c.l.b16 %v2232
  %v2529 = vunpack.c.h.b16 %v2232
  %v2530 = vunpack.c.l.b16 %v2233
  %v2531 = vunpack.c.h.b16 %v2233
  %v2532 = vunpack.c.l.b16 %v2234
  %v2533 = vunpack.c.h.b16 %v2234
  %v2534 = vunpack.c.l.b16 %v2235
  %v2535 = vunpack.c.h.b16 %v2235
  %v2536 = vunpack.c.l.b16 %v2236
  %v2537 = vunpack.c.h.b16 %v2236
  %v2538 = vunpack.c.l.b16 %v2237
  %v2539 = vunpack.c.h.b16 %v2237
  %v2540 = vunpack.c.l.b16 %v2238
  %v2541 = vunpack.c.h.b16 %v2238
  %v2542 = vunpack.c.l.b16 %v2239
  %v2543 = vunpack.c.h.b16 %v2239
  %v2544 = vunpack.c.l.b16 %v2240
  %v2545 = vunpack.c.h.b16 %v2240
  %v2546 = vunpack.c.l.b16 %v2241
  %v2547 = vunpack.c.h.b16 %v2241
  %v2548 = vunpack.c.l.b16 %v2242
  %v2549 = vunpack.c.h.b16 %v2242
  %v2550 = vunpack.c.l.b16 %v2243
  %v2551 = vunpack.c.h.b16 %v2243
  %v2552 = vunpack.c.l.b16 %v2244
  %v2553 = vunpack.c.h.b16 %v2244
  %v2554 = vunpack.c.l.b16 %v2245
  %v2555 = vunpack.c.h.b16 %v2245
  %v2556 = vunpack.c.l.b16 %v2246
  %v2557 = vunpack.c.h.b16 %v2246
  %v2558 = vunpack.c.l.b16 %v2247
  %v2559 = vunpack.c.h.b16 %v2247
  %v2560 = vunpack.c.l.b16 %v2248
  %v2561 = vunpack.c.h.b16 %v2248
  %v2562 = vunpack.c.l.b16 %v2249
  %v2563 = vunpack.c.h.b16 %v2249
  %v2564 = vunpack.c.l.b16 %v2250
  %v2565 = vunpack.c.h.b16 %v2250
  %v2566 = vunpack.c.l.b16 %v2251
  %v2567 = vunpack.c.h.b16 %v2251
  %v2568 = vunpack.c.l.b16 %v2252
  %v2569 = vunpack.c.h.b16 %v2252
  %v2570 = vunpack.c.l.b16 %v2253
  %v2571 = vunpack.c.h.b16 %v2253
  %v2572 = vunpack.c.l.b16 %v2254
  %v2573 = vunpack.c.h.b16 %v2254
  %v2574 = vunpack.c.l.b16 %v2255
  %v2575 = vunpack.c.h.b16 %v2255
  %v2576 = vunpack.c.l.b16 %v2256
  %v2577 = vunpack.c.h.b16 %v2256
  %v2578 = vunpack.c.l.b16 %v2257
  %v2579 = vunpack.c.h.b16 %v2257
  %v2580 = vunpack.c.l.b16 %v2258
  %v2581 = vunpack.c.h.b16 %v2258
  %v2582 = vunpack.c.l.b16 %v2259
  %v2583 = vunpack.c.h.b16 %v2259
  %v2584 = vunpack.c.l.b16 %v2260
  %v2585 = vunpack.c.h.b16 %v2260
  %v2586 = vunpack.c.l.b16 %v2261
  %v2587 = vunpack.c.h.b16 %v2261
  %v2588 = vunpack.c.l.b16 %v2262
  %v2589 = vunpack.c.h.b16 %v2262
  %v2590 = vunpack.c.l.b16 %v2263
  %v2591 = vunpack.c.h.b16 %v2263
  %v2592 = vunpack.c.l.b16 %v2264
  %v2593 = vunpack.c.h.b16 %v2264
  %v2594 = vunpack.c.l.b16 %v2265
  %v2595 = vunpack.c.h.b16 %v2265
  %v2596 = vunpack.c.l.b16 %v2266
  %v2597 = vunpack.c.h.b16 %v2266
  %v2598 = vunpack.c.l.b16 %v2267
  %v2599 = vunpack.c.h.b16 %v2267
  %v2600 = vunpack.c.l.b16 %v2268
  %v2601 = vunpack.c.h.b16 %v2268
  %v2602 = vunpack.c.l.b16 %v2269
  %v2603 = vunpack.c.h.b16 %v2269
  %v2604 = vunpack.c.l.b16 %v2270
  %v2605 = vunpack.c.h.b16 %v2270
  %v2606 = vunpack.c.l.b16 %v2271
  %v2607 = vunpack.c.h.b16 %v2271
  %v2608 = vunpack.c.l.b16 %v2272
  %v2609 = vunpack.c.h.b16 %v2272
  %v2610 = vunpack.c.l.b16 %v2273
  %v2611 = vunpack.c.h.b16 %v2273
  %v2612 = vunpack.c.l.b16 %v2274
  %v2613 = vunpack.c.h.b16 %v2274
  %v2614 = vunpack.c.l.b16 %v2275
  %v2615 = vunpack.c.h.b16 %v2275
  %v2616 = vunpack.c.l.b16 %v2276
  %v2617 = vunpack.c.h.b16 %v2276
  %v2618 = vunpack.c.l.b16 %v2277
  %v2619 = vunpack.c.h.b16 %v2277
  %v2620 = vunpack.c.l.b16 %v2278
  %v2621 = vunpack.c.h.b16 %v2278
  %v2622 = vunpack.c.l.b16 %v2279
  %v2623 = vunpack.c.h.b16 %v2279
  %v2624 = vunpack.c.l.b16 %v2280
  %v2625 = vunpack.c.h.b16 %v2280
  %v2626 = vunpack.c.l.b16 %v2281
  %v2627 = vunpack.c.h.b16 %v2281
  %v2628 = vunpack.c.l.b16 %v2282
  %v2629 = vunpack.c.h.b16 %v2282
  %v2630 = vunpack.c.l.b16 %v2283
  %v2631 = vunpack.c.h.b16 %v2283
  %v2632 = vunpack.c.l.b16 %v2284
  %v2633 = vunpack.c.h.b16 %v2284
  %v2634 = vunpack.c.l.b16 %v2285
  %v2635 = vunpack.c.h.b16 %v2285
  %v2636 = vunpack.c.l.b16 %v2286
  %v2637 = vunpack.c.h.b16 %v2286
  %v2638 = vunpack.c.l.b16 %v2287
  %v2639 = vunpack.c.h.b16 %v2287
  %v2640 = vunpack.c.l.b16 %v2288
  %v2641 = vunpack.c.h.b16 %v2288
  %v2642 = vunpack.c.l.b16 %v2289
  %v2643 = vunpack.c.h.b16 %v2289
  %v2644 = vunpack.c.l.b16 %v2290
  %v2645 = vunpack.c.h.b16 %v2290
  %v2646 = vunpack.c.l.b16 %v2291
  %v2647 = vunpack.c.h.b16 %v2291
  %v2648 = vunpack.c.l.b16 %v2292
  %v2649 = vunpack.c.h.b16 %v2292
  %v2650 = vunpack.c.l.b16 %v2293
  %v2651 = vunpack.c.h.b16 %v2293
  %v2652 = vunpack.c.l.b16 %v2294
  %v2653 = vunpack.c.h.b16 %v2294
  %v2654 = vunpack.c.l.b16 %v2295
  %v2655 = vunpack.c.h.b16 %v2295
  %v2656 = vunpack.c.l.b16 %v2296
  %v2657 = vunpack.c.h.b16 %v2296
  %v2658 = vunpack.c.l.b16 %v2297
  %v2659 = vunpack.c.h.b16 %v2297
  %v2660 = vunpack.c.l.b16 %v2298
  %v2661 = vunpack.c.h.b16 %v2298
  %v2662 = vunpack.c.l.b16 %v2299
  %v2663 = vunpack.c.h.b16 %v2299
  %v2664 = vunpack.c.l.b16 %v2300
  %v2665 = vunpack.c.h.b16 %v2300
  %v2666 = vunpack.c.l.b16 %v2301
  %v2667 = vunpack.c.h.b16 %v2301
  %v2668 = vunpack.c.l.b16 %v2302
  %v2669 = vunpack.c.h.b16 %v2302
  %v2670 = vunpack.c.l.b16 %v2303
  %v2671 = vunpack.c.h.b16 %v2303
  %v2672 = vunpack.c.l.b16 %v2304
  %v2673 = vunpack.c.h.b16 %v2304
  %v2674 = vunpack.c.l.b16 %v2305
  %v2675 = vunpack.c.h.b16 %v2305
  %v2676 = vunpack.c.l.b16 %v2306
  %v2677 = vunpack.c.h.b16 %v2306
  %v2678 = vunpack.c.l.b16 %v2307
  %v2679 = vunpack.c.h.b16 %v2307
  %v2680 = vunpack.c.l.b16 %v2308
  %v2681 = vunpack.c.h.b16 %v2308
  %v2682 = vunpack.c.l.b16 %v2309
  %v2683 = vunpack.c.h.b16 %v2309
  %v2684 = vunpack.c.l.b16 %v2310
  %v2685 = vunpack.c.h.b16 %v2310
  %v2686 = vunpack.c.l.b16 %v2311
  %v2687 = vunpack.c.h.b16 %v2311
  %v2688 = vunpack.c.l.b16 %v2312
  %v2689 = vunpack.c.h.b16 %v2312
  %v2690 = vunpack.c.l.b16 %v2313
  %v2691 = vunpack.c.h.b16 %v2313
  %v2692 = vunpack.c.l.b16 %v2314
  %v2693 = vunpack.c.h.b16 %v2314
  %v2694 = vunpack.c.l.b16 %v2315
  %v2695 = vunpack.c.h.b16 %v2315
  %v2696 = vunpack.c.l.b16 %v2316
  %v2697 = vunpack.c.h.b16 %v2316
  %v2698 = vunpack.c.l.b16 %v2317
  %v2699 = vunpack.c.h.b16 %v2317
  %v2700 = vunpack.c.l.b16 %v2318
  %v2701 = vunpack.c.h.b16 %v2318
  %v2702 = vunpack.c.l.b16 %v2319
  %v2703 = vunpack.c.h.b16 %v2319
  %v2704 = vunpack.c.l.b16 %v2320
  %v2705 = vunpack.c.h.b16 %v2320
  %v2706 = vunpack.c.l.b16 %v2321
  %v2707 = vunpack.c.h.b16 %v2321
  %v2708 = vunpack.c.l.b16 %v2322
  %v2709 = vunpack.c.h.b16 %v2322
  %v2710 = vunpack.c.l.b16 %v2323
  %v2711 = vunpack.c.h.b16 %v2323
  %v2712 = vunpack.c.l.b16 %v2324
  %v2713 = vunpack.c.h.b16 %v2324
  %v2714 = vunpack.c.l.b16 %v2325
  %v2715 = vunpack.c.h.b16 %v2325
  %v2716 = vunpack.c.l.b16 %v2326
  %v2717 = vunpack.c.h.b16 %v2326
  %v2718 = vunpack.c.l.b16 %v2327
  %v2719 = vunpack.c.h.b16 %v2327
  %v2720 = vunpack.c.l.b16 %v2328
  %v2721 = vunpack.c.h.b16 %v2328
  %v2722 = vunpack.c.l.b16 %v2329
  %v2723 = vunpack.c.h.b16 %v2329
  %v2724 = vunpack.c.l.b16 %v2330
  %v2725 = vunpack.c.h.b16 %v2330
  %v2726 = vunpack.c.l.b16 %v2331
  %v2727 = vunpack.c.h.b16 %v2331
  %v2728 = vunpack.c.l.b16 %v2332
  %v2729 = vunpack.c.h.b16 %v2332
  %v2730 = vunpack.c.l.b16 %v2333
  %v2731 = vunpack.c.h.b16 %v2333
  %v2732 = vunpack.c.l.b16 %v2334
  %v2733 = vunpack.c.h.b16 %v2334
  %v2734 = vunpack.c.l.b16 %v2335
  %v2735 = vunpack.c.h.b16 %v2335
  %v2736 = vunpack.c.l.b16 %v2336
  %v2737 = vunpack.c.h.b16 %v2336
  %v2738 = vunpack.c.l.b16 %v2337
  %v2739 = vunpack.c.h.b16 %v2337
  %v2740 = vunpack.c.l.b16 %v2338
  %v2741 = vunpack.c.h.b16 %v2338
  %v2742 = vunpack.c.l.b16 %v2339
  %v2743 = vunpack.c.h.b16 %v2339
  %v2744 = vunpack.c.l.b16 %v2340
  %v2745 = vunpack.c.h.b16 %v2340
  %v2746 = vunpack.c.l.b16 %v2341
  %v2747 = vunpack.c.h.b16 %v2341
  %v2748 = vpack.c.b16 %v2496, %v2492
  %v2749 = vpack.c.b16 %v2497, %v2493
  %v2750 = vpack.c.b16 %v2498, %v2494
  %v2751 = vpack.c.b16 %v2499, %v2495
  %v2752 = vpack.c.b16 %v2504, %v2500
  %v2753 = vpack.c.b16 %v2505, %v2501
  %v2754 = vpack.c.b16 %v2506, %v2502
  %v2755 = vpack.c.b16 %v2507, %v2503
  %v2756 = vpack.c.b16 %v2512, %v2508
  %v2757 = vpack.c.b16 %v2513, %v2509
  %v2758 = vpack.c.b16 %v2514, %v2510
  %v2759 = vpack.c.b16 %v2515, %v2511
  %v2760 = vpack.c.b16 %v2520, %v2516
  %v2761 = vpack.c.b16 %v2521, %v2517
  %v2762 = vpack.c.b16 %v2522, %v2518
  %v2763 = vpack.c.b16 %v2523, %v2519
  %v2764 = vpack.c.b16 %v2528, %v2524
  %v2765 = vpack.c.b16 %v2529, %v2525
  %v2766 = vpack.c.b16 %v2530, %v2526
  %v2767 = vpack.c.b16 %v2531, %v2527
  %v2768 = vpack.c.b16 %v2536, %v2532
  %v2769 = vpack.c.b16 %v2537, %v2533
  %v2770 = vpack.c.b16 %v2538, %v2534
  %v2771 = vpack.c.b16 %v2539, %v2535
  %v2772 = vpack.c.b16 %v2544, %v2540
  %v2773 = vpack.c.b16 %v2545, %v2541
  %v2774 = vpack.c.b16 %v2546, %v2542
  %v2775 = vpack.c.b16 %v2547, %v2543
  %v2776 = vpack.c.b16 %v2552, %v2548
  %v2777 = vpack.c.b16 %v2553, %v2549
  %v2778 = vpack.c.b16 %v2554, %v2550
  %v2779 = vpack.c.b16 %v2555, %v2551
  %v2780 = vpack.c.b16 %v2560, %v2556
  %v2781 = vpack.c.b16 %v2561, %v2557
  %v2782 = vpack.c.b16 %v2562, %v2558
  %v2783 = vpack.c.b16 %v2563, %v2559
  %v2784 = vpack.c.b16 %v2568, %v2564
  %v2785 = vpack.c.b16 %v2569, %v2565
  %v2786 = vpack.c.b16 %v2570, %v2566
  %v2787 = vpack.c.b16 %v2571, %v2567
  %v2788 = vpack.c.b16 %v2576, %v2572
  %v2789 = vpack.c.b16 %v2577, %v2573
  %v2790 = vpack.c.b16 %v2578, %v2574
  %v2791 = vpack.c.b16 %v2579, %v2575
  %v2792 = vpack.c.b16 %v2584, %v2580
  %v2793 = vpack.c.b16 %v2585, %v2581
  %v2794 = vpack.c.b16 %v2586, %v2582
  %v2795 = vpack.c.b16 %v2587, %v2583
  %v2796 = vpack.c.b16 %v2592, %v2588
  %v2797 = vpack.c.b16 %v2593, %v2589
  %v2798 = vpack.c.b16 %v2594, %v2590
  %v2799 = vpack.c.b16 %v2595, %v2591
  %v2800 = vpack.c.b16 %v2600, %v2596
  %v2801 = vpack.c.b16 %v2601, %v2597
  %v2802 = vpack.c.b16 %v2602, %v2598
  %v2803 = vpack.c.b16 %v2603, %v2599
  %v2804 = vpack.c.b16 %v2608, %v2604
  %v2805 = vpack.c.b16 %v2609, %v2605
  %v2806 = vpack.c.b16 %v2610, %v2606
  %v2807 = vpack.c.b16 %v2611, %v2607
  %v2808 = vpack.c.b16 %v2616, %v2612
  %v2809 = vpack.c.b16 %v2617, %v2613
  %v2810 = vpack.c.b16 %v2618, %v2614
  %v2811 = vpack.c.b16 %v2619, %v2615
  %v2812 = vpack.c.b16 %v2624, %v2620
  %v2813 = vpack.c.b16 %v2625, %v2621
  %v2814 = vpack.c.b16 %v2626, %v2622
  %v2815 = vpack.c.b16 %v2627, %v2623
  %v2816 = vpack.c.b16 %v2632, %v2628
  %v2817 = vpack.c.b16 %v2633, %v2629
  %v2818 = vpack.c.b16 %v2634, %v2630
  %v2819 = vpack.c.b16 %v2635, %v2631
  %v2820 = vpack.c.b16 %v2640, %v2636
  %v2821 = vpack.c.b16 %v2641, %v2637
  %v2822 = vpack.c.b16 %v2642, %v2638
  %v2823 = vpack.c.b16 %v2643, %v2639
  %v2824 = vpack.c.b16 %v2648, %v2644
  %v2825 = vpack.c.b16 %v2649, %v2645
  %v2826 = vpack.c.b16 %v2650, %v2646
  %v2827 = vpack.c.b16 %v2651, %v2647
  %v2828 = vpack.c.b16 %v2656, %v2652
  %v2829 = vpack.c.b16 %v2657, %v2653
  %v2830 = vpack.c.b16 %v2658, %v2654
  %v2831 = vpack.c.b16 %v2659, %v2655
  %v2832 = vpack.c.b16 %v2664, %v2660
  %v2833 = vpack.c.b16 %v2665, %v2661
  %v2834 = vpack.c.b16 %v2666, %v2662
  %v2835 = vpack.c.b16 %v2667, %v2663
  %v2836 = vpack.c.b16 %v2672, %v2668
  %v2837 = vpack.c.b16 %v2673, %v2669
  %v2838 = vpack.c.b16 %v2674, %v2670
  %v2839 = vpack.c.b16 %v2675, %v2671
  %v2840 = vpack.c.b16 %v2680, %v2676
  %v2841 = vpack.c.b16 %v2681, %v2677
  %v2842 = vpack.c.b16 %v2682, %v2678
  %v2843 = vpack.c.b16 %v2683, %v2679
  %v2844 = vpack.c.b16 %v2688, %v2684
  %v2845 = vpack.c.b16 %v2689, %v2685
  %v2846 = vpack.c.b16 %v2690, %v2686
  %v2847 = vpack.c.b16 %v2691, %v2687
  %v2848 = vpack.c.b16 %v2696, %v2692
  %v2849 = vpack.c.b16 %v2697, %v2693
  %v2850 = vpack.c.b16 %v2698, %v2694
  %v2851 = vpack.c.b16 %v2699, %v2695
  %v2852 = vpack.c.b16 %v2704, %v2700
  %v2853 = vpack.c.b16 %v2705, %v2701
  %v2854 = vpack.c.b16 %v2706, %v2702
  %v2855 = vpack.c.b16 %v2707, %v2703
  %v2856 = vpack.c.b16 %v2712, %v2708
  %v2857 = vpack.c.b16 %v2713, %v2709
  %v2858 = vpack.c.b16 %v2714, %v2710
  %v2859 = vpack.c.b16 %v2715, %v2711
  %v2860 = vpack.c.b16 %v2720, %v2716
  %v2861 = vpack.c.b16 %v2721, %v2717
  %v2862 = vpack.c.b16 %v2722, %v2718
  %v2863 = vpack.c.b16 %v2723, %v2719
  %v2864 = vpack.c.b16 %v2728, %v2724
  %v2865 = vpack.c.b16 %v2729, %v2725
  %v2866 = vpack.c.b16 %v2730, %v2726
  %v2867 = vpack.c.b16 %v2731, %v2727
  %v2868 = vpack.c.b16 %v2736, %v2732
  %v2869 = vpack.c.b16 %v2737, %v2733
  %v2870 = vpack.c.b16 %v2738, %v2734
  %v2871 = vpack.c.b16 %v2739, %v2735
  %v2872 = vpack.c.b16 %v2744, %v2740
  %v2873 = vpack.c.b16 %v2745, %v2741
  %v2874 = vpack.c.b16 %v2746, %v2742
  %v2875 = vpack.c.b16 %v2747, %v2743
  %3004 = vmatprep.subr.bf16.mxu0 %v2749
  %3005 = vmatpush1.bf16.msra.mxu0 %v2748
  %3006 = vmatprep.subr.bf16.mxu0 %v2753
  %3007 = vmatpush1.bf16.msra.mxu0 %v2752
  %3008 = vmatprep.subr.bf16.mxu0 %v2757
  %3009 = vmatpush1.bf16.msra.mxu0 %v2756
  %3010 = vmatprep.subr.bf16.mxu0 %v2761
  %3011 = vmatpush1.bf16.msra.mxu0 %v2760
  %3012 = vmatprep.subr.bf16.mxu0 %v2765
  %3013 = vmatpush1.bf16.msra.mxu0 %v2764
  %3014 = vmatprep.subr.bf16.mxu0 %v2769
  %3015 = vmatpush1.bf16.msra.mxu0 %v2768
  %3016 = vmatprep.subr.bf16.mxu0 %v2773
  %3017 = vmatpush1.bf16.msra.mxu0 %v2772
  %3018 = vmatprep.subr.bf16.mxu0 %v2777
  %3019 = vmatpush1.bf16.msra.mxu0 %v2776
  %3020 = vmatprep.subr.bf16.mxu0 %v2781
  %3021 = vmatpush1.bf16.msra.mxu0 %v2780
  %3022 = vmatprep.subr.bf16.mxu0 %v2785
  %3023 = vmatpush1.bf16.msra.mxu0 %v2784
  %3024 = vmatprep.subr.bf16.mxu0 %v2789
  %3025 = vmatpush1.bf16.msra.mxu0 %v2788
  %3026 = vmatprep.subr.bf16.mxu0 %v2793
  %3027 = vmatpush1.bf16.msra.mxu0 %v2792
  %3028 = vmatprep.subr.bf16.mxu0 %v2797
  %3029 = vmatpush1.bf16.msra.mxu0 %v2796
  %3030 = vmatprep.subr.bf16.mxu0 %v2801
  %3031 = vmatpush1.bf16.msra.mxu0 %v2800
  %3032 = vmatprep.subr.bf16.mxu0 %v2805
  %3033 = vmatpush1.bf16.msra.mxu0 %v2804
  %3034 = vmatprep.subr.bf16.mxu0 %v2809
  %3035 = vmatpush1.bf16.msra.mxu0 %v2808
  %3036 = vmatprep.mubr.bf16.mxu0 %v2211
  %3037 = vmatmul.mubr.bf16.gmra.mrb[0].mxu0 %v2210
  %v3038 = vpop.f32.mrb[0].mxu0
  %v3039 = vadd.f32 %v2347, %v3038
  %v3040 = vpop.f32.mrb[0].mxu0
  %v3041 = vadd.f32 %v2351, %v3040
  %v3042 = vpop.f32.mrb[0].mxu0
  %v3043 = vadd.f32 %v2347, %v3042
  %v3044 = vpop.f32.mrb[0].mxu0
  %v3045 = vadd.f32 %v2351, %v3044
  %3046 = vdwg.mxu0
  %3047 = vmatprep.subr.bf16.mxu0 %v2813
  %3048 = vmatpush1.bf16.msra.mxu0 %v2812
  %3049 = vmatprep.subr.bf16.mxu0 %v2817
  %3050 = vmatpush1.bf16.msra.mxu0 %v2816
  %3051 = vmatprep.subr.bf16.mxu0 %v2821
  %3052 = vmatpush1.bf16.msra.mxu0 %v2820
  %3053 = vmatprep.subr.bf16.mxu0 %v2825
  %3054 = vmatpush1.bf16.msra.mxu0 %v2824
  %3055 = vmatprep.subr.bf16.mxu0 %v2829
  %3056 = vmatpush1.bf16.msra.mxu0 %v2828
  %3057 = vmatprep.subr.bf16.mxu0 %v2833
  %3058 = vmatpush1.bf16.msra.mxu0 %v2832
  %3059 = vmatprep.subr.bf16.mxu0 %v2837
  %3060 = vmatpush1.bf16.msra.mxu0 %v2836
  %3061 = vmatprep.subr.bf16.mxu0 %v2841
  %3062 = vmatpush1.bf16.msra.mxu0 %v2840
  %3063 = vmatprep.subr.bf16.mxu0 %v2845
  %3064 = vmatpush1.bf16.msra.mxu0 %v2844
  %3065 = vmatprep.subr.bf16.mxu0 %v2849
  %3066 = vmatpush1.bf16.msra.mxu0 %v2848
  %3067 = vmatprep.subr.bf16.mxu0 %v2853
  %3068 = vmatpush1.bf16.msra.mxu0 %v2852
  %3069 = vmatprep.subr.bf16.mxu0 %v2857
  %3070 = vmatpush1.bf16.msra.mxu0 %v2856
  %3071 = vmatprep.subr.bf16.mxu0 %v2861
  %3072 = vmatpush1.bf16.msra.mxu0 %v2860
  %3073 = vmatprep.subr.bf16.mxu0 %v2865
  %3074 = vmatpush1.bf16.msra.mxu0 %v2864
  %3075 = vmatprep.subr.bf16.mxu0 %v2869
  %3076 = vmatpush1.bf16.msra.mxu0 %v2868
  %3077 = vmatprep.subr.bf16.mxu0 %v2873
  %3078 = vmatpush1.bf16.msra.mxu0 %v2872
  %3079 = vmatprep.mubr.bf16.mxu0 %v2213
  %3080 = vmatmul.mubr.bf16.gmra.mrb[0].mxu0 %v2212
  %v3081 = vpop.f32.mrb[0].mxu0
  %v3082 = vadd.f32 %v3039, %v3081
  %v3083 = vpop.f32.mrb[0].mxu0
  %v3084 = vadd.f32 %v3041, %v3083
  %v3085 = vpop.f32.mrb[0].mxu0
  %v3086 = vadd.f32 %v3043, %v3085
  %v3087 = vpop.f32.mrb[0].mxu0
  %v3088 = vadd.f32 %v3045, %v3087
  %3089 = vdwg.mxu0
  %3090 = vmatprep.subr.bf16.mxu0 %v2751
  %3091 = vmatpush1.bf16.msra.mxu0 %v2750
  %3092 = vmatprep.subr.bf16.mxu0 %v2755
  %3093 = vmatpush1.bf16.msra.mxu0 %v2754
  %3094 = vmatprep.subr.bf16.mxu0 %v2759
  %3095 = vmatpush1.bf16.msra.mxu0 %v2758
  %3096 = vmatprep.subr.bf16.mxu0 %v2763
  %3097 = vmatpush1.bf16.msra.mxu0 %v2762
  %3098 = vmatprep.subr.bf16.mxu0 %v2767
  %3099 = vmatpush1.bf16.msra.mxu0 %v2766
  %3100 = vmatprep.subr.bf16.mxu0 %v2771
  %3101 = vmatpush1.bf16.msra.mxu0 %v2770
  %3102 = vmatprep.subr.bf16.mxu0 %v2775
  %3103 = vmatpush1.bf16.msra.mxu0 %v2774
  %3104 = vmatprep.subr.bf16.mxu0 %v2779
  %3105 = vmatpush1.bf16.msra.mxu0 %v2778
  %3106 = vmatprep.subr.bf16.mxu0 %v2783
  %3107 = vmatpush1.bf16.msra.mxu0 %v2782
  %3108 = vmatprep.subr.bf16.mxu0 %v2787
  %3109 = vmatpush1.bf16.msra.mxu0 %v2786
  %3110 = vmatprep.subr.bf16.mxu0 %v2791
  %3111 = vmatpush1.bf16.msra.mxu0 %v2790
  %3112 = vmatprep.subr.bf16.mxu0 %v2795
  %3113 = vmatpush1.bf16.msra.mxu0 %v2794
  %3114 = vmatprep.subr.bf16.mxu0 %v2799
  %3115 = vmatpush1.bf16.msra.mxu0 %v2798
  %3116 = vmatprep.subr.bf16.mxu0 %v2803
  %3117 = vmatpush1.bf16.msra.mxu0 %v2802
  %3118 = vmatprep.subr.bf16.mxu0 %v2807
  %3119 = vmatpush1.bf16.msra.mxu0 %v2806
  %3120 = vmatprep.subr.bf16.mxu0 %v2811
  %3121 = vmatpush1.bf16.msra.mxu0 %v2810
  %3122 = vmatprep.mubr.bf16.mxu0 %v2211
  %3123 = vmatmul.mubr.bf16.gmra.mrb[0].mxu0 %v2210
  %v3124 = vpop.f32.mrb[0].mxu0
  %v3125 = vadd.f32 %v2355, %v3124
  %v3126 = vpop.f32.mrb[0].mxu0
  %v3127 = vadd.f32 %v2359, %v3126
  %v3128 = vpop.f32.mrb[0].mxu0
  %v3129 = vadd.f32 %v2355, %v3128
  %v3130 = vpop.f32.mrb[0].mxu0
  %v3131 = vadd.f32 %v2359, %v3130
  %3132 = vdwg.mxu0
  %3133 = vmatprep.subr.bf16.mxu0 %v2815
  %3134 = vmatpush1.bf16.msra.mxu0 %v2814
  %3135 = vmatprep.subr.bf16.mxu0 %v2819
  %3136 = vmatpush1.bf16.msra.mxu0 %v2818
  %3137 = vmatprep.subr.bf16.mxu0 %v2823
  %3138 = vmatpush1.bf16.msra.mxu0 %v2822
  %3139 = vmatprep.subr.bf16.mxu0 %v2827
  %3140 = vmatpush1.bf16.msra.mxu0 %v2826
  %3141 = vmatprep.subr.bf16.mxu0 %v2831
  %3142 = vmatpush1.bf16.msra.mxu0 %v2830
  %3143 = vmatprep.subr.bf16.mxu0 %v2835
  %3144 = vmatpush1.bf16.msra.mxu0 %v2834
  %3145 = vmatprep.subr.bf16.mxu0 %v2839
  %3146 = vmatpush1.bf16.msra.mxu0 %v2838
  %3147 = vmatprep.subr.bf16.mxu0 %v2843
  %3148 = vmatpush1.bf16.msra.mxu0 %v2842
  %3149 = vmatprep.subr.bf16.mxu0 %v2847
  %3150 = vmatpush1.bf16.msra.mxu0 %v2846
  %3151 = vmatprep.subr.bf16.mxu0 %v2851
  %3152 = vmatpush1.bf16.msra.mxu0 %v2850
  %3153 = vmatprep.subr.bf16.mxu0 %v2855
  %3154 = vmatpush1.bf16.msra.mxu0 %v2854
  %3155 = vmatprep.subr.bf16.mxu0 %v2859
  %3156 = vmatpush1.bf16.msra.mxu0 %v2858
  %3157 = vmatprep.subr.bf16.mxu0 %v2863
  %3158 = vmatpush1.bf16.msra.mxu0 %v2862
  %3159 = vmatprep.subr.bf16.mxu0 %v2867
  %3160 = vmatpush1.bf16.msra.mxu0 %v2866
  %3161 = vmatprep.subr.bf16.mxu0 %v2871
  %3162 = vmatpush1.bf16.msra.mxu0 %v2870
  %3163 = vmatprep.subr.bf16.mxu0 %v2875
  %3164 = vmatpush1.bf16.msra.mxu0 %v2874
  %3165 = vmatprep.mubr.bf16.mxu0 %v2213
  %3166 = vmatmul.mubr.bf16.gmra.mrb[0].mxu0 %v2212
  %v3167 = vpop.f32.mrb[0].mxu0
  %v3168 = vadd.f32 %v3125, %v3167
  %v3169 = vpop.f32.mrb[0].mxu0
  %v3170 = vadd.f32 %v3127, %v3169
  %v3171 = vpop.f32.mrb[0].mxu0
  %v3172 = vadd.f32 %v3129, %v3171
  %v3173 = vpop.f32.mrb[0].mxu0
  %v3174 = vadd.f32 %v3131, %v3173
  %3175 = vdwg.mxu0
  %v3176 = vmax.f32 %v3082, 0.0
  %v3177 = vmax.f32 %v3084, 0.0
  %v3178 = vmax.f32 %v3168, 0.0
  %v3179 = vmax.f32 %v3170, 0.0
  %v3180 = vmax.f32 %v3086, 0.0
  %v3181 = vmax.f32 %v3088, 0.0
  %v3182 = vmax.f32 %v3172, 0.0
  %v3183 = vmax.f32 %v3174, 0.0
  %v3184 = vpack.c.bf16 %v3180, %v3176
  %v3185 = vpack.c.bf16 %v3181, %v3177
  %v3186 = vpack.c.bf16 %v3182, %v3178
  %v3187 = vpack.c.bf16 %v3183, %v3179
  %v3188 = vld [vmem:[%s9] sm:$0xff]
  %v3189 = vld [vmem:[%s9 + $0x8] sm:$0xff]
  %v3190 = vld [vmem:[%s9 + $0x10] sm:$0xff]
  %v3191 = vld [vmem:[%s9 + $0x18] sm:$0xff]
  %v3192 = vld [vmem:[%s9 + $0x20] sm:$0xff]
  %v3193 = vld [vmem:[%s9 + $0x28] sm:$0xff]
  %v3194 = vld [vmem:[%s9 + $0x30] sm:$0xff]
  %v3195 = vld [vmem:[%s9 + $0x38] sm:$0xff]
  %v3196 = vld [vmem:[%s9 + $0x40] sm:$0xff]
  %v3197 = vld [vmem:[%s9 + $0x48] sm:$0xff]
  %v3198 = vld [vmem:[%s9 + $0x50] sm:$0xff]
  %v3199 = vld [vmem:[%s9 + $0x58] sm:$0xff]
  %v3200 = vld [vmem:[%s9 + $0x60] sm:$0xff]
  %v3201 = vld [vmem:[%s9 + $0x68] sm:$0xff]
  %v3202 = vld [vmem:[%s9 + $0x70] sm:$0xff]
  %v3203 = vld [vmem:[%s9 + $0x78] sm:$0xff]
  %v3204 = vld [vmem:[%s9 + $0x80] sm:$0xff]
  %v3205 = vld [vmem:[%s9 + $0x88] sm:$0xff]
  %v3206 = vld [vmem:[%s9 + $0x90] sm:$0xff]
  %v3207 = vld [vmem:[%s9 + $0x98] sm:$0xff]
  %v3208 = vld [vmem:[%s9 + $0xa0] sm:$0xff]
  %v3209 = vld [vmem:[%s9 + $0xa8] sm:$0xff]
  %v3210 = vld [vmem:[%s9 + $0xb0] sm:$0xff]
  %v3211 = vld [vmem:[%s9 + $0xb8] sm:$0xff]
  %v3212 = vld [vmem:[%s9 + $0xc0] sm:$0xff]
  %v3213 = vld [vmem:[%s9 + $0xc8] sm:$0xff]
  %v3214 = vld [vmem:[%s9 + $0xd0] sm:$0xff]
  %v3215 = vld [vmem:[%s9 + $0xd8] sm:$0xff]
  %v3216 = vld [vmem:[%s9 + $0xe0] sm:$0xff]
  %v3217 = vld [vmem:[%s9 + $0xe8] sm:$0xff]
  %v3218 = vld [vmem:[%s9 + $0xf0] sm:$0xff]
  %v3219 = vld [vmem:[%s9 + $0xf8] sm:$0xff]
  %v3220 = vld [vmem:[%s9 + $0x100] sm:$0xff]
  %v3221 = vld [vmem:[%s9 + $0x108] sm:$0xff]
  %v3222 = vld [vmem:[%s9 + $0x110] sm:$0xff]
  %v3223 = vld [vmem:[%s9 + $0x118] sm:$0xff]
  %v3224 = vld [vmem:[%s9 + $0x120] sm:$0xff]
  %v3225 = vld [vmem:[%s9 + $0x128] sm:$0xff]
  %v3226 = vld [vmem:[%s9 + $0x130] sm:$0xff]
  %v3227 = vld [vmem:[%s9 + $0x138] sm:$0xff]
  %v3228 = vld [vmem:[%s9 + $0x140] sm:$0xff]
  %v3229 = vld [vmem:[%s9 + $0x148] sm:$0xff]
  %v3230 = vld [vmem:[%s9 + $0x150] sm:$0xff]
  %v3231 = vld [vmem:[%s9 + $0x158] sm:$0xff]
  %v3232 = vld [vmem:[%s9 + $0x160] sm:$0xff]
  %v3233 = vld [vmem:[%s9 + $0x168] sm:$0xff]
  %v3234 = vld [vmem:[%s9 + $0x170] sm:$0xff]
  %v3235 = vld [vmem:[%s9 + $0x178] sm:$0xff]
  %v3236 = vld [vmem:[%s9 + $0x180] sm:$0xff]
  %v3237 = vld [vmem:[%s9 + $0x188] sm:$0xff]
  %v3238 = vld [vmem:[%s9 + $0x190] sm:$0xff]
  %v3239 = vld [vmem:[%s9 + $0x198] sm:$0xff]
  %v3240 = vld [vmem:[%s9 + $0x1a0] sm:$0xff]
  %v3241 = vld [vmem:[%s9 + $0x1a8] sm:$0xff]
  %v3242 = vld [vmem:[%s9 + $0x1b0] sm:$0xff]
  %v3243 = vld [vmem:[%s9 + $0x1b8] sm:$0xff]
  %v3244 = vld [vmem:[%s9 + $0x1c0] sm:$0xff]
  %v3245 = vld [vmem:[%s9 + $0x1c8] sm:$0xff]
  %v3246 = vld [vmem:[%s9 + $0x1d0] sm:$0xff]
  %v3247 = vld [vmem:[%s9 + $0x1d8] sm:$0xff]
  %v3248 = vld [vmem:[%s9 + $0x1e0] sm:$0xff]
  %v3249 = vld [vmem:[%s9 + $0x1e8] sm:$0xff]
  %v3250 = vld [vmem:[%s9 + $0x1f0] sm:$0xff]
  %v3251 = vld [vmem:[%s9 + $0x1f8] sm:$0xff]
  %v3252 = vld [vmem:[%s10] sm:$0x3]
  %v3254 = vlaneseq
  %v3255 = vshrl.u32 %v3254, 7
  %v3256 = vsub.s32 0, %v3255
  %v3257 = vrot.slane %v3252, %v3256
  %v3258 = vlaneseq
  %v3259 = vshrl.u32 %v3258, 7
  %v3260 = vsub.s32 1, %v3259
  %v3261 = vrot.slane %v3252, %v3260
  %v3328 = vunpack.c.l.b16 %v3188
  %v3329 = vunpack.c.h.b16 %v3188
  %v3330 = vunpack.c.l.b16 %v3189
  %v3331 = vunpack.c.h.b16 %v3189
  %v3332 = vunpack.c.l.b16 %v3190
  %v3333 = vunpack.c.h.b16 %v3190
  %v3334 = vunpack.c.l.b16 %v3191
  %v3335 = vunpack.c.h.b16 %v3191
  %v3336 = vunpack.c.l.b16 %v3192
  %v3337 = vunpack.c.h.b16 %v3192
  %v3338 = vunpack.c.l.b16 %v3193
  %v3339 = vunpack.c.h.b16 %v3193
  %v3340 = vunpack.c.l.b16 %v3194
  %v3341 = vunpack.c.h.b16 %v3194
  %v3342 = vunpack.c.l.b16 %v3195
  %v3343 = vunpack.c.h.b16 %v3195
  %v3344 = vunpack.c.l.b16 %v3196
  %v3345 = vunpack.c.h.b16 %v3196
  %v3346 = vunpack.c.l.b16 %v3197
  %v3347 = vunpack.c.h.b16 %v3197
  %v3348 = vunpack.c.l.b16 %v3198
  %v3349 = vunpack.c.h.b16 %v3198
  %v3350 = vunpack.c.l.b16 %v3199
  %v3351 = vunpack.c.h.b16 %v3199
  %v3352 = vunpack.c.l.b16 %v3200
  %v3353 = vunpack.c.h.b16 %v3200
  %v3354 = vunpack.c.l.b16 %v3201
  %v3355 = vunpack.c.h.b16 %v3201
  %v3356 = vunpack.c.l.b16 %v3202
  %v3357 = vunpack.c.h.b16 %v3202
  %v3358 = vunpack.c.l.b16 %v3203
  %v3359 = vunpack.c.h.b16 %v3203
  %v3360 = vunpack.c.l.b16 %v3204
  %v3361 = vunpack.c.h.b16 %v3204
  %v3362 = vunpack.c.l.b16 %v3205
  %v3363 = vunpack.c.h.b16 %v3205
  %v3364 = vunpack.c.l.b16 %v3206
  %v3365 = vunpack.c.h.b16 %v3206
  %v3366 = vunpack.c.l.b16 %v3207
  %v3367 = vunpack.c.h.b16 %v3207
  %v3368 = vunpack.c.l.b16 %v3208
  %v3369 = vunpack.c.h.b16 %v3208
  %v3370 = vunpack.c.l.b16 %v3209
  %v3371 = vunpack.c.h.b16 %v3209
  %v3372 = vunpack.c.l.b16 %v3210
  %v3373 = vunpack.c.h.b16 %v3210
  %v3374 = vunpack.c.l.b16 %v3211
  %v3375 = vunpack.c.h.b16 %v3211
  %v3376 = vunpack.c.l.b16 %v3212
  %v3377 = vunpack.c.h.b16 %v3212
  %v3378 = vunpack.c.l.b16 %v3213
  %v3379 = vunpack.c.h.b16 %v3213
  %v3380 = vunpack.c.l.b16 %v3214
  %v3381 = vunpack.c.h.b16 %v3214
  %v3382 = vunpack.c.l.b16 %v3215
  %v3383 = vunpack.c.h.b16 %v3215
  %v3384 = vunpack.c.l.b16 %v3216
  %v3385 = vunpack.c.h.b16 %v3216
  %v3386 = vunpack.c.l.b16 %v3217
  %v3387 = vunpack.c.h.b16 %v3217
  %v3388 = vunpack.c.l.b16 %v3218
  %v3389 = vunpack.c.h.b16 %v3218
  %v3390 = vunpack.c.l.b16 %v3219
  %v3391 = vunpack.c.h.b16 %v3219
  %v3392 = vunpack.c.l.b16 %v3220
  %v3393 = vunpack.c.h.b16 %v3220
  %v3394 = vunpack.c.l.b16 %v3221
  %v3395 = vunpack.c.h.b16 %v3221
  %v3396 = vunpack.c.l.b16 %v3222
  %v3397 = vunpack.c.h.b16 %v3222
  %v3398 = vunpack.c.l.b16 %v3223
  %v3399 = vunpack.c.h.b16 %v3223
  %v3400 = vunpack.c.l.b16 %v3224
  %v3401 = vunpack.c.h.b16 %v3224
  %v3402 = vunpack.c.l.b16 %v3225
  %v3403 = vunpack.c.h.b16 %v3225
  %v3404 = vunpack.c.l.b16 %v3226
  %v3405 = vunpack.c.h.b16 %v3226
  %v3406 = vunpack.c.l.b16 %v3227
  %v3407 = vunpack.c.h.b16 %v3227
  %v3408 = vunpack.c.l.b16 %v3228
  %v3409 = vunpack.c.h.b16 %v3228
  %v3410 = vunpack.c.l.b16 %v3229
  %v3411 = vunpack.c.h.b16 %v3229
  %v3412 = vunpack.c.l.b16 %v3230
  %v3413 = vunpack.c.h.b16 %v3230
  %v3414 = vunpack.c.l.b16 %v3231
  %v3415 = vunpack.c.h.b16 %v3231
  %v3416 = vunpack.c.l.b16 %v3232
  %v3417 = vunpack.c.h.b16 %v3232
  %v3418 = vunpack.c.l.b16 %v3233
  %v3419 = vunpack.c.h.b16 %v3233
  %v3420 = vunpack.c.l.b16 %v3234
  %v3421 = vunpack.c.h.b16 %v3234
  %v3422 = vunpack.c.l.b16 %v3235
  %v3423 = vunpack.c.h.b16 %v3235
  %v3424 = vunpack.c.l.b16 %v3236
  %v3425 = vunpack.c.h.b16 %v3236
  %v3426 = vunpack.c.l.b16 %v3237
  %v3427 = vunpack.c.h.b16 %v3237
  %v3428 = vunpack.c.l.b16 %v3238
  %v3429 = vunpack.c.h.b16 %v3238
  %v3430 = vunpack.c.l.b16 %v3239
  %v3431 = vunpack.c.h.b16 %v3239
  %v3432 = vunpack.c.l.b16 %v3240
  %v3433 = vunpack.c.h.b16 %v3240
  %v3434 = vunpack.c.l.b16 %v3241
  %v3435 = vunpack.c.h.b16 %v3241
  %v3436 = vunpack.c.l.b16 %v3242
  %v3437 = vunpack.c.h.b16 %v3242
  %v3438 = vunpack.c.l.b16 %v3243
  %v3439 = vunpack.c.h.b16 %v3243
  %v3440 = vunpack.c.l.b16 %v3244
  %v3441 = vunpack.c.h.b16 %v3244
  %v3442 = vunpack.c.l.b16 %v3245
  %v3443 = vunpack.c.h.b16 %v3245
  %v3444 = vunpack.c.l.b16 %v3246
  %v3445 = vunpack.c.h.b16 %v3246
  %v3446 = vunpack.c.l.b16 %v3247
  %v3447 = vunpack.c.h.b16 %v3247
  %v3448 = vunpack.c.l.b16 %v3248
  %v3449 = vunpack.c.h.b16 %v3248
  %v3450 = vunpack.c.l.b16 %v3249
  %v3451 = vunpack.c.h.b16 %v3249
  %v3452 = vunpack.c.l.b16 %v3250
  %v3453 = vunpack.c.h.b16 %v3250
  %v3454 = vunpack.c.l.b16 %v3251
  %v3455 = vunpack.c.h.b16 %v3251
  %v3456 = vpack.c.b16 %v3330, %v3328
  %v3457 = vpack.c.b16 %v3331, %v3329
  %v3458 = vpack.c.b16 %v3334, %v3332
  %v3459 = vpack.c.b16 %v3335, %v3333
  %v3460 = vpack.c.b16 %v3338, %v3336
  %v3461 = vpack.c.b16 %v3339, %v3337
  %v3462 = vpack.c.b16 %v3342, %v3340
  %v3463 = vpack.c.b16 %v3343, %v3341
  %v3464 = vpack.c.b16 %v3346, %v3344
  %v3465 = vpack.c.b16 %v3347, %v3345
  %v3466 = vpack.c.b16 %v3350, %v3348
  %v3467 = vpack.c.b16 %v3351, %v3349
  %v3468 = vpack.c.b16 %v3354, %v3352
  %v3469 = vpack.c.b16 %v3355, %v3353
  %v3470 = vpack.c.b16 %v3358, %v3356
  %v3471 = vpack.c.b16 %v3359, %v3357
  %v3472 = vpack.c.b16 %v3362, %v3360
  %v3473 = vpack.c.b16 %v3363, %v3361
  %v3474 = vpack.c.b16 %v3366, %v3364
  %v3475 = vpack.c.b16 %v3367, %v3365
  %v3476 = vpack.c.b16 %v3370, %v3368
  %v3477 = vpack.c.b16 %v3371, %v3369
  %v3478 = vpack.c.b16 %v3374, %v3372
  %v3479 = vpack.c.b16 %v3375, %v3373
  %v3480 = vpack.c.b16 %v3378, %v3376
  %v3481 = vpack.c.b16 %v3379, %v3377
  %v3482 = vpack.c.b16 %v3382, %v3380
  %v3483 = vpack.c.b16 %v3383, %v3381
  %v3484 = vpack.c.b16 %v3386, %v3384
  %v3485 = vpack.c.b16 %v3387, %v3385
  %v3486 = vpack.c.b16 %v3390, %v3388
  %v3487 = vpack.c.b16 %v3391, %v3389
  %v3488 = vpack.c.b16 %v3394, %v3392
  %v3489 = vpack.c.b16 %v3395, %v3393
  %v3490 = vpack.c.b16 %v3398, %v3396
  %v3491 = vpack.c.b16 %v3399, %v3397
  %v3492 = vpack.c.b16 %v3402, %v3400
  %v3493 = vpack.c.b16 %v3403, %v3401
  %v3494 = vpack.c.b16 %v3406, %v3404
  %v3495 = vpack.c.b16 %v3407, %v3405
  %v3496 = vpack.c.b16 %v3410, %v3408
  %v3497 = vpack.c.b16 %v3411, %v3409
  %v3498 = vpack.c.b16 %v3414, %v3412
  %v3499 = vpack.c.b16 %v3415, %v3413
  %v3500 = vpack.c.b16 %v3418, %v3416
  %v3501 = vpack.c.b16 %v3419, %v3417
  %v3502 = vpack.c.b16 %v3422, %v3420
  %v3503 = vpack.c.b16 %v3423, %v3421
  %v3504 = vpack.c.b16 %v3426, %v3424
  %v3505 = vpack.c.b16 %v3427, %v3425
  %v3506 = vpack.c.b16 %v3430, %v3428
  %v3507 = vpack.c.b16 %v3431, %v3429
  %v3508 = vpack.c.b16 %v3434, %v3432
  %v3509 = vpack.c.b16 %v3435, %v3433
  %v3510 = vpack.c.b16 %v3438, %v3436
  %v3511 = vpack.c.b16 %v3439, %v3437
  %v3512 = vpack.c.b16 %v3442, %v3440
  %v3513 = vpack.c.b16 %v3443, %v3441
  %v3514 = vpack.c.b16 %v3446, %v3444
  %v3515 = vpack.c.b16 %v3447, %v3445
  %v3516 = vpack.c.b16 %v3450, %v3448
  %v3517 = vpack.c.b16 %v3451, %v3449
  %v3518 = vpack.c.b16 %v3454, %v3452
  %v3519 = vpack.c.b16 %v3455, %v3453
  %3584 = vmatprep.subr.bf16.mxu0 %v3457
  %3585 = vmatpush1.bf16.msra.mxu0 %v3456
  %3586 = vmatprep.subr.bf16.mxu0 %v3459
  %3587 = vmatpush1.bf16.msra.mxu0 %v3458
  %3588 = vmatprep.subr.bf16.mxu0 %v3461
  %3589 = vmatpush1.bf16.msra.mxu0 %v3460
  %3590 = vmatprep.subr.bf16.mxu0 %v3463
  %3591 = vmatpush1.bf16.msra.mxu0 %v3462
  %3592 = vmatprep.subr.bf16.mxu0 %v3465
  %3593 = vmatpush1.bf16.msra.mxu0 %v3464
  %3594 = vmatprep.subr.bf16.mxu0 %v3467
  %3595 = vmatpush1.bf16.msra.mxu0 %v3466
  %3596 = vmatprep.subr.bf16.mxu0 %v3469
  %3597 = vmatpush1.bf16.msra.mxu0 %v3468
  %3598 = vmatprep.subr.bf16.mxu0 %v3471
  %3599 = vmatpush1.bf16.msra.mxu0 %v3470
  %3600 = vmatprep.subr.bf16.mxu0 %v3473
  %3601 = vmatpush1.bf16.msra.mxu0 %v3472
  %3602 = vmatprep.subr.bf16.mxu0 %v3475
  %3603 = vmatpush1.bf16.msra.mxu0 %v3474
  %3604 = vmatprep.subr.bf16.mxu0 %v3477
  %3605 = vmatpush1.bf16.msra.mxu0 %v3476
  %3606 = vmatprep.subr.bf16.mxu0 %v3479
  %3607 = vmatpush1.bf16.msra.mxu0 %v3478
  %3608 = vmatprep.subr.bf16.mxu0 %v3481
  %3609 = vmatpush1.bf16.msra.mxu0 %v3480
  %3610 = vmatprep.subr.bf16.mxu0 %v3483
  %3611 = vmatpush1.bf16.msra.mxu0 %v3482
  %3612 = vmatprep.subr.bf16.mxu0 %v3485
  %3613 = vmatpush1.bf16.msra.mxu0 %v3484
  %3614 = vmatprep.subr.bf16.mxu0 %v3487
  %3615 = vmatpush1.bf16.msra.mxu0 %v3486
  %3616 = vmatprep.mubr.bf16.mxu0 %v3185
  %3617 = vmatmul.mubr.bf16.gmra.mrb[0].mxu0 %v3184
  %v3618 = vpop.f32.mrb[0].mxu0
  %v3619 = vadd.f32 %v3257, %v3618
  %v3620 = vpop.f32.mrb[0].mxu0
  %v3621 = vadd.f32 %v3261, %v3620
  %v3622 = vpop.f32.mrb[0].mxu0
  %v3623 = vadd.f32 %v3257, %v3622
  %v3624 = vpop.f32.mrb[0].mxu0
  %v3625 = vadd.f32 %v3261, %v3624
  %3626 = vdwg.mxu0
  %3627 = vmatprep.subr.bf16.mxu0 %v3489
  %3628 = vmatpush1.bf16.msra.mxu0 %v3488
  %3629 = vmatprep.subr.bf16.mxu0 %v3491
  %3630 = vmatpush1.bf16.msra.mxu0 %v3490
  %3631 = vmatprep.subr.bf16.mxu0 %v3493
  %3632 = vmatpush1.bf16.msra.mxu0 %v3492
  %3633 = vmatprep.subr.bf16.mxu0 %v3495
  %3634 = vmatpush1.bf16.msra.mxu0 %v3494
  %3635 = vmatprep.subr.bf16.mxu0 %v3497
  %3636 = vmatpush1.bf16.msra.mxu0 %v3496
  %3637 = vmatprep.subr.bf16.mxu0 %v3499
  %3638 = vmatpush1.bf16.msra.mxu0 %v3498
  %3639 = vmatprep.subr.bf16.mxu0 %v3501
  %3640 = vmatpush1.bf16.msra.mxu0 %v3500
  %3641 = vmatprep.subr.bf16.mxu0 %v3503
  %3642 = vmatpush1.bf16.msra.mxu0 %v3502
  %3643 = vmatprep.subr.bf16.mxu0 %v3505
  %3644 = vmatpush1.bf16.msra.mxu0 %v3504
  %3645 = vmatprep.subr.bf16.mxu0 %v3507
  %3646 = vmatpush1.bf16.msra.mxu0 %v3506
  %3647 = vmatprep.subr.bf16.mxu0 %v3509
  %3648 = vmatpush1.bf16.msra.mxu0 %v3508
  %3649 = vmatprep.subr.bf16.mxu0 %v3511
  %3650 = vmatpush1.bf16.msra.mxu0 %v3510
  %3651 = vmatprep.subr.bf16.mxu0 %v3513
  %3652 = vmatpush1.bf16.msra.mxu0 %v3512
  %3653 = vmatprep.subr.bf16.mxu0 %v3515
  %3654 = vmatpush1.bf16.msra.mxu0 %v3514
  %3655 = vmatprep.subr.bf16.mxu0 %v3517
  %3656 = vmatpush1.bf16.msra.mxu0 %v3516
  %3657 = vmatprep.subr.bf16.mxu0 %v3519
  %3658 = vmatpush1.bf16.msra.mxu0 %v3518
  %3659 = vmatprep.mubr.bf16.mxu0 %v3187
  %3660 = vmatmul.mubr.bf16.gmra.mrb[0].mxu0 %v3186
  %v3661 = vpop.f32.mrb[0].mxu0
  %v3662 = vadd.f32 %v3619, %v3661
  %v3663 = vpop.f32.mrb[0].mxu0
  %v3664 = vadd.f32 %v3621, %v3663
  %v3665 = vpop.f32.mrb[0].mxu0
  %v3666 = vadd.f32 %v3623, %v3665
  %v3667 = vpop.f32.mrb[0].mxu0
  %v3668 = vadd.f32 %v3625, %v3667
  %3669 = vdwg.mxu0
  %v3670 = vxor.u32 %v3662, 2147483648
  %v3671 = vxor.u32 %v3666, 2147483648
  %v3672 = vmul.f32 %v3670, 1.442695
  %v3673 = vpow.pop %v3672
  %v3674 = vmul.f32 %v3671, 1.442695
  %v3675 = vpow.pop %v3674
  %v3676 = vadd.f32 %v3673, 1.0
  %v3677 = vadd.f32 %v3675, 1.0
  %v3678 = vrcp.pop %v3676
  %v3679 = vmul.f32 1.0, %v3678
  %v3680 = vrcp.pop %v3677
  %v3681 = vmul.f32 1.0, %v3680
  %v3682 = vmul.f32 %v3679, 6.2831855
  %v3683 = vmul.f32 %v3681, 6.2831855
  %v3684 = vand.u32 2147483647, %v3682
  %vm3685 = vcmp.le.f32.partialorder %v3684, 0.7853982
  %vm3686 = vcmp.lt.s32.totalorder %v3682, 0
  %v3687 = vand.u32 %v3682, 2139095040
  %v3688 = vshrl.u32 %v3687, 23
  %v3689 = vsub.s32 %v3688, 127
  %v3690 = vand.u32 2147483647, %v3682
  %v3691 = vand.u32 %v3690, 8388607
  %v3692 = vor.u32 %v3691, 8388608
  %v3693 = vsub.s32 0, %v3692
  %v3694 = vadd.s32 %v3689, 1
  %vm3695 = vcmp.gt.s32.totalorder %v3694, 0
  %v3696 = vsel %vm3695, %v3694, 0
  %v3697 = vshrl.u32 %v3696, 5
  %v3698 = vand.u32 %v3696, 31
  %v3699 = vsub.s32 32, %v3698
  %v3700 = vshrl.u32 683565275, %v3699
  %v3701 = vshll.u32 683565275, %v3698
  %v3702 = vshrl.u32 2475754826, %v3699
  %v3703 = vor.u32 %v3701, %v3702
  %v3704 = vshll.u32 2475754826, %v3698
  %v3705 = vshrl.u32 2131351028, %v3699
  %v3706 = vor.u32 %v3704, %v3705
  %v3707 = vshll.u32 2131351028, %v3698
  %v3708 = vshrl.u32 2102212464, %v3699
  %v3709 = vor.u32 %v3707, %v3708
  %v3710 = vshll.u32 2102212464, %v3698
  %v3711 = vshrl.u32 920167782, %v3699
  %v3712 = vor.u32 %v3710, %v3711
  %v3713 = vshll.u32 920167782, %v3698
  %v3714 = vshrl.u32 1326507024, %v3699
  %v3715 = vor.u32 %v3713, %v3714
  %vm3716 = vcmp.lt.s32.totalorder %v3697, 1
  %vm3717 = vcmp.lt.s32.totalorder %v3697, 2
  %vm3718 = vcmp.lt.s32.totalorder %v3697, 3
  %vm3719 = vcmp.lt.s32.totalorder %v3697, 4
  %v3720 = vsel %vm3716, %v3700, %v3703
  %v3721 = vsel %vm3719, %v3709, 2102212464
  %v3722 = vsel %vm3718, %v3706, %v3721
  %v3723 = vsel %vm3717, %v3720, %v3722
  %v3724 = vsel %vm3716, %v3703, %v3706
  %v3725 = vsel %vm3719, %v3712, 920167782
  %v3726 = vsel %vm3718, %v3709, %v3725
  %v3727 = vsel %vm3717, %v3724, %v3726
  %v3728 = vsel %vm3716, %v3706, %v3709
  %v3729 = vsel %vm3719, %v3715, 1326507024
  %v3730 = vsel %vm3718, %v3712, %v3729
  %v3731 = vsel %vm3717, %v3728, %v3730
  %v3732 = vshll.u32 %v3692, 8
  %v3733 = vmul.u32.u64.compose %v3732, %v3731
  %v3734 = vextract.low.u32 %v3733
  %v3735 = vextract.high.u32 %v3733
  %v3736 = vmul.u32.u64.compose %v3732, %v3727
  %v3737 = vextract.low.u32 %v3736
  %v3738 = vextract.high.u32 %v3736
  %v3739 = vmul.u32 %v3732, %v3723
  %v3740 = vadd.s32 %v3735, %v3737
  %vm3741 = vc.u32 %v3735, %v3737
  %v3742 = vadd.s32 %v3738, 1
  %v3743 = vsel %vm3741, %v3742, %v3738
  %v3744 = vadd.s32 %v3739, %v3743
  %v3745 = vadd.s32 %v3744, 536870912
  %v3746 = vshrl.u32 %v3745, 30
  %v3747 = vshll.u32 %v3746, 30
  %v3748 = vsub.s32 %v3744, %v3747
  %vm3749 = vcmp.lt.s32.totalorder %v3748, 0
  %v3750 = vsub.s32 0, %v3748
  %v3751 = vsel %vm3749, %v3750, %v3748
  %v3752 = vclz %v3751
  %v3753 = vsub.s32 %v3752, 2
  %vm3754 = vcmp.gt.s32.totalorder 0, %v3753
  %v3755 = vsel %vm3754, 0, %v3753
  %v3756 = vsub.s32 32, %v3755
  %v3757 = vshll.u32 %v3748, %v3755
  %v3758 = vshrl.u32 %v3740, %v3756
  %v3759 = vor.u32 %v3757, %v3758
  %v3760 = vsub.s32 4294967266, %v3755
  %v3761 = vadd.s32 %v3760, 127
  %v3762 = vshll.u32 %v3761, 23
  %v3763 = vor.u32 4788187, %v3762
  %v3764 = vand.u32 2147483647, %v3763
  %v3766 = vcvt.s32.f32 %v3759
  %v3767 = vmul.f32 %v3766, %v3764
  %v3768 = vxor.u32 %v3767, 2147483648
  %v3769 = vsel %vm3686, %v3768, %v3767
  %v3770 = vsub.s32 4, %v3746
  %v3771 = vsel %vm3686, %v3770, %v3746
  %v3772 = vsel %vm3685, %v3682, %v3769
  %v3773 = vsel %vm3685, 0, %v3771
  %v3774 = vcosq.f32.pop %v3772
  %v3775 = vsinq.f32.pop %v3772
  %vm3776 = vweird.f32 %v3682
  %v3777 = vadd.s32 %v3773, 3
  %v3778 = vand.u32 %v3777, 3
  %vm3779 = vcmp.lt.s32.totalorder %v3778, 2
  %vm3780 = vcmp.eq.s32.totalorder %v3778, 0
  %v3781 = vxor.u32 %v3775, 2147483648
  %v3782 = vsel %vm3780, %v3774, %v3781
  %vm3783 = vcmp.eq.s32.totalorder %v3778, 2
  %v3784 = vxor.u32 %v3774, 2147483648
  %v3785 = vsel %vm3783, %v3784, %v3775
  %v3786 = vsel %vm3779, %v3782, %v3785
  %v3787 = vsel %vm3776, nan, %v3786
  %v3788 = vand.u32 2147483647, %v3683
  %vm3789 = vcmp.le.f32.partialorder %v3788, 0.7853982
  %vm3790 = vcmp.lt.s32.totalorder %v3683, 0
  %v3791 = vand.u32 %v3683, 2139095040
  %v3792 = vshrl.u32 %v3791, 23
  %v3793 = vsub.s32 %v3792, 127
  %v3794 = vand.u32 2147483647, %v3683
  %v3795 = vand.u32 %v3794, 8388607
  %v3796 = vor.u32 %v3795, 8388608
  %v3797 = vsub.s32 0, %v3796
  %v3798 = vadd.s32 %v3793, 1
  %vm3799 = vcmp.gt.s32.totalorder %v3798, 0
  %v3800 = vsel %vm3799, %v3798, 0
  %v3801 = vshrl.u32 %v3800, 5
  %v3802 = vand.u32 %v3800, 31
  %v3803 = vsub.s32 32, %v3802
  %v3804 = vshrl.u32 683565275, %v3803
  %v3805 = vshll.u32 683565275, %v3802
  %v3806 = vshrl.u32 2475754826, %v3803
  %v3807 = vor.u32 %v3805, %v3806
  %v3808 = vshll.u32 2475754826, %v3802
  %v3809 = vshrl.u32 2131351028, %v3803
  %v3810 = vor.u32 %v3808, %v3809
  %v3811 = vshll.u32 2131351028, %v3802
  %v3812 = vshrl.u32 2102212464, %v3803
  %v3813 = vor.u32 %v3811, %v3812
  %v3814 = vshll.u32 2102212464, %v3802
  %v3815 = vshrl.u32 920167782, %v3803
  %v3816 = vor.u32 %v3814, %v3815
  %v3817 = vshll.u32 920167782, %v3802
  %v3818 = vshrl.u32 1326507024, %v3803
  %v3819 = vor.u32 %v3817, %v3818
  %vm3820 = vcmp.lt.s32.totalorder %v3801, 1
  %vm3821 = vcmp.lt.s32.totalorder %v3801, 2
  %vm3822 = vcmp.lt.s32.totalorder %v3801, 3
  %vm3823 = vcmp.lt.s32.totalorder %v3801, 4
  %v3824 = vsel %vm3820, %v3804, %v3807
  %v3825 = vsel %vm3823, %v3813, 2102212464
  %v3826 = vsel %vm3822, %v3810, %v3825
  %v3827 = vsel %vm3821, %v3824, %v3826
  %v3828 = vsel %vm3820, %v3807, %v3810
  %v3829 = vsel %vm3823, %v3816, 920167782
  %v3830 = vsel %vm3822, %v3813, %v3829
  %v3831 = vsel %vm3821, %v3828, %v3830
  %v3832 = vsel %vm3820, %v3810, %v3813
  %v3833 = vsel %vm3823, %v3819, 1326507024
  %v3834 = vsel %vm3822, %v3816, %v3833
  %v3835 = vsel %vm3821, %v3832, %v3834
  %v3836 = vshll.u32 %v3796, 8
  %v3837 = vmul.u32.u64.compose %v3836, %v3835
  %v3838 = vextract.low.u32 %v3837
  %v3839 = vextract.high.u32 %v3837
  %v3840 = vmul.u32.u64.compose %v3836, %v3831
  %v3841 = vextract.low.u32 %v3840
  %v3842 = vextract.high.u32 %v3840
  %v3843 = vmul.u32 %v3836, %v3827
  %v3844 = vadd.s32 %v3839, %v3841
  %vm3845 = vc.u32 %v3839, %v3841
  %v3846 = vadd.s32 %v3842, 1
  %v3847 = vsel %vm3845, %v3846, %v3842
  %v3848 = vadd.s32 %v3843, %v3847
  %v3849 = vadd.s32 %v3848, 536870912
  %v3850 = vshrl.u32 %v3849, 30
  %v3851 = vshll.u32 %v3850, 30
  %v3852 = vsub.s32 %v3848, %v3851
  %vm3853 = vcmp.lt.s32.totalorder %v3852, 0
  %v3854 = vsub.s32 0, %v3852
  %v3855 = vsel %vm3853, %v3854, %v3852
  %v3856 = vclz %v3855
  %v3857 = vsub.s32 %v3856, 2
  %vm3858 = vcmp.gt.s32.totalorder 0, %v3857
  %v3859 = vsel %vm3858, 0, %v3857
  %v3860 = vsub.s32 32, %v3859
  %v3861 = vshll.u32 %v3852, %v3859
  %v3862 = vshrl.u32 %v3844, %v3860
  %v3863 = vor.u32 %v3861, %v3862
  %v3864 = vsub.s32 4294967266, %v3859
  %v3865 = vadd.s32 %v3864, 127
  %v3866 = vshll.u32 %v3865, 23
  %v3867 = vor.u32 4788187, %v3866
  %v3868 = vand.u32 2147483647, %v3867
  %v3870 = vcvt.s32.f32 %v3863
  %v3871 = vmul.f32 %v3870, %v3868
  %v3872 = vxor.u32 %v3871, 2147483648
  %v3873 = vsel %vm3790, %v3872, %v3871
  %v3874 = vsub.s32 4, %v3850
  %v3875 = vsel %vm3790, %v3874, %v3850
  %v3876 = vsel %vm3789, %v3683, %v3873
  %v3877 = vsel %vm3789, 0, %v3875
  %v3878 = vcosq.f32.pop %v3876
  %v3879 = vsinq.f32.pop %v3876
  %vm3880 = vweird.f32 %v3683
  %v3881 = vadd.s32 %v3877, 3
  %v3882 = vand.u32 %v3881, 3
  %vm3883 = vcmp.lt.s32.totalorder %v3882, 2
  %vm3884 = vcmp.eq.s32.totalorder %v3882, 0
  %v3885 = vxor.u32 %v3879, 2147483648
  %v3886 = vsel %vm3884, %v3878, %v3885
  %vm3887 = vcmp.eq.s32.totalorder %v3882, 2
  %v3888 = vxor.u32 %v3878, 2147483648
  %v3889 = vsel %vm3887, %v3888, %v3879
  %v3890 = vsel %vm3883, %v3886, %v3889
  %v3891 = vsel %vm3880, nan, %v3890
  %v3892 = vand.u32 2147483647, %v3682
  %vm3893 = vcmp.le.f32.partialorder %v3892, 0.7853982
  %vm3894 = vcmp.lt.s32.totalorder %v3682, 0
  %v3895 = vand.u32 %v3682, 2139095040
  %v3896 = vshrl.u32 %v3895, 23
  %v3897 = vsub.s32 %v3896, 127
  %v3898 = vand.u32 2147483647, %v3682
  %v3899 = vand.u32 %v3898, 8388607
  %v3900 = vor.u32 %v3899, 8388608
  %v3901 = vsub.s32 0, %v3900
  %v3902 = vadd.s32 %v3897, 1
  %vm3903 = vcmp.gt.s32.totalorder %v3902, 0
  %v3904 = vsel %vm3903, %v3902, 0
  %v3905 = vshrl.u32 %v3904, 5
  %v3906 = vand.u32 %v3904, 31
  %v3907 = vsub.s32 32, %v3906
  %v3908 = vshrl.u32 683565275, %v3907
  %v3909 = vshll.u32 683565275, %v3906
  %v3910 = vshrl.u32 2475754826, %v3907
  %v3911 = vor.u32 %v3909, %v3910
  %v3912 = vshll.u32 2475754826, %v3906
  %v3913 = vshrl.u32 2131351028, %v3907
  %v3914 = vor.u32 %v3912, %v3913
  %v3915 = vshll.u32 2131351028, %v3906
  %v3916 = vshrl.u32 2102212464, %v3907
  %v3917 = vor.u32 %v3915, %v3916
  %v3918 = vshll.u32 2102212464, %v3906
  %v3919 = vshrl.u32 920167782, %v3907
  %v3920 = vor.u32 %v3918, %v3919
  %v3921 = vshll.u32 920167782, %v3906
  %v3922 = vshrl.u32 1326507024, %v3907
  %v3923 = vor.u32 %v3921, %v3922
  %vm3924 = vcmp.lt.s32.totalorder %v3905, 1
  %vm3925 = vcmp.lt.s32.totalorder %v3905, 2
  %vm3926 = vcmp.lt.s32.totalorder %v3905, 3
  %vm3927 = vcmp.lt.s32.totalorder %v3905, 4
  %v3928 = vsel %vm3924, %v3908, %v3911
  %v3929 = vsel %vm3927, %v3917, 2102212464
  %v3930 = vsel %vm3926, %v3914, %v3929
  %v3931 = vsel %vm3925, %v3928, %v3930
  %v3932 = vsel %vm3924, %v3911, %v3914
  %v3933 = vsel %vm3927, %v3920, 920167782
  %v3934 = vsel %vm3926, %v3917, %v3933
  %v3935 = vsel %vm3925, %v3932, %v3934
  %v3936 = vsel %vm3924, %v3914, %v3917
  %v3937 = vsel %vm3927, %v3923, 1326507024
  %v3938 = vsel %vm3926, %v3920, %v3937
  %v3939 = vsel %vm3925, %v3936, %v3938
  %v3940 = vshll.u32 %v3900, 8
  %v3941 = vmul.u32.u64.compose %v3940, %v3939
  %v3942 = vextract.low.u32 %v3941
  %v3943 = vextract.high.u32 %v3941
  %v3944 = vmul.u32.u64.compose %v3940, %v3935
  %v3945 = vextract.low.u32 %v3944
  %v3946 = vextract.high.u32 %v3944
  %v3947 = vmul.u32 %v3940, %v3931
  %v3948 = vadd.s32 %v3943, %v3945
  %vm3949 = vc.u32 %v3943, %v3945
  %v3950 = vadd.s32 %v3946, 1
  %v3951 = vsel %vm3949, %v3950, %v3946
  %v3952 = vadd.s32 %v3947, %v3951
  %v3953 = vadd.s32 %v3952, 536870912
  %v3954 = vshrl.u32 %v3953, 30
  %v3955 = vshll.u32 %v3954, 30
  %v3956 = vsub.s32 %v3952, %v3955
  %vm3957 = vcmp.lt.s32.totalorder %v3956, 0
  %v3958 = vsub.s32 0, %v3956
  %v3959 = vsel %vm3957, %v3958, %v3956
  %v3960 = vclz %v3959
  %v3961 = vsub.s32 %v3960, 2
  %vm3962 = vcmp.gt.s32.totalorder 0, %v3961
  %v3963 = vsel %vm3962, 0, %v3961
  %v3964 = vsub.s32 32, %v3963
  %v3965 = vshll.u32 %v3956, %v3963
  %v3966 = vshrl.u32 %v3948, %v3964
  %v3967 = vor.u32 %v3965, %v3966
  %v3968 = vsub.s32 4294967266, %v3963
  %v3969 = vadd.s32 %v3968, 127
  %v3970 = vshll.u32 %v3969, 23
  %v3971 = vor.u32 4788187, %v3970
  %v3972 = vand.u32 2147483647, %v3971
  %v3974 = vcvt.s32.f32 %v3967
  %v3975 = vmul.f32 %v3974, %v3972
  %v3976 = vxor.u32 %v3975, 2147483648
  %v3977 = vsel %vm3894, %v3976, %v3975
  %v3978 = vsub.s32 4, %v3954
  %v3979 = vsel %vm3894, %v3978, %v3954
  %v3980 = vsel %vm3893, %v3682, %v3977
  %v3981 = vsel %vm3893, 0, %v3979
  %v3982 = vcosq.f32.pop %v3980
  %v3983 = vsinq.f32.pop %v3980
  %vm3984 = vweird.f32 %v3682
  %v3985 = vand.u32 %v3981, 3
  %vm3986 = vcmp.lt.s32.totalorder %v3985, 2
  %vm3987 = vcmp.eq.s32.totalorder %v3985, 0
  %v3988 = vxor.u32 %v3983, 2147483648
  %v3989 = vsel %vm3987, %v3982, %v3988
  %vm3990 = vcmp.eq.s32.totalorder %v3985, 2
  %v3991 = vxor.u32 %v3982, 2147483648
  %v3992 = vsel %vm3990, %v3991, %v3983
  %v3993 = vsel %vm3986, %v3989, %v3992
  %v3994 = vsel %vm3984, nan, %v3993
  %v3995 = vand.u32 2147483647, %v3683
  %vm3996 = vcmp.le.f32.partialorder %v3995, 0.7853982
  %vm3997 = vcmp.lt.s32.totalorder %v3683, 0
  %v3998 = vand.u32 %v3683, 2139095040
  %v3999 = vshrl.u32 %v3998, 23
  %v4000 = vsub.s32 %v3999, 127
  %v4001 = vand.u32 2147483647, %v3683
  %v4002 = vand.u32 %v4001, 8388607
  %v4003 = vor.u32 %v4002, 8388608
  %v4004 = vsub.s32 0, %v4003
  %v4005 = vadd.s32 %v4000, 1
  %vm4006 = vcmp.gt.s32.totalorder %v4005, 0
  %v4007 = vsel %vm4006, %v4005, 0
  %v4008 = vshrl.u32 %v4007, 5
  %v4009 = vand.u32 %v4007, 31
  %v4010 = vsub.s32 32, %v4009
  %v4011 = vshrl.u32 683565275, %v4010
  %v4012 = vshll.u32 683565275, %v4009
  %v4013 = vshrl.u32 2475754826, %v4010
  %v4014 = vor.u32 %v4012, %v4013
  %v4015 = vshll.u32 2475754826, %v4009
  %v4016 = vshrl.u32 2131351028, %v4010
  %v4017 = vor.u32 %v4015, %v4016
  %v4018 = vshll.u32 2131351028, %v4009
  %v4019 = vshrl.u32 2102212464, %v4010
  %v4020 = vor.u32 %v4018, %v4019
  %v4021 = vshll.u32 2102212464, %v4009
  %v4022 = vshrl.u32 920167782, %v4010
  %v4023 = vor.u32 %v4021, %v4022
  %v4024 = vshll.u32 920167782, %v4009
  %v4025 = vshrl.u32 1326507024, %v4010
  %v4026 = vor.u32 %v4024, %v4025
  %vm4027 = vcmp.lt.s32.totalorder %v4008, 1
  %vm4028 = vcmp.lt.s32.totalorder %v4008, 2
  %vm4029 = vcmp.lt.s32.totalorder %v4008, 3
  %vm4030 = vcmp.lt.s32.totalorder %v4008, 4
  %v4031 = vsel %vm4027, %v4011, %v4014
  %v4032 = vsel %vm4030, %v4020, 2102212464
  %v4033 = vsel %vm4029, %v4017, %v4032
  %v4034 = vsel %vm4028, %v4031, %v4033
  %v4035 = vsel %vm4027, %v4014, %v4017
  %v4036 = vsel %vm4030, %v4023, 920167782
  %v4037 = vsel %vm4029, %v4020, %v4036
  %v4038 = vsel %vm4028, %v4035, %v4037
  %v4039 = vsel %vm4027, %v4017, %v4020
  %v4040 = vsel %vm4030, %v4026, 1326507024
  %v4041 = vsel %vm4029, %v4023, %v4040
  %v4042 = vsel %vm4028, %v4039, %v4041
  %v4043 = vshll.u32 %v4003, 8
  %v4044 = vmul.u32.u64.compose %v4043, %v4042
  %v4045 = vextract.low.u32 %v4044
  %v4046 = vextract.high.u32 %v4044
  %v4047 = vmul.u32.u64.compose %v4043, %v4038
  %v4048 = vextract.low.u32 %v4047
  %v4049 = vextract.high.u32 %v4047
  %v4050 = vmul.u32 %v4043, %v4034
  %v4051 = vadd.s32 %v4046, %v4048
  %vm4052 = vc.u32 %v4046, %v4048
  %v4053 = vadd.s32 %v4049, 1
  %v4054 = vsel %vm4052, %v4053, %v4049
  %v4055 = vadd.s32 %v4050, %v4054
  %v4056 = vadd.s32 %v4055, 536870912
  %v4057 = vshrl.u32 %v4056, 30
  %v4058 = vshll.u32 %v4057, 30
  %v4059 = vsub.s32 %v4055, %v4058
  %vm4060 = vcmp.lt.s32.totalorder %v4059, 0
  %v4061 = vsub.s32 0, %v4059
  %v4062 = vsel %vm4060, %v4061, %v4059
  %v4063 = vclz %v4062
  %v4064 = vsub.s32 %v4063, 2
  %vm4065 = vcmp.gt.s32.totalorder 0, %v4064
  %v4066 = vsel %vm4065, 0, %v4064
  %v4067 = vsub.s32 32, %v4066
  %v4068 = vshll.u32 %v4059, %v4066
  %v4069 = vshrl.u32 %v4051, %v4067
  %v4070 = vor.u32 %v4068, %v4069
  %v4071 = vsub.s32 4294967266, %v4066
  %v4072 = vadd.s32 %v4071, 127
  %v4073 = vshll.u32 %v4072, 23
  %v4074 = vor.u32 4788187, %v4073
  %v4075 = vand.u32 2147483647, %v4074
  %v4077 = vcvt.s32.f32 %v4070
  %v4078 = vmul.f32 %v4077, %v4075
  %v4079 = vxor.u32 %v4078, 2147483648
  %v4080 = vsel %vm3997, %v4079, %v4078
  %v4081 = vsub.s32 4, %v4057
  %v4082 = vsel %vm3997, %v4081, %v4057
  %v4083 = vsel %vm3996, %v3683, %v4080
  %v4084 = vsel %vm3996, 0, %v4082
  %v4085 = vcosq.f32.pop %v4083
  %v4086 = vsinq.f32.pop %v4083
  %vm4087 = vweird.f32 %v3683
  %v4088 = vand.u32 %v4084, 3
  %vm4089 = vcmp.lt.s32.totalorder %v4088, 2
  %vm4090 = vcmp.eq.s32.totalorder %v4088, 0
  %v4091 = vxor.u32 %v4086, 2147483648
  %v4092 = vsel %vm4090, %v4085, %v4091
  %vm4093 = vcmp.eq.s32.totalorder %v4088, 2
  %v4094 = vxor.u32 %v4085, 2147483648
  %v4095 = vsel %vm4093, %v4094, %v4086
  %v4096 = vsel %vm4089, %v4092, %v4095
  %v4097 = vsel %vm4087, nan, %v4096
  %4100 = vrot.lane.b32.xlu0 %v3787, 48
  %v4101 = vpop.permute.xlu0 %4100
  %4102 = vrot.lane.b32.xlu0 %v3891, 48
  %v4103 = vpop.permute.xlu0 %4102
  %v4106 = vlaneseq
  %v4107 = vand.u32 %v4106, 127
  %vm4108 = vcmp.ge.s32.totalorder %v4107, 72
  %vm4109 = vcmp.lt.s32.totalorder %v4107, 96
  %vm4110 = vmand %vm4108, %vm4109
  %v4111 = vsel %vm4110, %v3787, %v3994
  %v4112 = vsel %vm4110, %v3891, %v4097
  %vm4113 = vcmp.ge.s32.totalorder %v4107, 48
  %vm4114 = vmand %vm4113, %vm4109
  %v4115 = vsel %vm4114, %v4101, 1.0
  %v4116 = vsel %vm4114, %v4103, 1.0
  %v4117 = vmul.f32 %v4111, %v4115
  %v4118 = vmul.f32 %v4112, %v4116
  %v4119 = vmul.f32 %v3679, 30.0
  %v4120 = vmul.f32 %v3681, 30.0
  %v4121 = vadd.f32 %v4119, 0.1
  %v4122 = vadd.f32 %v4120, 0.1
  %v4123 = vsel %vm4109, %v4117, %v4121
  %v4124 = vsel %vm4109, %v4118, %v4122
  %4125 = vst [vmem:[%s11] sm:$0xff] %v4123
  %4126 = vst [vmem:[%s11 + $0x10] sm:$0xff] %v4124
  %v4127 = vmax.f32 %v3664, 0.0
  %v4128 = vmax.f32 %v3668, 0.0
  %4129 = vst [vmem:[%s11 + $0x8] sm:$0xff] %v4127
  %4130 = vst [vmem:[%s11 + $0x18] sm:$0xff] %v4128
  // Predicated region
  $region46: #{indirect_light_forward.1} parent=0 // pred_check
    _
  $region47: #{indirect_light_forward.1} parent=0 // pred_check_branch
    %4132 = sbr.rel (0) target = $region49
  $region48: #{indirect_light_forward.1} parent=0 // pred_region
    _
  $region49: #{indirect_light_forward.1} parent=0 // pred_fallthru
    _
  // Predicated region
  $region50: #{indirect_light_forward.1} parent=0 // pred_check
    _
  $region51: #{indirect_light_forward.1} parent=0 // pred_check_branch
    %4134 = sbr.rel (0) target = $region53
  $region52: #{indirect_light_forward.1} parent=0 // pred_region
    _
  $region53: #{indirect_light_forward.1} parent=0 // pred_fallthru
    _

</llo_original>
